<compile_context>
chip_gen: v6e
topology: v6e:2x2x1
jax: 0.10.0
libtpu: 0.0.40
codegen_flags: <defaults>
</compile_context>

<pallas_src>
import numpy as np

import jax
import jax.numpy as jnp
from jax import lax
from jax.experimental import pallas as pl
from jax.experimental.pallas import tpu as pltpu


_LN_EPS = 1e-5
_MAX_ROW_TILE = 64          # bounds the static unroll inside the kernel


def _round_up(v, m):
    return (v + m - 1) // m * m


def _cdiv(a, b):
    return (a + b - 1) // b


def _vmem_capacity_bytes():
    """Per-core VMEM capacity; conservative fallback if the query fails."""
    try:
        cap = int(getattr(pltpu.get_tpu_info(), "vmem_capacity_bytes", 0))
        if cap > 0:
            return cap
    except Exception:
        pass
    return 64 * 1024 * 1024   # v7x per-TensorCore VMEM (smallest of the three)


# ---------------------------------------------------------------------------
# Fused gather + LayerNorm + (bias-free) reduction kernel
# ---------------------------------------------------------------------------

def _make_merge_kernel(tr, Wp, Wo, C, out_dtype):
    """One grid step = `tr` output rows (2*tr input image rows, W-major)."""
    inv_k = 1.0 / float(4 * C)

    def kernel(x_ref, g_ref, b_ref, w_ref, o_ref):
        # x_ref: (1, 2*Wp*tr, C) input dtype   g/b: (1, 4C) f32
        # w_ref: (4C, 2C) bf16                 o_ref: (1, tr*Wo, 2C) out dtype
        g = g_ref[...]
        be = b_ref[...]
        gs = [g[:, q * C:(q + 1) * C] for q in range(4)]
        bs = [be[:, q * C:(q + 1) * C] for q in range(4)]
        ws = [w_ref[q * C:(q + 1) * C, :] for q in range(4)]      # (C, 2C) bf16

        for r in range(tr):                        # static unroll over rows
            ev = 2 * r * Wp                        # even input image row
            od = ev + Wp                           # odd input image row
            # Swin channel order: [even/even, odd/even, even/odd, odd/odd]
            # (H parity / W parity) -- even/odd W columns via stride-2 loads.
            pieces = (
                x_ref[0, pl.ds(ev, Wo, stride=2), :],
                x_ref[0, pl.ds(od, Wo, stride=2), :],
                x_ref[0, pl.ds(ev + 1, Wo, stride=2), :],
                x_ref[0, pl.ds(od + 1, Wo, stride=2), :],
            )
            xf = [p.astype(jnp.float32) for p in pieces]           # (Wo, C)
            # Single-pass LayerNorm moments over the virtual 4C concat.
            s1 = (xf[0] + xf[1] + xf[2] + xf[3]).sum(axis=-1, keepdims=True)
            s2 = (xf[0] * xf[0] + xf[1] * xf[1]
                  + xf[2] * xf[2] + xf[3] * xf[3]).sum(axis=-1, keepdims=True)
            mu = s1 * inv_k
            var = s2 * inv_k - mu * mu
            rstd = lax.rsqrt(var + _LN_EPS)
            acc = None
            for q in range(4):
                xn = ((xf[q] - mu) * rstd) * gs[q] + bs[q]
                part = jnp.dot(xn.astype(jnp.bfloat16), ws[q],
                               preferred_element_type=jnp.float32)
                acc = part if acc is None else acc + part
            o_ref[0, pl.ds(r * Wo, Wo), :] = acc.astype(out_dtype)

    return kernel


def _pick_row_tile(B, Ho, Wp, C, in_bytes, out_bytes, budget_bytes):
    """Largest usable row tile (multiple of 8, or the full Ho) within budget."""
    Wo = Wp // 2
    c_pad = _round_up(C, 128)
    n2_pad = _round_up(2 * C, 128)
    k4_pad = _round_up(4 * C, 128)

    def est(tr):
        in_blk = 2 * _round_up(2 * Wp * tr, 16) * c_pad * in_bytes   # x tile, 2 buffers
        out_blk = 2 * _round_up(tr * Wo, 8) * n2_pad * out_bytes     # y tile, 2 buffers
        wgt = 3 * _round_up(4 * C, 8) * n2_pad * 2                   # 2 buffers + kernel copy
        gb = 4 * 8 * k4_pad * 4                                      # gamma / beta
        return in_blk + out_blk + wgt + gb + (2 << 20)               # compiler slack

    cap = 8
    t = 16
    while t <= min(_round_up(Ho, 8), _MAX_ROW_TILE) and est(t) <= budget_bytes:
        cap = t
        t += 8

    if Ho <= cap:
        tr = Ho
        if B < 2 and Ho > 8:
            # B*grid_rows would be 1: split so v7x's second TensorCore gets work.
            tr = _round_up(_cdiv(Ho, 2), 8)
    else:
        nsteps = _cdiv(Ho, cap)
        tr = _round_up(_cdiv(Ho, nsteps), 8)     # balanced tiles, bounded waste
        while tr > 8 and est(tr) > budget_bytes:
            tr -= 8
    tr = max(1, min(tr, max(Ho, 1)))
    return tr, est


def _fused_forward(x, params, B, Hp, Wp, out_dtype, row_tile=None):
    C = x.shape[-1]
    Ho, Wo = Hp // 2, Wp // 2
    cap_bytes = _vmem_capacity_bytes()
    tr, est = _pick_row_tile(B, Ho, Wp, C, x.dtype.itemsize,
                             jnp.dtype(out_dtype).itemsize,
                             int(0.45 * cap_bytes))
    if row_tile is not None:
        tr = row_tile
    grid = (B, _cdiv(Ho, tr))
    vmem_limit = int(min(0.9 * cap_bytes,
                         max(est(tr) + (8 << 20), 0.45 * cap_bytes)))

    kernel = _make_merge_kernel(tr, Wp, Wo, C, out_dtype)
    return pl.pallas_call(
        kernel,
        out_shape=jax.ShapeDtypeStruct((B, Ho * Wo, 2 * C), out_dtype),
        grid=grid,
        in_specs=[
            pl.BlockSpec((1, 2 * Wp * tr, C), lambda b, i: (b, i, 0)),
            pl.BlockSpec((1, 4 * C), lambda b, i: (0, 0)),
            pl.BlockSpec((1, 4 * C), lambda b, i: (0, 0)),
            pl.BlockSpec((4 * C, 2 * C), lambda b, i: (0, 0)),  # resident weight
        ],
        out_specs=pl.BlockSpec((1, tr * Wo, 2 * C), lambda b, i: (b, i, 0)),
        compiler_params=pltpu.CompilerParams(
            dimension_semantics=("parallel", "parallel"),
            vmem_limit_bytes=vmem_limit,
        ),
    )(x, params["norm_g"], params["norm_b"], params["red_w_bf16"])


# ---------------------------------------------------------------------------
# Last-resort fallback: JAX gather + fused LN/matmul kernel (no strided refs)
# ---------------------------------------------------------------------------

def _ln_reduce_kernel(x_ref, g_ref, b_ref, w_ref, o_ref):
    x = x_ref[...].astype(jnp.float32)
    k = x.shape[-1]
    s1 = jnp.sum(x, axis=-1, keepdims=True)
    s2 = jnp.sum(x * x, axis=-1, keepdims=True)
    mu = s1 / k
    var = s2 / k - mu * mu
    xn = (x - mu) * lax.rsqrt(var + _LN_EPS) * g_ref[...] + b_ref[...]
    o_ref[...] = jnp.dot(xn.astype(jnp.bfloat16), w_ref[...],
                         preferred_element_type=jnp.float32).astype(o_ref.dtype)


def _unfused_forward(x, params, B, Hp, Wp, out_dtype):
    C = x.shape[-1]
    Ho, Wo = Hp // 2, Wp // 2
    xh = x.reshape(B, Hp, Wp, C)
    x2d = jnp.concatenate(
        [xh[:, 0::2, 0::2, :], xh[:, 1::2, 0::2, :],
         xh[:, 0::2, 1::2, :], xh[:, 1::2, 1::2, :]], axis=-1,
    ).reshape(B * Ho * Wo, 4 * C)
    M = x2d.shape[0]
    tm = 256 if M >= 256 else _round_up(M, 8)
    Mp = _round_up(M, tm)
    if Mp != M:
        x2d = jnp.pad(x2d, ((0, Mp - M), (0, 0)))
    out = pl.pallas_call(
        _ln_reduce_kernel,
        out_shape=jax.ShapeDtypeStruct((Mp, 2 * C), out_dtype),
        grid=(Mp // tm,),
        in_specs=[
            pl.BlockSpec((tm, 4 * C), lambda i: (i, 0)),
            pl.BlockSpec((1, 4 * C), lambda i: (0, 0)),
            pl.BlockSpec((1, 4 * C), lambda i: (0, 0)),
            pl.BlockSpec((4 * C, 2 * C), lambda i: (0, 0)),
        ],
        out_specs=pl.BlockSpec((tm, 2 * C), lambda i: (i, 0)),
        compiler_params=pltpu.CompilerParams(
            dimension_semantics=("parallel",),
            vmem_limit_bytes=int(0.7 * _vmem_capacity_bytes()),
        ),
    )(x2d, params["norm_g"], params["norm_b"], params["red_w_bf16"])
    return out[:M].reshape(B, Ho * Wo, 2 * C)


# ---------------------------------------------------------------------------
# PatchMerging forward
# ---------------------------------------------------------------------------

def patch_merging_forward(x, H, W, params, *, row_tile=None):
    """Pallas PatchMerging: x (B, H*W, C) -> (B, ceil(H/2)*ceil(W/2), 2C)."""
    B, L, C = x.shape
    assert L == H * W, "input feature has wrong size"
    out_dtype = x.dtype

    if (H % 2) or (W % 2):
        # TODO(synk): odd H/W requires a real zero-pad copy (mirrors F.pad);
        #             the common even-dims case is zero-copy into the kernel.
        xh = jnp.pad(x.reshape(B, H, W, C),
                     ((0, 0), (0, H % 2), (0, W % 2), (0, 0)))
        Hp, Wp = H + H % 2, W + W % 2
        x = xh.reshape(B, Hp * Wp, C)
    else:
        Hp, Wp = H, W

    if row_tile is not None:
        Ho = Hp // 2
        assert row_tile == Ho or row_tile % 8 == 0, \
            "row_tile must equal Ho or be a multiple of 8"

    try:
        return _fused_forward(x, params, B, Hp, Wp, out_dtype, row_tile)
    except Exception:
        pass
    try:
        # Retry with f32 tiles in case sub-word strided loads fail to lower.
        return _fused_forward(x.astype(jnp.float32), params, B, Hp, Wp,
                              out_dtype, row_tile)
    except Exception:
        pass
    return _unfused_forward(x, params, B, Hp, Wp, out_dtype)


def patch_merging_reference(x, H, W, params):
    """Pure-JAX f32 reference (mirrors the PyTorch forward)."""
    B, L, C = x.shape
    xh = x.astype(jnp.float32).reshape(B, H, W, C)
    if (H % 2) or (W % 2):
        xh = jnp.pad(xh, ((0, 0), (0, H % 2), (0, W % 2), (0, 0)))
    xc = jnp.concatenate(
        [xh[:, 0::2, 0::2, :], xh[:, 1::2, 0::2, :],
         xh[:, 0::2, 1::2, :], xh[:, 1::2, 1::2, :]], axis=-1)
    Ho, Wo = xc.shape[1], xc.shape[2]
    x2d = xc.reshape(B * Ho * Wo, 4 * C)
    mu = jnp.mean(x2d, axis=-1, keepdims=True)
    var = jnp.mean((x2d - mu) ** 2, axis=-1, keepdims=True)
    xn = (x2d - mu) / jnp.sqrt(var + _LN_EPS) * params["norm_g"] + params["norm_b"]
    y = xn @ params["red_w"]
    return y.reshape(B, Ho * Wo, 2 * C)


def init_params(key, dim):
    """Deterministic params, pre-packed once (bf16 weight, (1, 4C) LN params)."""
    kw, kg, kb = jax.random.split(key, 3)
    red_w = 0.02 * jax.random.normal(kw, (4 * dim, 2 * dim), jnp.float32)
    norm_g = 1.0 + 0.05 * jax.random.normal(kg, (4 * dim,), jnp.float32)
    norm_b = 0.05 * jax.random.normal(kb, (4 * dim,), jnp.float32)
    return {
        "norm_g": norm_g.reshape(1, 4 * dim),
        "norm_b": norm_b.reshape(1, 4 * dim),
        "red_w": red_w,                          # f32 copy for the reference
        "red_w_bf16": red_w.astype(jnp.bfloat16),
    }


# ---------------------------------------------------------------------------

if __name__ == "__main__":
    ks = jax.random.split(jax.random.PRNGKey(0), 6)

    # Case 1: even spatial dims, bf16 activations (production path).
    B, H, W, C = 2, 16, 16, 32
    params = init_params(ks[0], C)
    x = jax.random.normal(ks[1], (B, H * W, C), jnp.float32).astype(jnp.bfloat16)
    y = jax.block_until_ready(patch_merging_forward(x, H, W, params))
    assert y.shape == (B, (H // 2) * (W // 2), 2 * C) and y.dtype == x.dtype
    y_ref = patch_merging_reference(x, H, W, params)
    np.testing.assert_allclose(np.asarray(y.astype(jnp.float32)),
                               np.asarray(y_ref), rtol=2e-2, atol=2e-2)

    # Case 2: odd spatial dims (F.pad path), f32 activations.
    B2, H2, W2, C2 = 2, 7, 9, 16
    params2 = init_params(ks[2], C2)
    x2 = jax.random.normal(ks[3], (B2, H2 * W2, C2), jnp.float32)
    y2 = jax.block_until_ready(patch_merging_forward(x2, H2, W2, params2))
    assert y2.shape == (B2, ((H2 + 1) // 2) * ((W2 + 1) // 2), 2 * C2)
    y2_ref = patch_merging_reference(x2, H2, W2, params2)
    np.testing.assert_allclose(np.asarray(y2), np.asarray(y2_ref),
                               rtol=2e-2, atol=2e-2)

    # Case 3: Swin-T stage-1 merge shape, bf16.
    B3, H3, W3, C3 = 2, 56, 56, 96
    params3 = init_params(ks[4], C3)
    x3 = jax.random.normal(ks[5], (B3, H3 * W3, C3), jnp.float32).astype(jnp.bfloat16)
    y3 = jax.block_until_ready(patch_merging_forward(x3, H3, W3, params3))
    assert y3.shape == (B3, (H3 // 2) * (W3 // 2), 2 * C3)
    y3_ref = patch_merging_reference(x3, H3, W3, params3)
    np.testing.assert_allclose(np.asarray(y3.astype(jnp.float32)),
                               np.asarray(y3_ref), rtol=2e-2, atol=2e-2)

    # Case 4: forced multi row-tile + masked partial last block (Ho=28, tr=8).
    y4 = jax.block_until_ready(
        patch_merging_forward(x3, H3, W3, params3, row_tile=8))
    np.testing.assert_allclose(np.asarray(y4.astype(jnp.float32)),
                               np.asarray(y3_ref), rtol=2e-2, atol=2e-2)

    for o in (y, y2, y3, y4):
        assert bool(jnp.all(jnp.isfinite(o.astype(jnp.float32))))
    print("KERNEL_OK")
</pallas_src>

<mosaic_0001>
module attributes {stable_mosaic.version = 11 : i64} {
  func.func @kernel(%arg0: i32, %arg1: i32, %arg2: memref<1x256x32xbf16, #tpu.memory_space<vmem>>, %arg3: memref<1x128xf32, #tpu.memory_space<vmem>>, %arg4: memref<1x128xf32, #tpu.memory_space<vmem>>, %arg5: memref<128x64xbf16, #tpu.memory_space<vmem>>, %arg6: memref<1x64x64xbf16, #tpu.memory_space<vmem>>) attributes {dimension_semantics = [#tpu.dimension_semantics<parallel>, #tpu.dimension_semantics<parallel>], iteration_bounds = array<i64: 2, 1>, scalar_prefetch = 0 : i64, scratch_operands = 0 : i64, tpu.core_type = #tpu.core_type<tc>, window_params = [{transform_indices = @transform_0, window_bounds = array<i64: 1, 256, 32>}, {pipeline_mode = #tpu.pipeline_mode<synchronous>, transform_indices = @transform_1, window_bounds = array<i64: 1, 128>}, {pipeline_mode = #tpu.pipeline_mode<synchronous>, transform_indices = @transform_2, window_bounds = array<i64: 1, 128>}, {pipeline_mode = #tpu.pipeline_mode<synchronous>, transform_indices = @transform_3, window_bounds = array<i64: 128, 64>}, {transform_indices = @transform_4, window_bounds = array<i64: 1, 64, 64>}]} {
    %c0 = arith.constant 0 : index
    %c0_0 = arith.constant 0 : index
    %0 = vector.load %arg3[%c0, %c0_0] : memref<1x128xf32, #tpu.memory_space<vmem>>, vector<1x128xf32>
    %c0_1 = arith.constant 0 : index
    %c0_2 = arith.constant 0 : index
    %1 = vector.load %arg4[%c0_1, %c0_2] : memref<1x128xf32, #tpu.memory_space<vmem>>, vector<1x128xf32>
    %2 = vector.extract_strided_slice %0 {offsets = [0, 0], sizes = [1, 32], strides = [1, 1]} : vector<1x128xf32> to vector<1x32xf32>
    %3 = vector.extract_strided_slice %0 {offsets = [0, 32], sizes = [1, 32], strides = [1, 1]} : vector<1x128xf32> to vector<1x32xf32>
    %4 = vector.extract_strided_slice %0 {offsets = [0, 64], sizes = [1, 32], strides = [1, 1]} : vector<1x128xf32> to vector<1x32xf32>
    %5 = vector.extract_strided_slice %0 {offsets = [0, 96], sizes = [1, 32], strides = [1, 1]} : vector<1x128xf32> to vector<1x32xf32>
    %6 = vector.extract_strided_slice %1 {offsets = [0, 0], sizes = [1, 32], strides = [1, 1]} : vector<1x128xf32> to vector<1x32xf32>
    %7 = vector.extract_strided_slice %1 {offsets = [0, 32], sizes = [1, 32], strides = [1, 1]} : vector<1x128xf32> to vector<1x32xf32>
    %8 = vector.extract_strided_slice %1 {offsets = [0, 64], sizes = [1, 32], strides = [1, 1]} : vector<1x128xf32> to vector<1x32xf32>
    %9 = vector.extract_strided_slice %1 {offsets = [0, 96], sizes = [1, 32], strides = [1, 1]} : vector<1x128xf32> to vector<1x32xf32>
    %c0_3 = arith.constant 0 : index
    %c0_4 = arith.constant 0 : index
    %10 = vector.load %arg5[%c0_3, %c0_4] : memref<128x64xbf16, #tpu.memory_space<vmem>>, vector<32x64xbf16>
    %c32 = arith.constant 32 : index
    %c0_5 = arith.constant 0 : index
    %11 = vector.load %arg5[%c32, %c0_5] : memref<128x64xbf16, #tpu.memory_space<vmem>>, vector<32x64xbf16>
    %c64 = arith.constant 64 : index
    %c0_6 = arith.constant 0 : index
    %12 = vector.load %arg5[%c64, %c0_6] : memref<128x64xbf16, #tpu.memory_space<vmem>>, vector<32x64xbf16>
    %c96 = arith.constant 96 : index
    %c0_7 = arith.constant 0 : index
    %13 = vector.load %arg5[%c96, %c0_7] : memref<128x64xbf16, #tpu.memory_space<vmem>>, vector<32x64xbf16>
    %c0_8 = arith.constant 0 : index
    %c0_9 = arith.constant 0 : index
    %c0_10 = arith.constant 0 : index
    %14 = tpu.strided_load %arg2[%c0_8, %c0_9, %c0_10] {strides = array<i32: 1, 2, 1>} : memref<1x256x32xbf16, #tpu.memory_space<vmem>>, vector<1x8x32xbf16>
    %15 = vector.shape_cast %14 : vector<1x8x32xbf16> to vector<8x32xbf16>
    %c0_11 = arith.constant 0 : index
    %c16 = arith.constant 16 : index
    %c0_12 = arith.constant 0 : index
    %16 = tpu.strided_load %arg2[%c0_11, %c16, %c0_12] {strides = array<i32: 1, 2, 1>} : memref<1x256x32xbf16, #tpu.memory_space<vmem>>, vector<1x8x32xbf16>
    %17 = vector.shape_cast %16 : vector<1x8x32xbf16> to vector<8x32xbf16>
    %c0_13 = arith.constant 0 : index
    %c1 = arith.constant 1 : index
    %c0_14 = arith.constant 0 : index
    %18 = tpu.strided_load %arg2[%c0_13, %c1, %c0_14] {strides = array<i32: 1, 2, 1>} : memref<1x256x32xbf16, #tpu.memory_space<vmem>>, vector<1x8x32xbf16>
    %19 = vector.shape_cast %18 : vector<1x8x32xbf16> to vector<8x32xbf16>
    %c0_15 = arith.constant 0 : index
    %c17 = arith.constant 17 : index
    %c0_16 = arith.constant 0 : index
    %20 = tpu.strided_load %arg2[%c0_15, %c17, %c0_16] {strides = array<i32: 1, 2, 1>} : memref<1x256x32xbf16, #tpu.memory_space<vmem>>, vector<1x8x32xbf16>
    %21 = vector.shape_cast %20 : vector<1x8x32xbf16> to vector<8x32xbf16>
    %22 = arith.extf %15 : vector<8x32xbf16> to vector<8x32xf32>
    %23 = arith.extf %17 : vector<8x32xbf16> to vector<8x32xf32>
    %24 = arith.extf %19 : vector<8x32xbf16> to vector<8x32xf32>
    %25 = arith.extf %21 : vector<8x32xbf16> to vector<8x32xf32>
    %26 = arith.addf %22, %23 : vector<8x32xf32>
    %27 = arith.addf %26, %24 : vector<8x32xf32>
    %28 = arith.addf %27, %25 : vector<8x32xf32>
    %cst = arith.constant dense<0.000000e+00> : vector<8xf32>
    %29 = vector.multi_reduction <add>, %28, %cst [1] : vector<8x32xf32> to vector<8xf32>
    %30 = vector.shape_cast %29 : vector<8xf32> to vector<8x1xf32>
    %31 = arith.mulf %22, %22 : vector<8x32xf32>
    %32 = arith.mulf %23, %23 : vector<8x32xf32>
    %33 = arith.addf %31, %32 : vector<8x32xf32>
    %34 = arith.mulf %24, %24 : vector<8x32xf32>
    %35 = arith.addf %33, %34 : vector<8x32xf32>
    %36 = arith.mulf %25, %25 : vector<8x32xf32>
    %37 = arith.addf %35, %36 : vector<8x32xf32>
    %cst_17 = arith.constant dense<0.000000e+00> : vector<8xf32>
    %38 = vector.multi_reduction <add>, %37, %cst_17 [1] : vector<8x32xf32> to vector<8xf32>
    %39 = vector.shape_cast %38 : vector<8xf32> to vector<8x1xf32>
    %cst_18 = arith.constant 7.812500e-03 : f32
    %40 = vector.broadcast %cst_18 : f32 to vector<8x1xf32>
    %41 = arith.mulf %30, %40 : vector<8x1xf32>
    %cst_19 = arith.constant 7.812500e-03 : f32
    %42 = vector.broadcast %cst_19 : f32 to vector<8x1xf32>
    %43 = arith.mulf %39, %42 : vector<8x1xf32>
    %44 = arith.mulf %41, %41 : vector<8x1xf32>
    %45 = arith.subf %43, %44 : vector<8x1xf32>
    %cst_20 = arith.constant 9.99999974E-6 : f32
    %46 = vector.broadcast %cst_20 : f32 to vector<8x1xf32>
    %47 = arith.addf %45, %46 : vector<8x1xf32>
    %48 = math.rsqrt %47 : vector<8x1xf32>
    %49 = vector.broadcast %41 : vector<8x1xf32> to vector<8x32xf32>
    %50 = arith.subf %22, %49 : vector<8x32xf32>
    %51 = vector.broadcast %48 : vector<8x1xf32> to vector<8x32xf32>
    %52 = arith.mulf %50, %51 : vector<8x32xf32>
    %53 = vector.broadcast %2 : vector<1x32xf32> to vector<8x32xf32>
    %54 = arith.mulf %52, %53 : vector<8x32xf32>
    %55 = vector.broadcast %6 : vector<1x32xf32> to vector<8x32xf32>
    %56 = arith.addf %54, %55 : vector<8x32xf32>
    %57 = arith.truncf %56 : vector<8x32xf32> to vector<8x32xbf16>
    %cst_21 = arith.constant dense<0.000000e+00> : vector<8x64xf32>
    %58 = tpu.matmul %57, %10, %cst_21 {dimension_numbers = #tpu.dot_dimension_numbers<[1], [0], [0], [1], [0, 0, 1, 1], [], []>} : vector<8x32xbf16>, vector<32x64xbf16>, vector<8x64xf32> -> vector<8x64xf32>
    %59 = vector.broadcast %41 : vector<8x1xf32> to vector<8x32xf32>
    %60 = arith.subf %23, %59 : vector<8x32xf32>
    %61 = vector.broadcast %48 : vector<8x1xf32> to vector<8x32xf32>
    %62 = arith.mulf %60, %61 : vector<8x32xf32>
    %63 = vector.broadcast %3 : vector<1x32xf32> to vector<8x32xf32>
    %64 = arith.mulf %62, %63 : vector<8x32xf32>
    %65 = vector.broadcast %7 : vector<1x32xf32> to vector<8x32xf32>
    %66 = arith.addf %64, %65 : vector<8x32xf32>
    %67 = arith.truncf %66 : vector<8x32xf32> to vector<8x32xbf16>
    %cst_22 = arith.constant dense<0.000000e+00> : vector<8x64xf32>
    %68 = tpu.matmul %67, %11, %cst_22 {dimension_numbers = #tpu.dot_dimension_numbers<[1], [0], [0], [1], [0, 0, 1, 1], [], []>} : vector<8x32xbf16>, vector<32x64xbf16>, vector<8x64xf32> -> vector<8x64xf32>
    %69 = arith.addf %58, %68 : vector<8x64xf32>
    %70 = vector.broadcast %41 : vector<8x1xf32> to vector<8x32xf32>
    %71 = arith.subf %24, %70 : vector<8x32xf32>
    %72 = vector.broadcast %48 : vector<8x1xf32> to vector<8x32xf32>
    %73 = arith.mulf %71, %72 : vector<8x32xf32>
    %74 = vector.broadcast %4 : vector<1x32xf32> to vector<8x32xf32>
    %75 = arith.mulf %73, %74 : vector<8x32xf32>
    %76 = vector.broadcast %8 : vector<1x32xf32> to vector<8x32xf32>
    %77 = arith.addf %75, %76 : vector<8x32xf32>
    %78 = arith.truncf %77 : vector<8x32xf32> to vector<8x32xbf16>
    %cst_23 = arith.constant dense<0.000000e+00> : vector<8x64xf32>
    %79 = tpu.matmul %78, %12, %cst_23 {dimension_numbers = #tpu.dot_dimension_numbers<[1], [0], [0], [1], [0, 0, 1, 1], [], []>} : vector<8x32xbf16>, vector<32x64xbf16>, vector<8x64xf32> -> vector<8x64xf32>
    %80 = arith.addf %69, %79 : vector<8x64xf32>
    %81 = vector.broadcast %41 : vector<8x1xf32> to vector<8x32xf32>
    %82 = arith.subf %25, %81 : vector<8x32xf32>
    %83 = vector.broadcast %48 : vector<8x1xf32> to vector<8x32xf32>
    %84 = arith.mulf %82, %83 : vector<8x32xf32>
    %85 = vector.broadcast %5 : vector<1x32xf32> to vector<8x32xf32>
    %86 = arith.mulf %84, %85 : vector<8x32xf32>
    %87 = vector.broadcast %9 : vector<1x32xf32> to vector<8x32xf32>
    %88 = arith.addf %86, %87 : vector<8x32xf32>
    %89 = arith.truncf %88 : vector<8x32xf32> to vector<8x32xbf16>
    %cst_24 = arith.constant dense<0.000000e+00> : vector<8x64xf32>
    %90 = tpu.matmul %89, %13, %cst_24 {dimension_numbers = #tpu.dot_dimension_numbers<[1], [0], [0], [1], [0, 0, 1, 1], [], []>} : vector<8x32xbf16>, vector<32x64xbf16>, vector<8x64xf32> -> vector<8x64xf32>
    %91 = arith.addf %80, %90 : vector<8x64xf32>
    %92 = arith.truncf %91 : vector<8x64xf32> to vector<8x64xbf16>
    %c0_25 = arith.constant 0 : index
    %c0_26 = arith.constant 0 : index
    %c0_27 = arith.constant 0 : index
    %93 = vector.load %arg6[%c0_25, %c0_26, %c0_27] : memref<1x64x64xbf16, #tpu.memory_space<vmem>>, vector<1x8x64xbf16>
    %94 = vector.shape_cast %93 : vector<1x8x64xbf16> to vector<8x64xbf16>
    %95 = vector.shape_cast %92 : vector<8x64xbf16> to vector<1x8x64xbf16>
    tpu.vector_store %arg6[%c0_25, %c0_26, %c0_27], %95 {strides = array<i32>} : memref<1x64x64xbf16, #tpu.memory_space<vmem>>, vector<1x8x64xbf16>,
    %c0_28 = arith.constant 0 : index
    %c32_29 = arith.constant 32 : index
    %c0_30 = arith.constant 0 : index
    %96 = tpu.strided_load %arg2[%c0_28, %c32_29, %c0_30] {strides = array<i32: 1, 2, 1>} : memref<1x256x32xbf16, #tpu.memory_space<vmem>>, vector<1x8x32xbf16>
    %97 = vector.shape_cast %96 : vector<1x8x32xbf16> to vector<8x32xbf16>
    %c0_31 = arith.constant 0 : index
    %c48 = arith.constant 48 : index
    %c0_32 = arith.constant 0 : index
    %98 = tpu.strided_load %arg2[%c0_31, %c48, %c0_32] {strides = array<i32: 1, 2, 1>} : memref<1x256x32xbf16, #tpu.memory_space<vmem>>, vector<1x8x32xbf16>
    %99 = vector.shape_cast %98 : vector<1x8x32xbf16> to vector<8x32xbf16>
    %c0_33 = arith.constant 0 : index
    %c33 = arith.constant 33 : index
    %c0_34 = arith.constant 0 : index
    %100 = tpu.strided_load %arg2[%c0_33, %c33, %c0_34] {strides = array<i32: 1, 2, 1>} : memref<1x256x32xbf16, #tpu.memory_space<vmem>>, vector<1x8x32xbf16>
    %101 = vector.shape_cast %100 : vector<1x8x32xbf16> to vector<8x32xbf16>
    %c0_35 = arith.constant 0 : index
    %c49 = arith.constant 49 : index
    %c0_36 = arith.constant 0 : index
    %102 = tpu.strided_load %arg2[%c0_35, %c49, %c0_36] {strides = array<i32: 1, 2, 1>} : memref<1x256x32xbf16, #tpu.memory_space<vmem>>, vector<1x8x32xbf16>
    %103 = vector.shape_cast %102 : vector<1x8x32xbf16> to vector<8x32xbf16>
    %104 = arith.extf %97 : vector<8x32xbf16> to vector<8x32xf32>
    %105 = arith.extf %99 : vector<8x32xbf16> to vector<8x32xf32>
    %106 = arith.extf %101 : vector<8x32xbf16> to vector<8x32xf32>
    %107 = arith.extf %103 : vector<8x32xbf16> to vector<8x32xf32>
    %108 = arith.addf %104, %105 : vector<8x32xf32>
    %109 = arith.addf %108, %106 : vector<8x32xf32>
    %110 = arith.addf %109, %107 : vector<8x32xf32>
    %cst_37 = arith.constant dense<0.000000e+00> : vector<8xf32>
    %111 = vector.multi_reduction <add>, %110, %cst_37 [1] : vector<8x32xf32> to vector<8xf32>
    %112 = vector.shape_cast %111 : vector<8xf32> to vector<8x1xf32>
    %113 = arith.mulf %104, %104 : vector<8x32xf32>
    %114 = arith.mulf %105, %105 : vector<8x32xf32>
    %115 = arith.addf %113, %114 : vector<8x32xf32>
    %116 = arith.mulf %106, %106 : vector<8x32xf32>
    %117 = arith.addf %115, %116 : vector<8x32xf32>
    %118 = arith.mulf %107, %107 : vector<8x32xf32>
    %119 = arith.addf %117, %118 : vector<8x32xf32>
    %cst_38 = arith.constant dense<0.000000e+00> : vector<8xf32>
    %120 = vector.multi_reduction <add>, %119, %cst_38 [1] : vector<8x32xf32> to vector<8xf32>
    %121 = vector.shape_cast %120 : vector<8xf32> to vector<8x1xf32>
    %cst_39 = arith.constant 7.812500e-03 : f32
    %122 = vector.broadcast %cst_39 : f32 to vector<8x1xf32>
    %123 = arith.mulf %112, %122 : vector<8x1xf32>
    %cst_40 = arith.constant 7.812500e-03 : f32
    %124 = vector.broadcast %cst_40 : f32 to vector<8x1xf32>
    %125 = arith.mulf %121, %124 : vector<8x1xf32>
    %126 = arith.mulf %123, %123 : vector<8x1xf32>
    %127 = arith.subf %125, %126 : vector<8x1xf32>
    %cst_41 = arith.constant 9.99999974E-6 : f32
    %128 = vector.broadcast %cst_41 : f32 to vector<8x1xf32>
    %129 = arith.addf %127, %128 : vector<8x1xf32>
    %130 = math.rsqrt %129 : vector<8x1xf32>
    %131 = vector.broadcast %123 : vector<8x1xf32> to vector<8x32xf32>
    %132 = arith.subf %104, %131 : vector<8x32xf32>
    %133 = vector.broadcast %130 : vector<8x1xf32> to vector<8x32xf32>
    %134 = arith.mulf %132, %133 : vector<8x32xf32>
    %135 = vector.broadcast %2 : vector<1x32xf32> to vector<8x32xf32>
    %136 = arith.mulf %134, %135 : vector<8x32xf32>
    %137 = vector.broadcast %6 : vector<1x32xf32> to vector<8x32xf32>
    %138 = arith.addf %136, %137 : vector<8x32xf32>
    %139 = arith.truncf %138 : vector<8x32xf32> to vector<8x32xbf16>
    %cst_42 = arith.constant dense<0.000000e+00> : vector<8x64xf32>
    %140 = tpu.matmul %139, %10, %cst_42 {dimension_numbers = #tpu.dot_dimension_numbers<[1], [0], [0], [1], [0, 0, 1, 1], [], []>} : vector<8x32xbf16>, vector<32x64xbf16>, vector<8x64xf32> -> vector<8x64xf32>
    %141 = vector.broadcast %123 : vector<8x1xf32> to vector<8x32xf32>
    %142 = arith.subf %105, %141 : vector<8x32xf32>
    %143 = vector.broadcast %130 : vector<8x1xf32> to vector<8x32xf32>
    %144 = arith.mulf %142, %143 : vector<8x32xf32>
    %145 = vector.broadcast %3 : vector<1x32xf32> to vector<8x32xf32>
    %146 = arith.mulf %144, %145 : vector<8x32xf32>
    %147 = vector.broadcast %7 : vector<1x32xf32> to vector<8x32xf32>
    %148 = arith.addf %146, %147 : vector<8x32xf32>
    %149 = arith.truncf %148 : vector<8x32xf32> to vector<8x32xbf16>
    %cst_43 = arith.constant dense<0.000000e+00> : vector<8x64xf32>
    %150 = tpu.matmul %149, %11, %cst_43 {dimension_numbers = #tpu.dot_dimension_numbers<[1], [0], [0], [1], [0, 0, 1, 1], [], []>} : vector<8x32xbf16>, vector<32x64xbf16>, vector<8x64xf32> -> vector<8x64xf32>
    %151 = arith.addf %140, %150 : vector<8x64xf32>
    %152 = vector.broadcast %123 : vector<8x1xf32> to vector<8x32xf32>
    %153 = arith.subf %106, %152 : vector<8x32xf32>
    %154 = vector.broadcast %130 : vector<8x1xf32> to vector<8x32xf32>
    %155 = arith.mulf %153, %154 : vector<8x32xf32>
    %156 = vector.broadcast %4 : vector<1x32xf32> to vector<8x32xf32>
    %157 = arith.mulf %155, %156 : vector<8x32xf32>
    %158 = vector.broadcast %8 : vector<1x32xf32> to vector<8x32xf32>
    %159 = arith.addf %157, %158 : vector<8x32xf32>
    %160 = arith.truncf %159 : vector<8x32xf32> to vector<8x32xbf16>
    %cst_44 = arith.constant dense<0.000000e+00> : vector<8x64xf32>
    %161 = tpu.matmul %160, %12, %cst_44 {dimension_numbers = #tpu.dot_dimension_numbers<[1], [0], [0], [1], [0, 0, 1, 1], [], []>} : vector<8x32xbf16>, vector<32x64xbf16>, vector<8x64xf32> -> vector<8x64xf32>
    %162 = arith.addf %151, %161 : vector<8x64xf32>
    %163 = vector.broadcast %123 : vector<8x1xf32> to vector<8x32xf32>
    %164 = arith.subf %107, %163 : vector<8x32xf32>
    %165 = vector.broadcast %130 : vector<8x1xf32> to vector<8x32xf32>
    %166 = arith.mulf %164, %165 : vector<8x32xf32>
    %167 = vector.broadcast %5 : vector<1x32xf32> to vector<8x32xf32>
    %168 = arith.mulf %166, %167 : vector<8x32xf32>
    %169 = vector.broadcast %9 : vector<1x32xf32> to vector<8x32xf32>
    %170 = arith.addf %168, %169 : vector<8x32xf32>
    %171 = arith.truncf %170 : vector<8x32xf32> to vector<8x32xbf16>
    %cst_45 = arith.constant dense<0.000000e+00> : vector<8x64xf32>
    %172 = tpu.matmul %171, %13, %cst_45 {dimension_numbers = #tpu.dot_dimension_numbers<[1], [0], [0], [1], [0, 0, 1, 1], [], []>} : vector<8x32xbf16>, vector<32x64xbf16>, vector<8x64xf32> -> vector<8x64xf32>
    %173 = arith.addf %162, %172 : vector<8x64xf32>
    %174 = arith.truncf %173 : vector<8x64xf32> to vector<8x64xbf16>
    %c0_46 = arith.constant 0 : index
    %c8 = arith.constant 8 : index
    %c0_47 = arith.constant 0 : index
    %175 = vector.load %arg6[%c0_46, %c8, %c0_47] : memref<1x64x64xbf16, #tpu.memory_space<vmem>>, vector<1x8x64xbf16>
    %176 = vector.shape_cast %175 : vector<1x8x64xbf16> to vector<8x64xbf16>
    %177 = vector.shape_cast %174 : vector<8x64xbf16> to vector<1x8x64xbf16>
    tpu.vector_store %arg6[%c0_46, %c8, %c0_47], %177 {strides = array<i32>} : memref<1x64x64xbf16, #tpu.memory_space<vmem>>, vector<1x8x64xbf16>,
    %c0_48 = arith.constant 0 : index
    %c64_49 = arith.constant 64 : index
    %c0_50 = arith.constant 0 : index
    %178 = tpu.strided_load %arg2[%c0_48, %c64_49, %c0_50] {strides = array<i32: 1, 2, 1>} : memref<1x256x32xbf16, #tpu.memory_space<vmem>>, vector<1x8x32xbf16>
    %179 = vector.shape_cast %178 : vector<1x8x32xbf16> to vector<8x32xbf16>
    %c0_51 = arith.constant 0 : index
    %c80 = arith.constant 80 : index
    %c0_52 = arith.constant 0 : index
    %180 = tpu.strided_load %arg2[%c0_51, %c80, %c0_52] {strides = array<i32: 1, 2, 1>} : memref<1x256x32xbf16, #tpu.memory_space<vmem>>, vector<1x8x32xbf16>
    %181 = vector.shape_cast %180 : vector<1x8x32xbf16> to vector<8x32xbf16>
    %c0_53 = arith.constant 0 : index
    %c65 = arith.constant 65 : index
    %c0_54 = arith.constant 0 : index
    %182 = tpu.strided_load %arg2[%c0_53, %c65, %c0_54] {strides = array<i32: 1, 2, 1>} : memref<1x256x32xbf16, #tpu.memory_space<vmem>>, vector<1x8x32xbf16>
    %183 = vector.shape_cast %182 : vector<1x8x32xbf16> to vector<8x32xbf16>
    %c0_55 = arith.constant 0 : index
    %c81 = arith.constant 81 : index
    %c0_56 = arith.constant 0 : index
    %184 = tpu.strided_load %arg2[%c0_55, %c81, %c0_56] {strides = array<i32: 1, 2, 1>} : memref<1x256x32xbf16, #tpu.memory_space<vmem>>, vector<1x8x32xbf16>
    %185 = vector.shape_cast %184 : vector<1x8x32xbf16> to vector<8x32xbf16>
    %186 = arith.extf %179 : vector<8x32xbf16> to vector<8x32xf32>
    %187 = arith.extf %181 : vector<8x32xbf16> to vector<8x32xf32>
    %188 = arith.extf %183 : vector<8x32xbf16> to vector<8x32xf32>
    %189 = arith.extf %185 : vector<8x32xbf16> to vector<8x32xf32>
    %190 = arith.addf %186, %187 : vector<8x32xf32>
    %191 = arith.addf %190, %188 : vector<8x32xf32>
    %192 = arith.addf %191, %189 : vector<8x32xf32>
    %cst_57 = arith.constant dense<0.000000e+00> : vector<8xf32>
    %193 = vector.multi_reduction <add>, %192, %cst_57 [1] : vector<8x32xf32> to vector<8xf32>
    %194 = vector.shape_cast %193 : vector<8xf32> to vector<8x1xf32>
    %195 = arith.mulf %186, %186 : vector<8x32xf32>
    %196 = arith.mulf %187, %187 : vector<8x32xf32>
    %197 = arith.addf %195, %196 : vector<8x32xf32>
    %198 = arith.mulf %188, %188 : vector<8x32xf32>
    %199 = arith.addf %197, %198 : vector<8x32xf32>
    %200 = arith.mulf %189, %189 : vector<8x32xf32>
    %201 = arith.addf %199, %200 : vector<8x32xf32>
    %cst_58 = arith.constant dense<0.000000e+00> : vector<8xf32>
    %202 = vector.multi_reduction <add>, %201, %cst_58 [1] : vector<8x32xf32> to vector<8xf32>
    %203 = vector.shape_cast %202 : vector<8xf32> to vector<8x1xf32>
    %cst_59 = arith.constant 7.812500e-03 : f32
    %204 = vector.broadcast %cst_59 : f32 to vector<8x1xf32>
    %205 = arith.mulf %194, %204 : vector<8x1xf32>
    %cst_60 = arith.constant 7.812500e-03 : f32
    %206 = vector.broadcast %cst_60 : f32 to vector<8x1xf32>
    %207 = arith.mulf %203, %206 : vector<8x1xf32>
    %208 = arith.mulf %205, %205 : vector<8x1xf32>
    %209 = arith.subf %207, %208 : vector<8x1xf32>
    %cst_61 = arith.constant 9.99999974E-6 : f32
    %210 = vector.broadcast %cst_61 : f32 to vector<8x1xf32>
    %211 = arith.addf %209, %210 : vector<8x1xf32>
    %212 = math.rsqrt %211 : vector<8x1xf32>
    %213 = vector.broadcast %205 : vector<8x1xf32> to vector<8x32xf32>
    %214 = arith.subf %186, %213 : vector<8x32xf32>
    %215 = vector.broadcast %212 : vector<8x1xf32> to vector<8x32xf32>
    %216 = arith.mulf %214, %215 : vector<8x32xf32>
    %217 = vector.broadcast %2 : vector<1x32xf32> to vector<8x32xf32>
    %218 = arith.mulf %216, %217 : vector<8x32xf32>
    %219 = vector.broadcast %6 : vector<1x32xf32> to vector<8x32xf32>
    %220 = arith.addf %218, %219 : vector<8x32xf32>
    %221 = arith.truncf %220 : vector<8x32xf32> to vector<8x32xbf16>
    %cst_62 = arith.constant dense<0.000000e+00> : vector<8x64xf32>
    %222 = tpu.matmul %221, %10, %cst_62 {dimension_numbers = #tpu.dot_dimension_numbers<[1], [0], [0], [1], [0, 0, 1, 1], [], []>} : vector<8x32xbf16>, vector<32x64xbf16>, vector<8x64xf32> -> vector<8x64xf32>
    %223 = vector.broadcast %205 : vector<8x1xf32> to vector<8x32xf32>
    %224 = arith.subf %187, %223 : vector<8x32xf32>
    %225 = vector.broadcast %212 : vector<8x1xf32> to vector<8x32xf32>
    %226 = arith.mulf %224, %225 : vector<8x32xf32>
    %227 = vector.broadcast %3 : vector<1x32xf32> to vector<8x32xf32>
    %228 = arith.mulf %226, %227 : vector<8x32xf32>
    %229 = vector.broadcast %7 : vector<1x32xf32> to vector<8x32xf32>
    %230 = arith.addf %228, %229 : vector<8x32xf32>
    %231 = arith.truncf %230 : vector<8x32xf32> to vector<8x32xbf16>
    %cst_63 = arith.constant dense<0.000000e+00> : vector<8x64xf32>
    %232 = tpu.matmul %231, %11, %cst_63 {dimension_numbers = #tpu.dot_dimension_numbers<[1], [0], [0], [1], [0, 0, 1, 1], [], []>} : vector<8x32xbf16>, vector<32x64xbf16>, vector<8x64xf32> -> vector<8x64xf32>
    %233 = arith.addf %222, %232 : vector<8x64xf32>
    %234 = vector.broadcast %205 : vector<8x1xf32> to vector<8x32xf32>
    %235 = arith.subf %188, %234 : vector<8x32xf32>
    %236 = vector.broadcast %212 : vector<8x1xf32> to vector<8x32xf32>
    %237 = arith.mulf %235, %236 : vector<8x32xf32>
    %238 = vector.broadcast %4 : vector<1x32xf32> to vector<8x32xf32>
    %239 = arith.mulf %237, %238 : vector<8x32xf32>
    %240 = vector.broadcast %8 : vector<1x32xf32> to vector<8x32xf32>
    %241 = arith.addf %239, %240 : vector<8x32xf32>
    %242 = arith.truncf %241 : vector<8x32xf32> to vector<8x32xbf16>
    %cst_64 = arith.constant dense<0.000000e+00> : vector<8x64xf32>
    %243 = tpu.matmul %242, %12, %cst_64 {dimension_numbers = #tpu.dot_dimension_numbers<[1], [0], [0], [1], [0, 0, 1, 1], [], []>} : vector<8x32xbf16>, vector<32x64xbf16>, vector<8x64xf32> -> vector<8x64xf32>
    %244 = arith.addf %233, %243 : vector<8x64xf32>
    %245 = vector.broadcast %205 : vector<8x1xf32> to vector<8x32xf32>
    %246 = arith.subf %189, %245 : vector<8x32xf32>
    %247 = vector.broadcast %212 : vector<8x1xf32> to vector<8x32xf32>
    %248 = arith.mulf %246, %247 : vector<8x32xf32>
    %249 = vector.broadcast %5 : vector<1x32xf32> to vector<8x32xf32>
    %250 = arith.mulf %248, %249 : vector<8x32xf32>
    %251 = vector.broadcast %9 : vector<1x32xf32> to vector<8x32xf32>
    %252 = arith.addf %250, %251 : vector<8x32xf32>
    %253 = arith.truncf %252 : vector<8x32xf32> to vector<8x32xbf16>
    %cst_65 = arith.constant dense<0.000000e+00> : vector<8x64xf32>
    %254 = tpu.matmul %253, %13, %cst_65 {dimension_numbers = #tpu.dot_dimension_numbers<[1], [0], [0], [1], [0, 0, 1, 1], [], []>} : vector<8x32xbf16>, vector<32x64xbf16>, vector<8x64xf32> -> vector<8x64xf32>
    %255 = arith.addf %244, %254 : vector<8x64xf32>
    %256 = arith.truncf %255 : vector<8x64xf32> to vector<8x64xbf16>
    %c0_66 = arith.constant 0 : index
    %c16_67 = arith.constant 16 : index
    %c0_68 = arith.constant 0 : index
    %257 = vector.load %arg6[%c0_66, %c16_67, %c0_68] : memref<1x64x64xbf16, #tpu.memory_space<vmem>>, vector<1x8x64xbf16>
    %258 = vector.shape_cast %257 : vector<1x8x64xbf16> to vector<8x64xbf16>
    %259 = vector.shape_cast %256 : vector<8x64xbf16> to vector<1x8x64xbf16>
    tpu.vector_store %arg6[%c0_66, %c16_67, %c0_68], %259 {strides = array<i32>} : memref<1x64x64xbf16, #tpu.memory_space<vmem>>, vector<1x8x64xbf16>,
    %c0_69 = arith.constant 0 : index
    %c96_70 = arith.constant 96 : index
    %c0_71 = arith.constant 0 : index
    %260 = tpu.strided_load %arg2[%c0_69, %c96_70, %c0_71] {strides = array<i32: 1, 2, 1>} : memref<1x256x32xbf16, #tpu.memory_space<vmem>>, vector<1x8x32xbf16>
    %261 = vector.shape_cast %260 : vector<1x8x32xbf16> to vector<8x32xbf16>
    %c0_72 = arith.constant 0 : index
    %c112 = arith.constant 112 : index
    %c0_73 = arith.constant 0 : index
    %262 = tpu.strided_load %arg2[%c0_72, %c112, %c0_73] {strides = array<i32: 1, 2, 1>} : memref<1x256x32xbf16, #tpu.memory_space<vmem>>, vector<1x8x32xbf16>
    %263 = vector.shape_cast %262 : vector<1x8x32xbf16> to vector<8x32xbf16>
    %c0_74 = arith.constant 0 : index
    %c97 = arith.constant 97 : index
    %c0_75 = arith.constant 0 : index
    %264 = tpu.strided_load %arg2[%c0_74, %c97, %c0_75] {strides = array<i32: 1, 2, 1>} : memref<1x256x32xbf16, #tpu.memory_space<vmem>>, vector<1x8x32xbf16>
    %265 = vector.shape_cast %264 : vector<1x8x32xbf16> to vector<8x32xbf16>
    %c0_76 = arith.constant 0 : index
    %c113 = arith.constant 113 : index
    %c0_77 = arith.constant 0 : index
    %266 = tpu.strided_load %arg2[%c0_76, %c113, %c0_77] {strides = array<i32: 1, 2, 1>} : memref<1x256x32xbf16, #tpu.memory_space<vmem>>, vector<1x8x32xbf16>
    %267 = vector.shape_cast %266 : vector<1x8x32xbf16> to vector<8x32xbf16>
    %268 = arith.extf %261 : vector<8x32xbf16> to vector<8x32xf32>
    %269 = arith.extf %263 : vector<8x32xbf16> to vector<8x32xf32>
    %270 = arith.extf %265 : vector<8x32xbf16> to vector<8x32xf32>
    %271 = arith.extf %267 : vector<8x32xbf16> to vector<8x32xf32>
    %272 = arith.addf %268, %269 : vector<8x32xf32>
    %273 = arith.addf %272, %270 : vector<8x32xf32>
    %274 = arith.addf %273, %271 : vector<8x32xf32>
    %cst_78 = arith.constant dense<0.000000e+00> : vector<8xf32>
    %275 = vector.multi_reduction <add>, %274, %cst_78 [1] : vector<8x32xf32> to vector<8xf32>
    %276 = vector.shape_cast %275 : vector<8xf32> to vector<8x1xf32>
    %277 = arith.mulf %268, %268 : vector<8x32xf32>
    %278 = arith.mulf %269, %269 : vector<8x32xf32>
    %279 = arith.addf %277, %278 : vector<8x32xf32>
    %280 = arith.mulf %270, %270 : vector<8x32xf32>
    %281 = arith.addf %279, %280 : vector<8x32xf32>
    %282 = arith.mulf %271, %271 : vector<8x32xf32>
    %283 = arith.addf %281, %282 : vector<8x32xf32>
    %cst_79 = arith.constant dense<0.000000e+00> : vector<8xf32>
    %284 = vector.multi_reduction <add>, %283, %cst_79 [1] : vector<8x32xf32> to vector<8xf32>
    %285 = vector.shape_cast %284 : vector<8xf32> to vector<8x1xf32>
    %cst_80 = arith.constant 7.812500e-03 : f32
    %286 = vector.broadcast %cst_80 : f32 to vector<8x1xf32>
    %287 = arith.mulf %276, %286 : vector<8x1xf32>
    %cst_81 = arith.constant 7.812500e-03 : f32
    %288 = vector.broadcast %cst_81 : f32 to vector<8x1xf32>
    %289 = arith.mulf %285, %288 : vector<8x1xf32>
    %290 = arith.mulf %287, %287 : vector<8x1xf32>
    %291 = arith.subf %289, %290 : vector<8x1xf32>
    %cst_82 = arith.constant 9.99999974E-6 : f32
    %292 = vector.broadcast %cst_82 : f32 to vector<8x1xf32>
    %293 = arith.addf %291, %292 : vector<8x1xf32>
    %294 = math.rsqrt %293 : vector<8x1xf32>
    %295 = vector.broadcast %287 : vector<8x1xf32> to vector<8x32xf32>
    %296 = arith.subf %268, %295 : vector<8x32xf32>
    %297 = vector.broadcast %294 : vector<8x1xf32> to vector<8x32xf32>
    %298 = arith.mulf %296, %297 : vector<8x32xf32>
    %299 = vector.broadcast %2 : vector<1x32xf32> to vector<8x32xf32>
    %300 = arith.mulf %298, %299 : vector<8x32xf32>
    %301 = vector.broadcast %6 : vector<1x32xf32> to vector<8x32xf32>
    %302 = arith.addf %300, %301 : vector<8x32xf32>
    %303 = arith.truncf %302 : vector<8x32xf32> to vector<8x32xbf16>
    %cst_83 = arith.constant dense<0.000000e+00> : vector<8x64xf32>
    %304 = tpu.matmul %303, %10, %cst_83 {dimension_numbers = #tpu.dot_dimension_numbers<[1], [0], [0], [1], [0, 0, 1, 1], [], []>} : vector<8x32xbf16>, vector<32x64xbf16>, vector<8x64xf32> -> vector<8x64xf32>
    %305 = vector.broadcast %287 : vector<8x1xf32> to vector<8x32xf32>
    %306 = arith.subf %269, %305 : vector<8x32xf32>
    %307 = vector.broadcast %294 : vector<8x1xf32> to vector<8x32xf32>
    %308 = arith.mulf %306, %307 : vector<8x32xf32>
    %309 = vector.broadcast %3 : vector<1x32xf32> to vector<8x32xf32>
    %310 = arith.mulf %308, %309 : vector<8x32xf32>
    %311 = vector.broadcast %7 : vector<1x32xf32> to vector<8x32xf32>
    %312 = arith.addf %310, %311 : vector<8x32xf32>
    %313 = arith.truncf %312 : vector<8x32xf32> to vector<8x32xbf16>
    %cst_84 = arith.constant dense<0.000000e+00> : vector<8x64xf32>
    %314 = tpu.matmul %313, %11, %cst_84 {dimension_numbers = #tpu.dot_dimension_numbers<[1], [0], [0], [1], [0, 0, 1, 1], [], []>} : vector<8x32xbf16>, vector<32x64xbf16>, vector<8x64xf32> -> vector<8x64xf32>
    %315 = arith.addf %304, %314 : vector<8x64xf32>
    %316 = vector.broadcast %287 : vector<8x1xf32> to vector<8x32xf32>
    %317 = arith.subf %270, %316 : vector<8x32xf32>
    %318 = vector.broadcast %294 : vector<8x1xf32> to vector<8x32xf32>
    %319 = arith.mulf %317, %318 : vector<8x32xf32>
    %320 = vector.broadcast %4 : vector<1x32xf32> to vector<8x32xf32>
    %321 = arith.mulf %319, %320 : vector<8x32xf32>
    %322 = vector.broadcast %8 : vector<1x32xf32> to vector<8x32xf32>
    %323 = arith.addf %321, %322 : vector<8x32xf32>
    %324 = arith.truncf %323 : vector<8x32xf32> to vector<8x32xbf16>
    %cst_85 = arith.constant dense<0.000000e+00> : vector<8x64xf32>
    %325 = tpu.matmul %324, %12, %cst_85 {dimension_numbers = #tpu.dot_dimension_numbers<[1], [0], [0], [1], [0, 0, 1, 1], [], []>} : vector<8x32xbf16>, vector<32x64xbf16>, vector<8x64xf32> -> vector<8x64xf32>
    %326 = arith.addf %315, %325 : vector<8x64xf32>
    %327 = vector.broadcast %287 : vector<8x1xf32> to vector<8x32xf32>
    %328 = arith.subf %271, %327 : vector<8x32xf32>
    %329 = vector.broadcast %294 : vector<8x1xf32> to vector<8x32xf32>
    %330 = arith.mulf %328, %329 : vector<8x32xf32>
    %331 = vector.broadcast %5 : vector<1x32xf32> to vector<8x32xf32>
    %332 = arith.mulf %330, %331 : vector<8x32xf32>
    %333 = vector.broadcast %9 : vector<1x32xf32> to vector<8x32xf32>
    %334 = arith.addf %332, %333 : vector<8x32xf32>
    %335 = arith.truncf %334 : vector<8x32xf32> to vector<8x32xbf16>
    %cst_86 = arith.constant dense<0.000000e+00> : vector<8x64xf32>
    %336 = tpu.matmul %335, %13, %cst_86 {dimension_numbers = #tpu.dot_dimension_numbers<[1], [0], [0], [1], [0, 0, 1, 1], [], []>} : vector<8x32xbf16>, vector<32x64xbf16>, vector<8x64xf32> -> vector<8x64xf32>
    %337 = arith.addf %326, %336 : vector<8x64xf32>
    %338 = arith.truncf %337 : vector<8x64xf32> to vector<8x64xbf16>
    %c0_87 = arith.constant 0 : index
    %c24 = arith.constant 24 : index
    %c0_88 = arith.constant 0 : index
    %339 = vector.load %arg6[%c0_87, %c24, %c0_88] : memref<1x64x64xbf16, #tpu.memory_space<vmem>>, vector<1x8x64xbf16>
    %340 = vector.shape_cast %339 : vector<1x8x64xbf16> to vector<8x64xbf16>
    %341 = vector.shape_cast %338 : vector<8x64xbf16> to vector<1x8x64xbf16>
    tpu.vector_store %arg6[%c0_87, %c24, %c0_88], %341 {strides = array<i32>} : memref<1x64x64xbf16, #tpu.memory_space<vmem>>, vector<1x8x64xbf16>,
    %c0_89 = arith.constant 0 : index
    %c128 = arith.constant 128 : index
    %c0_90 = arith.constant 0 : index
    %342 = tpu.strided_load %arg2[%c0_89, %c128, %c0_90] {strides = array<i32: 1, 2, 1>} : memref<1x256x32xbf16, #tpu.memory_space<vmem>>, vector<1x8x32xbf16>
    %343 = vector.shape_cast %342 : vector<1x8x32xbf16> to vector<8x32xbf16>
    %c0_91 = arith.constant 0 : index
    %c144 = arith.constant 144 : index
    %c0_92 = arith.constant 0 : index
    %344 = tpu.strided_load %arg2[%c0_91, %c144, %c0_92] {strides = array<i32: 1, 2, 1>} : memref<1x256x32xbf16, #tpu.memory_space<vmem>>, vector<1x8x32xbf16>
    %345 = vector.shape_cast %344 : vector<1x8x32xbf16> to vector<8x32xbf16>
    %c0_93 = arith.constant 0 : index
    %c129 = arith.constant 129 : index
    %c0_94 = arith.constant 0 : index
    %346 = tpu.strided_load %arg2[%c0_93, %c129, %c0_94] {strides = array<i32: 1, 2, 1>} : memref<1x256x32xbf16, #tpu.memory_space<vmem>>, vector<1x8x32xbf16>
    %347 = vector.shape_cast %346 : vector<1x8x32xbf16> to vector<8x32xbf16>
    %c0_95 = arith.constant 0 : index
    %c145 = arith.constant 145 : index
    %c0_96 = arith.constant 0 : index
    %348 = tpu.strided_load %arg2[%c0_95, %c145, %c0_96] {strides = array<i32: 1, 2, 1>} : memref<1x256x32xbf16, #tpu.memory_space<vmem>>, vector<1x8x32xbf16>
    %349 = vector.shape_cast %348 : vector<1x8x32xbf16> to vector<8x32xbf16>
    %350 = arith.extf %343 : vector<8x32xbf16> to vector<8x32xf32>
    %351 = arith.extf %345 : vector<8x32xbf16> to vector<8x32xf32>
    %352 = arith.extf %347 : vector<8x32xbf16> to vector<8x32xf32>
    %353 = arith.extf %349 : vector<8x32xbf16> to vector<8x32xf32>
    %354 = arith.addf %350, %351 : vector<8x32xf32>
    %355 = arith.addf %354, %352 : vector<8x32xf32>
    %356 = arith.addf %355, %353 : vector<8x32xf32>
    %cst_97 = arith.constant dense<0.000000e+00> : vector<8xf32>
    %357 = vector.multi_reduction <add>, %356, %cst_97 [1] : vector<8x32xf32> to vector<8xf32>
    %358 = vector.shape_cast %357 : vector<8xf32> to vector<8x1xf32>
    %359 = arith.mulf %350, %350 : vector<8x32xf32>
    %360 = arith.mulf %351, %351 : vector<8x32xf32>
    %361 = arith.addf %359, %360 : vector<8x32xf32>
    %362 = arith.mulf %352, %352 : vector<8x32xf32>
    %363 = arith.addf %361, %362 : vector<8x32xf32>
    %364 = arith.mulf %353, %353 : vector<8x32xf32>
    %365 = arith.addf %363, %364 : vector<8x32xf32>
    %cst_98 = arith.constant dense<0.000000e+00> : vector<8xf32>
    %366 = vector.multi_reduction <add>, %365, %cst_98 [1] : vector<8x32xf32> to vector<8xf32>
    %367 = vector.shape_cast %366 : vector<8xf32> to vector<8x1xf32>
    %cst_99 = arith.constant 7.812500e-03 : f32
    %368 = vector.broadcast %cst_99 : f32 to vector<8x1xf32>
    %369 = arith.mulf %358, %368 : vector<8x1xf32>
    %cst_100 = arith.constant 7.812500e-03 : f32
    %370 = vector.broadcast %cst_100 : f32 to vector<8x1xf32>
    %371 = arith.mulf %367, %370 : vector<8x1xf32>
    %372 = arith.mulf %369, %369 : vector<8x1xf32>
    %373 = arith.subf %371, %372 : vector<8x1xf32>
    %cst_101 = arith.constant 9.99999974E-6 : f32
    %374 = vector.broadcast %cst_101 : f32 to vector<8x1xf32>
    %375 = arith.addf %373, %374 : vector<8x1xf32>
    %376 = math.rsqrt %375 : vector<8x1xf32>
    %377 = vector.broadcast %369 : vector<8x1xf32> to vector<8x32xf32>
    %378 = arith.subf %350, %377 : vector<8x32xf32>
    %379 = vector.broadcast %376 : vector<8x1xf32> to vector<8x32xf32>
    %380 = arith.mulf %378, %379 : vector<8x32xf32>
    %381 = vector.broadcast %2 : vector<1x32xf32> to vector<8x32xf32>
    %382 = arith.mulf %380, %381 : vector<8x32xf32>
    %383 = vector.broadcast %6 : vector<1x32xf32> to vector<8x32xf32>
    %384 = arith.addf %382, %383 : vector<8x32xf32>
    %385 = arith.truncf %384 : vector<8x32xf32> to vector<8x32xbf16>
    %cst_102 = arith.constant dense<0.000000e+00> : vector<8x64xf32>
    %386 = tpu.matmul %385, %10, %cst_102 {dimension_numbers = #tpu.dot_dimension_numbers<[1], [0], [0], [1], [0, 0, 1, 1], [], []>} : vector<8x32xbf16>, vector<32x64xbf16>, vector<8x64xf32> -> vector<8x64xf32>
    %387 = vector.broadcast %369 : vector<8x1xf32> to vector<8x32xf32>
    %388 = arith.subf %351, %387 : vector<8x32xf32>
    %389 = vector.broadcast %376 : vector<8x1xf32> to vector<8x32xf32>
    %390 = arith.mulf %388, %389 : vector<8x32xf32>
    %391 = vector.broadcast %3 : vector<1x32xf32> to vector<8x32xf32>
    %392 = arith.mulf %390, %391 : vector<8x32xf32>
    %393 = vector.broadcast %7 : vector<1x32xf32> to vector<8x32xf32>
    %394 = arith.addf %392, %393 : vector<8x32xf32>
    %395 = arith.truncf %394 : vector<8x32xf32> to vector<8x32xbf16>
    %cst_103 = arith.constant dense<0.000000e+00> : vector<8x64xf32>
    %396 = tpu.matmul %395, %11, %cst_103 {dimension_numbers = #tpu.dot_dimension_numbers<[1], [0], [0], [1], [0, 0, 1, 1], [], []>} : vector<8x32xbf16>, vector<32x64xbf16>, vector<8x64xf32> -> vector<8x64xf32>
    %397 = arith.addf %386, %396 : vector<8x64xf32>
    %398 = vector.broadcast %369 : vector<8x1xf32> to vector<8x32xf32>
    %399 = arith.subf %352, %398 : vector<8x32xf32>
    %400 = vector.broadcast %376 : vector<8x1xf32> to vector<8x32xf32>
    %401 = arith.mulf %399, %400 : vector<8x32xf32>
    %402 = vector.broadcast %4 : vector<1x32xf32> to vector<8x32xf32>
    %403 = arith.mulf %401, %402 : vector<8x32xf32>
    %404 = vector.broadcast %8 : vector<1x32xf32> to vector<8x32xf32>
    %405 = arith.addf %403, %404 : vector<8x32xf32>
    %406 = arith.truncf %405 : vector<8x32xf32> to vector<8x32xbf16>
    %cst_104 = arith.constant dense<0.000000e+00> : vector<8x64xf32>
    %407 = tpu.matmul %406, %12, %cst_104 {dimension_numbers = #tpu.dot_dimension_numbers<[1], [0], [0], [1], [0, 0, 1, 1], [], []>} : vector<8x32xbf16>, vector<32x64xbf16>, vector<8x64xf32> -> vector<8x64xf32>
    %408 = arith.addf %397, %407 : vector<8x64xf32>
    %409 = vector.broadcast %369 : vector<8x1xf32> to vector<8x32xf32>
    %410 = arith.subf %353, %409 : vector<8x32xf32>
    %411 = vector.broadcast %376 : vector<8x1xf32> to vector<8x32xf32>
    %412 = arith.mulf %410, %411 : vector<8x32xf32>
    %413 = vector.broadcast %5 : vector<1x32xf32> to vector<8x32xf32>
    %414 = arith.mulf %412, %413 : vector<8x32xf32>
    %415 = vector.broadcast %9 : vector<1x32xf32> to vector<8x32xf32>
    %416 = arith.addf %414, %415 : vector<8x32xf32>
    %417 = arith.truncf %416 : vector<8x32xf32> to vector<8x32xbf16>
    %cst_105 = arith.constant dense<0.000000e+00> : vector<8x64xf32>
    %418 = tpu.matmul %417, %13, %cst_105 {dimension_numbers = #tpu.dot_dimension_numbers<[1], [0], [0], [1], [0, 0, 1, 1], [], []>} : vector<8x32xbf16>, vector<32x64xbf16>, vector<8x64xf32> -> vector<8x64xf32>
    %419 = arith.addf %408, %418 : vector<8x64xf32>
    %420 = arith.truncf %419 : vector<8x64xf32> to vector<8x64xbf16>
    %c0_106 = arith.constant 0 : index
    %c32_107 = arith.constant 32 : index
    %c0_108 = arith.constant 0 : index
    %421 = vector.load %arg6[%c0_106, %c32_107, %c0_108] : memref<1x64x64xbf16, #tpu.memory_space<vmem>>, vector<1x8x64xbf16>
    %422 = vector.shape_cast %421 : vector<1x8x64xbf16> to vector<8x64xbf16>
    %423 = vector.shape_cast %420 : vector<8x64xbf16> to vector<1x8x64xbf16>
    tpu.vector_store %arg6[%c0_106, %c32_107, %c0_108], %423 {strides = array<i32>} : memref<1x64x64xbf16, #tpu.memory_space<vmem>>, vector<1x8x64xbf16>,
    %c0_109 = arith.constant 0 : index
    %c160 = arith.constant 160 : index
    %c0_110 = arith.constant 0 : index
    %424 = tpu.strided_load %arg2[%c0_109, %c160, %c0_110] {strides = array<i32: 1, 2, 1>} : memref<1x256x32xbf16, #tpu.memory_space<vmem>>, vector<1x8x32xbf16>
    %425 = vector.shape_cast %424 : vector<1x8x32xbf16> to vector<8x32xbf16>
    %c0_111 = arith.constant 0 : index
    %c176 = arith.constant 176 : index
    %c0_112 = arith.constant 0 : index
    %426 = tpu.strided_load %arg2[%c0_111, %c176, %c0_112] {strides = array<i32: 1, 2, 1>} : memref<1x256x32xbf16, #tpu.memory_space<vmem>>, vector<1x8x32xbf16>
    %427 = vector.shape_cast %426 : vector<1x8x32xbf16> to vector<8x32xbf16>
    %c0_113 = arith.constant 0 : index
    %c161 = arith.constant 161 : index
    %c0_114 = arith.constant 0 : index
    %428 = tpu.strided_load %arg2[%c0_113, %c161, %c0_114] {strides = array<i32: 1, 2, 1>} : memref<1x256x32xbf16, #tpu.memory_space<vmem>>, vector<1x8x32xbf16>
    %429 = vector.shape_cast %428 : vector<1x8x32xbf16> to vector<8x32xbf16>
    %c0_115 = arith.constant 0 : index
    %c177 = arith.constant 177 : index
    %c0_116 = arith.constant 0 : index
    %430 = tpu.strided_load %arg2[%c0_115, %c177, %c0_116] {strides = array<i32: 1, 2, 1>} : memref<1x256x32xbf16, #tpu.memory_space<vmem>>, vector<1x8x32xbf16>
    %431 = vector.shape_cast %430 : vector<1x8x32xbf16> to vector<8x32xbf16>
    %432 = arith.extf %425 : vector<8x32xbf16> to vector<8x32xf32>
    %433 = arith.extf %427 : vector<8x32xbf16> to vector<8x32xf32>
    %434 = arith.extf %429 : vector<8x32xbf16> to vector<8x32xf32>
    %435 = arith.extf %431 : vector<8x32xbf16> to vector<8x32xf32>
    %436 = arith.addf %432, %433 : vector<8x32xf32>
    %437 = arith.addf %436, %434 : vector<8x32xf32>
    %438 = arith.addf %437, %435 : vector<8x32xf32>
    %cst_117 = arith.constant dense<0.000000e+00> : vector<8xf32>
    %439 = vector.multi_reduction <add>, %438, %cst_117 [1] : vector<8x32xf32> to vector<8xf32>
    %440 = vector.shape_cast %439 : vector<8xf32> to vector<8x1xf32>
    %441 = arith.mulf %432, %432 : vector<8x32xf32>
    %442 = arith.mulf %433, %433 : vector<8x32xf32>
    %443 = arith.addf %441, %442 : vector<8x32xf32>
    %444 = arith.mulf %434, %434 : vector<8x32xf32>
    %445 = arith.addf %443, %444 : vector<8x32xf32>
    %446 = arith.mulf %435, %435 : vector<8x32xf32>
    %447 = arith.addf %445, %446 : vector<8x32xf32>
    %cst_118 = arith.constant dense<0.000000e+00> : vector<8xf32>
    %448 = vector.multi_reduction <add>, %447, %cst_118 [1] : vector<8x32xf32> to vector<8xf32>
    %449 = vector.shape_cast %448 : vector<8xf32> to vector<8x1xf32>
    %cst_119 = arith.constant 7.812500e-03 : f32
    %450 = vector.broadcast %cst_119 : f32 to vector<8x1xf32>
    %451 = arith.mulf %440, %450 : vector<8x1xf32>
    %cst_120 = arith.constant 7.812500e-03 : f32
    %452 = vector.broadcast %cst_120 : f32 to vector<8x1xf32>
    %453 = arith.mulf %449, %452 : vector<8x1xf32>
    %454 = arith.mulf %451, %451 : vector<8x1xf32>
    %455 = arith.subf %453, %454 : vector<8x1xf32>
    %cst_121 = arith.constant 9.99999974E-6 : f32
    %456 = vector.broadcast %cst_121 : f32 to vector<8x1xf32>
    %457 = arith.addf %455, %456 : vector<8x1xf32>
    %458 = math.rsqrt %457 : vector<8x1xf32>
    %459 = vector.broadcast %451 : vector<8x1xf32> to vector<8x32xf32>
    %460 = arith.subf %432, %459 : vector<8x32xf32>
    %461 = vector.broadcast %458 : vector<8x1xf32> to vector<8x32xf32>
    %462 = arith.mulf %460, %461 : vector<8x32xf32>
    %463 = vector.broadcast %2 : vector<1x32xf32> to vector<8x32xf32>
    %464 = arith.mulf %462, %463 : vector<8x32xf32>
    %465 = vector.broadcast %6 : vector<1x32xf32> to vector<8x32xf32>
    %466 = arith.addf %464, %465 : vector<8x32xf32>
    %467 = arith.truncf %466 : vector<8x32xf32> to vector<8x32xbf16>
    %cst_122 = arith.constant dense<0.000000e+00> : vector<8x64xf32>
    %468 = tpu.matmul %467, %10, %cst_122 {dimension_numbers = #tpu.dot_dimension_numbers<[1], [0], [0], [1], [0, 0, 1, 1], [], []>} : vector<8x32xbf16>, vector<32x64xbf16>, vector<8x64xf32> -> vector<8x64xf32>
    %469 = vector.broadcast %451 : vector<8x1xf32> to vector<8x32xf32>
    %470 = arith.subf %433, %469 : vector<8x32xf32>
    %471 = vector.broadcast %458 : vector<8x1xf32> to vector<8x32xf32>
    %472 = arith.mulf %470, %471 : vector<8x32xf32>
    %473 = vector.broadcast %3 : vector<1x32xf32> to vector<8x32xf32>
    %474 = arith.mulf %472, %473 : vector<8x32xf32>
    %475 = vector.broadcast %7 : vector<1x32xf32> to vector<8x32xf32>
    %476 = arith.addf %474, %475 : vector<8x32xf32>
    %477 = arith.truncf %476 : vector<8x32xf32> to vector<8x32xbf16>
    %cst_123 = arith.constant dense<0.000000e+00> : vector<8x64xf32>
    %478 = tpu.matmul %477, %11, %cst_123 {dimension_numbers = #tpu.dot_dimension_numbers<[1], [0], [0], [1], [0, 0, 1, 1], [], []>} : vector<8x32xbf16>, vector<32x64xbf16>, vector<8x64xf32> -> vector<8x64xf32>
    %479 = arith.addf %468, %478 : vector<8x64xf32>
    %480 = vector.broadcast %451 : vector<8x1xf32> to vector<8x32xf32>
    %481 = arith.subf %434, %480 : vector<8x32xf32>
    %482 = vector.broadcast %458 : vector<8x1xf32> to vector<8x32xf32>
    %483 = arith.mulf %481, %482 : vector<8x32xf32>
    %484 = vector.broadcast %4 : vector<1x32xf32> to vector<8x32xf32>
    %485 = arith.mulf %483, %484 : vector<8x32xf32>
    %486 = vector.broadcast %8 : vector<1x32xf32> to vector<8x32xf32>
    %487 = arith.addf %485, %486 : vector<8x32xf32>
    %488 = arith.truncf %487 : vector<8x32xf32> to vector<8x32xbf16>
    %cst_124 = arith.constant dense<0.000000e+00> : vector<8x64xf32>
    %489 = tpu.matmul %488, %12, %cst_124 {dimension_numbers = #tpu.dot_dimension_numbers<[1], [0], [0], [1], [0, 0, 1, 1], [], []>} : vector<8x32xbf16>, vector<32x64xbf16>, vector<8x64xf32> -> vector<8x64xf32>
    %490 = arith.addf %479, %489 : vector<8x64xf32>
    %491 = vector.broadcast %451 : vector<8x1xf32> to vector<8x32xf32>
    %492 = arith.subf %435, %491 : vector<8x32xf32>
    %493 = vector.broadcast %458 : vector<8x1xf32> to vector<8x32xf32>
    %494 = arith.mulf %492, %493 : vector<8x32xf32>
    %495 = vector.broadcast %5 : vector<1x32xf32> to vector<8x32xf32>
    %496 = arith.mulf %494, %495 : vector<8x32xf32>
    %497 = vector.broadcast %9 : vector<1x32xf32> to vector<8x32xf32>
    %498 = arith.addf %496, %497 : vector<8x32xf32>
    %499 = arith.truncf %498 : vector<8x32xf32> to vector<8x32xbf16>
    %cst_125 = arith.constant dense<0.000000e+00> : vector<8x64xf32>
    %500 = tpu.matmul %499, %13, %cst_125 {dimension_numbers = #tpu.dot_dimension_numbers<[1], [0], [0], [1], [0, 0, 1, 1], [], []>} : vector<8x32xbf16>, vector<32x64xbf16>, vector<8x64xf32> -> vector<8x64xf32>
    %501 = arith.addf %490, %500 : vector<8x64xf32>
    %502 = arith.truncf %501 : vector<8x64xf32> to vector<8x64xbf16>
    %c0_126 = arith.constant 0 : index
    %c40 = arith.constant 40 : index
    %c0_127 = arith.constant 0 : index
    %503 = vector.load %arg6[%c0_126, %c40, %c0_127] : memref<1x64x64xbf16, #tpu.memory_space<vmem>>, vector<1x8x64xbf16>
    %504 = vector.shape_cast %503 : vector<1x8x64xbf16> to vector<8x64xbf16>
    %505 = vector.shape_cast %502 : vector<8x64xbf16> to vector<1x8x64xbf16>
    tpu.vector_store %arg6[%c0_126, %c40, %c0_127], %505 {strides = array<i32>} : memref<1x64x64xbf16, #tpu.memory_space<vmem>>, vector<1x8x64xbf16>,
    %c0_128 = arith.constant 0 : index
    %c192 = arith.constant 192 : index
    %c0_129 = arith.constant 0 : index
    %506 = tpu.strided_load %arg2[%c0_128, %c192, %c0_129] {strides = array<i32: 1, 2, 1>} : memref<1x256x32xbf16, #tpu.memory_space<vmem>>, vector<1x8x32xbf16>
    %507 = vector.shape_cast %506 : vector<1x8x32xbf16> to vector<8x32xbf16>
    %c0_130 = arith.constant 0 : index
    %c208 = arith.constant 208 : index
    %c0_131 = arith.constant 0 : index
    %508 = tpu.strided_load %arg2[%c0_130, %c208, %c0_131] {strides = array<i32: 1, 2, 1>} : memref<1x256x32xbf16, #tpu.memory_space<vmem>>, vector<1x8x32xbf16>
    %509 = vector.shape_cast %508 : vector<1x8x32xbf16> to vector<8x32xbf16>
    %c0_132 = arith.constant 0 : index
    %c193 = arith.constant 193 : index
    %c0_133 = arith.constant 0 : index
    %510 = tpu.strided_load %arg2[%c0_132, %c193, %c0_133] {strides = array<i32: 1, 2, 1>} : memref<1x256x32xbf16, #tpu.memory_space<vmem>>, vector<1x8x32xbf16>
    %511 = vector.shape_cast %510 : vector<1x8x32xbf16> to vector<8x32xbf16>
    %c0_134 = arith.constant 0 : index
    %c209 = arith.constant 209 : index
    %c0_135 = arith.constant 0 : index
    %512 = tpu.strided_load %arg2[%c0_134, %c209, %c0_135] {strides = array<i32: 1, 2, 1>} : memref<1x256x32xbf16, #tpu.memory_space<vmem>>, vector<1x8x32xbf16>
    %513 = vector.shape_cast %512 : vector<1x8x32xbf16> to vector<8x32xbf16>
    %514 = arith.extf %507 : vector<8x32xbf16> to vector<8x32xf32>
    %515 = arith.extf %509 : vector<8x32xbf16> to vector<8x32xf32>
    %516 = arith.extf %511 : vector<8x32xbf16> to vector<8x32xf32>
    %517 = arith.extf %513 : vector<8x32xbf16> to vector<8x32xf32>
    %518 = arith.addf %514, %515 : vector<8x32xf32>
    %519 = arith.addf %518, %516 : vector<8x32xf32>
    %520 = arith.addf %519, %517 : vector<8x32xf32>
    %cst_136 = arith.constant dense<0.000000e+00> : vector<8xf32>
    %521 = vector.multi_reduction <add>, %520, %cst_136 [1] : vector<8x32xf32> to vector<8xf32>
    %522 = vector.shape_cast %521 : vector<8xf32> to vector<8x1xf32>
    %523 = arith.mulf %514, %514 : vector<8x32xf32>
    %524 = arith.mulf %515, %515 : vector<8x32xf32>
    %525 = arith.addf %523, %524 : vector<8x32xf32>
    %526 = arith.mulf %516, %516 : vector<8x32xf32>
    %527 = arith.addf %525, %526 : vector<8x32xf32>
    %528 = arith.mulf %517, %517 : vector<8x32xf32>
    %529 = arith.addf %527, %528 : vector<8x32xf32>
    %cst_137 = arith.constant dense<0.000000e+00> : vector<8xf32>
    %530 = vector.multi_reduction <add>, %529, %cst_137 [1] : vector<8x32xf32> to vector<8xf32>
    %531 = vector.shape_cast %530 : vector<8xf32> to vector<8x1xf32>
    %cst_138 = arith.constant 7.812500e-03 : f32
    %532 = vector.broadcast %cst_138 : f32 to vector<8x1xf32>
    %533 = arith.mulf %522, %532 : vector<8x1xf32>
    %cst_139 = arith.constant 7.812500e-03 : f32
    %534 = vector.broadcast %cst_139 : f32 to vector<8x1xf32>
    %535 = arith.mulf %531, %534 : vector<8x1xf32>
    %536 = arith.mulf %533, %533 : vector<8x1xf32>
    %537 = arith.subf %535, %536 : vector<8x1xf32>
    %cst_140 = arith.constant 9.99999974E-6 : f32
    %538 = vector.broadcast %cst_140 : f32 to vector<8x1xf32>
    %539 = arith.addf %537, %538 : vector<8x1xf32>
    %540 = math.rsqrt %539 : vector<8x1xf32>
    %541 = vector.broadcast %533 : vector<8x1xf32> to vector<8x32xf32>
    %542 = arith.subf %514, %541 : vector<8x32xf32>
    %543 = vector.broadcast %540 : vector<8x1xf32> to vector<8x32xf32>
    %544 = arith.mulf %542, %543 : vector<8x32xf32>
    %545 = vector.broadcast %2 : vector<1x32xf32> to vector<8x32xf32>
    %546 = arith.mulf %544, %545 : vector<8x32xf32>
    %547 = vector.broadcast %6 : vector<1x32xf32> to vector<8x32xf32>
    %548 = arith.addf %546, %547 : vector<8x32xf32>
    %549 = arith.truncf %548 : vector<8x32xf32> to vector<8x32xbf16>
    %cst_141 = arith.constant dense<0.000000e+00> : vector<8x64xf32>
    %550 = tpu.matmul %549, %10, %cst_141 {dimension_numbers = #tpu.dot_dimension_numbers<[1], [0], [0], [1], [0, 0, 1, 1], [], []>} : vector<8x32xbf16>, vector<32x64xbf16>, vector<8x64xf32> -> vector<8x64xf32>
    %551 = vector.broadcast %533 : vector<8x1xf32> to vector<8x32xf32>
    %552 = arith.subf %515, %551 : vector<8x32xf32>
    %553 = vector.broadcast %540 : vector<8x1xf32> to vector<8x32xf32>
    %554 = arith.mulf %552, %553 : vector<8x32xf32>
    %555 = vector.broadcast %3 : vector<1x32xf32> to vector<8x32xf32>
    %556 = arith.mulf %554, %555 : vector<8x32xf32>
    %557 = vector.broadcast %7 : vector<1x32xf32> to vector<8x32xf32>
    %558 = arith.addf %556, %557 : vector<8x32xf32>
    %559 = arith.truncf %558 : vector<8x32xf32> to vector<8x32xbf16>
    %cst_142 = arith.constant dense<0.000000e+00> : vector<8x64xf32>
    %560 = tpu.matmul %559, %11, %cst_142 {dimension_numbers = #tpu.dot_dimension_numbers<[1], [0], [0], [1], [0, 0, 1, 1], [], []>} : vector<8x32xbf16>, vector<32x64xbf16>, vector<8x64xf32> -> vector<8x64xf32>
    %561 = arith.addf %550, %560 : vector<8x64xf32>
    %562 = vector.broadcast %533 : vector<8x1xf32> to vector<8x32xf32>
    %563 = arith.subf %516, %562 : vector<8x32xf32>
    %564 = vector.broadcast %540 : vector<8x1xf32> to vector<8x32xf32>
    %565 = arith.mulf %563, %564 : vector<8x32xf32>
    %566 = vector.broadcast %4 : vector<1x32xf32> to vector<8x32xf32>
    %567 = arith.mulf %565, %566 : vector<8x32xf32>
    %568 = vector.broadcast %8 : vector<1x32xf32> to vector<8x32xf32>
    %569 = arith.addf %567, %568 : vector<8x32xf32>
    %570 = arith.truncf %569 : vector<8x32xf32> to vector<8x32xbf16>
    %cst_143 = arith.constant dense<0.000000e+00> : vector<8x64xf32>
    %571 = tpu.matmul %570, %12, %cst_143 {dimension_numbers = #tpu.dot_dimension_numbers<[1], [0], [0], [1], [0, 0, 1, 1], [], []>} : vector<8x32xbf16>, vector<32x64xbf16>, vector<8x64xf32> -> vector<8x64xf32>
    %572 = arith.addf %561, %571 : vector<8x64xf32>
    %573 = vector.broadcast %533 : vector<8x1xf32> to vector<8x32xf32>
    %574 = arith.subf %517, %573 : vector<8x32xf32>
    %575 = vector.broadcast %540 : vector<8x1xf32> to vector<8x32xf32>
    %576 = arith.mulf %574, %575 : vector<8x32xf32>
    %577 = vector.broadcast %5 : vector<1x32xf32> to vector<8x32xf32>
    %578 = arith.mulf %576, %577 : vector<8x32xf32>
    %579 = vector.broadcast %9 : vector<1x32xf32> to vector<8x32xf32>
    %580 = arith.addf %578, %579 : vector<8x32xf32>
    %581 = arith.truncf %580 : vector<8x32xf32> to vector<8x32xbf16>
    %cst_144 = arith.constant dense<0.000000e+00> : vector<8x64xf32>
    %582 = tpu.matmul %581, %13, %cst_144 {dimension_numbers = #tpu.dot_dimension_numbers<[1], [0], [0], [1], [0, 0, 1, 1], [], []>} : vector<8x32xbf16>, vector<32x64xbf16>, vector<8x64xf32> -> vector<8x64xf32>
    %583 = arith.addf %572, %582 : vector<8x64xf32>
    %584 = arith.truncf %583 : vector<8x64xf32> to vector<8x64xbf16>
    %c0_145 = arith.constant 0 : index
    %c48_146 = arith.constant 48 : index
    %c0_147 = arith.constant 0 : index
    %585 = vector.load %arg6[%c0_145, %c48_146, %c0_147] : memref<1x64x64xbf16, #tpu.memory_space<vmem>>, vector<1x8x64xbf16>
    %586 = vector.shape_cast %585 : vector<1x8x64xbf16> to vector<8x64xbf16>
    %587 = vector.shape_cast %584 : vector<8x64xbf16> to vector<1x8x64xbf16>
    tpu.vector_store %arg6[%c0_145, %c48_146, %c0_147], %587 {strides = array<i32>} : memref<1x64x64xbf16, #tpu.memory_space<vmem>>, vector<1x8x64xbf16>,
    %c0_148 = arith.constant 0 : index
    %c224 = arith.constant 224 : index
    %c0_149 = arith.constant 0 : index
    %588 = tpu.strided_load %arg2[%c0_148, %c224, %c0_149] {strides = array<i32: 1, 2, 1>} : memref<1x256x32xbf16, #tpu.memory_space<vmem>>, vector<1x8x32xbf16>
    %589 = vector.shape_cast %588 : vector<1x8x32xbf16> to vector<8x32xbf16>
    %c0_150 = arith.constant 0 : index
    %c240 = arith.constant 240 : index
    %c0_151 = arith.constant 0 : index
    %590 = tpu.strided_load %arg2[%c0_150, %c240, %c0_151] {strides = array<i32: 1, 2, 1>} : memref<1x256x32xbf16, #tpu.memory_space<vmem>>, vector<1x8x32xbf16>
    %591 = vector.shape_cast %590 : vector<1x8x32xbf16> to vector<8x32xbf16>
    %c0_152 = arith.constant 0 : index
    %c225 = arith.constant 225 : index
    %c0_153 = arith.constant 0 : index
    %592 = tpu.strided_load %arg2[%c0_152, %c225, %c0_153] {strides = array<i32: 1, 2, 1>} : memref<1x256x32xbf16, #tpu.memory_space<vmem>>, vector<1x8x32xbf16>
    %593 = vector.shape_cast %592 : vector<1x8x32xbf16> to vector<8x32xbf16>
    %c0_154 = arith.constant 0 : index
    %c241 = arith.constant 241 : index
    %c0_155 = arith.constant 0 : index
    %594 = tpu.strided_load %arg2[%c0_154, %c241, %c0_155] {strides = array<i32: 1, 2, 1>} : memref<1x256x32xbf16, #tpu.memory_space<vmem>>, vector<1x8x32xbf16>
    %595 = vector.shape_cast %594 : vector<1x8x32xbf16> to vector<8x32xbf16>
    %596 = arith.extf %589 : vector<8x32xbf16> to vector<8x32xf32>
    %597 = arith.extf %591 : vector<8x32xbf16> to vector<8x32xf32>
    %598 = arith.extf %593 : vector<8x32xbf16> to vector<8x32xf32>
    %599 = arith.extf %595 : vector<8x32xbf16> to vector<8x32xf32>
    %600 = arith.addf %596, %597 : vector<8x32xf32>
    %601 = arith.addf %600, %598 : vector<8x32xf32>
    %602 = arith.addf %601, %599 : vector<8x32xf32>
    %cst_156 = arith.constant dense<0.000000e+00> : vector<8xf32>
    %603 = vector.multi_reduction <add>, %602, %cst_156 [1] : vector<8x32xf32> to vector<8xf32>
    %604 = vector.shape_cast %603 : vector<8xf32> to vector<8x1xf32>
    %605 = arith.mulf %596, %596 : vector<8x32xf32>
    %606 = arith.mulf %597, %597 : vector<8x32xf32>
    %607 = arith.addf %605, %606 : vector<8x32xf32>
    %608 = arith.mulf %598, %598 : vector<8x32xf32>
    %609 = arith.addf %607, %608 : vector<8x32xf32>
    %610 = arith.mulf %599, %599 : vector<8x32xf32>
    %611 = arith.addf %609, %610 : vector<8x32xf32>
    %cst_157 = arith.constant dense<0.000000e+00> : vector<8xf32>
    %612 = vector.multi_reduction <add>, %611, %cst_157 [1] : vector<8x32xf32> to vector<8xf32>
    %613 = vector.shape_cast %612 : vector<8xf32> to vector<8x1xf32>
    %cst_158 = arith.constant 7.812500e-03 : f32
    %614 = vector.broadcast %cst_158 : f32 to vector<8x1xf32>
    %615 = arith.mulf %604, %614 : vector<8x1xf32>
    %cst_159 = arith.constant 7.812500e-03 : f32
    %616 = vector.broadcast %cst_159 : f32 to vector<8x1xf32>
    %617 = arith.mulf %613, %616 : vector<8x1xf32>
    %618 = arith.mulf %615, %615 : vector<8x1xf32>
    %619 = arith.subf %617, %618 : vector<8x1xf32>
    %cst_160 = arith.constant 9.99999974E-6 : f32
    %620 = vector.broadcast %cst_160 : f32 to vector<8x1xf32>
    %621 = arith.addf %619, %620 : vector<8x1xf32>
    %622 = math.rsqrt %621 : vector<8x1xf32>
    %623 = vector.broadcast %615 : vector<8x1xf32> to vector<8x32xf32>
    %624 = arith.subf %596, %623 : vector<8x32xf32>
    %625 = vector.broadcast %622 : vector<8x1xf32> to vector<8x32xf32>
    %626 = arith.mulf %624, %625 : vector<8x32xf32>
    %627 = vector.broadcast %2 : vector<1x32xf32> to vector<8x32xf32>
    %628 = arith.mulf %626, %627 : vector<8x32xf32>
    %629 = vector.broadcast %6 : vector<1x32xf32> to vector<8x32xf32>
    %630 = arith.addf %628, %629 : vector<8x32xf32>
    %631 = arith.truncf %630 : vector<8x32xf32> to vector<8x32xbf16>
    %cst_161 = arith.constant dense<0.000000e+00> : vector<8x64xf32>
    %632 = tpu.matmul %631, %10, %cst_161 {dimension_numbers = #tpu.dot_dimension_numbers<[1], [0], [0], [1], [0, 0, 1, 1], [], []>} : vector<8x32xbf16>, vector<32x64xbf16>, vector<8x64xf32> -> vector<8x64xf32>
    %633 = vector.broadcast %615 : vector<8x1xf32> to vector<8x32xf32>
    %634 = arith.subf %597, %633 : vector<8x32xf32>
    %635 = vector.broadcast %622 : vector<8x1xf32> to vector<8x32xf32>
    %636 = arith.mulf %634, %635 : vector<8x32xf32>
    %637 = vector.broadcast %3 : vector<1x32xf32> to vector<8x32xf32>
    %638 = arith.mulf %636, %637 : vector<8x32xf32>
    %639 = vector.broadcast %7 : vector<1x32xf32> to vector<8x32xf32>
    %640 = arith.addf %638, %639 : vector<8x32xf32>
    %641 = arith.truncf %640 : vector<8x32xf32> to vector<8x32xbf16>
    %cst_162 = arith.constant dense<0.000000e+00> : vector<8x64xf32>
    %642 = tpu.matmul %641, %11, %cst_162 {dimension_numbers = #tpu.dot_dimension_numbers<[1], [0], [0], [1], [0, 0, 1, 1], [], []>} : vector<8x32xbf16>, vector<32x64xbf16>, vector<8x64xf32> -> vector<8x64xf32>
    %643 = arith.addf %632, %642 : vector<8x64xf32>
    %644 = vector.broadcast %615 : vector<8x1xf32> to vector<8x32xf32>
    %645 = arith.subf %598, %644 : vector<8x32xf32>
    %646 = vector.broadcast %622 : vector<8x1xf32> to vector<8x32xf32>
    %647 = arith.mulf %645, %646 : vector<8x32xf32>
    %648 = vector.broadcast %4 : vector<1x32xf32> to vector<8x32xf32>
    %649 = arith.mulf %647, %648 : vector<8x32xf32>
    %650 = vector.broadcast %8 : vector<1x32xf32> to vector<8x32xf32>
    %651 = arith.addf %649, %650 : vector<8x32xf32>
    %652 = arith.truncf %651 : vector<8x32xf32> to vector<8x32xbf16>
    %cst_163 = arith.constant dense<0.000000e+00> : vector<8x64xf32>
    %653 = tpu.matmul %652, %12, %cst_163 {dimension_numbers = #tpu.dot_dimension_numbers<[1], [0], [0], [1], [0, 0, 1, 1], [], []>} : vector<8x32xbf16>, vector<32x64xbf16>, vector<8x64xf32> -> vector<8x64xf32>
    %654 = arith.addf %643, %653 : vector<8x64xf32>
    %655 = vector.broadcast %615 : vector<8x1xf32> to vector<8x32xf32>
    %656 = arith.subf %599, %655 : vector<8x32xf32>
    %657 = vector.broadcast %622 : vector<8x1xf32> to vector<8x32xf32>
    %658 = arith.mulf %656, %657 : vector<8x32xf32>
    %659 = vector.broadcast %5 : vector<1x32xf32> to vector<8x32xf32>
    %660 = arith.mulf %658, %659 : vector<8x32xf32>
    %661 = vector.broadcast %9 : vector<1x32xf32> to vector<8x32xf32>
    %662 = arith.addf %660, %661 : vector<8x32xf32>
    %663 = arith.truncf %662 : vector<8x32xf32> to vector<8x32xbf16>
    %cst_164 = arith.constant dense<0.000000e+00> : vector<8x64xf32>
    %664 = tpu.matmul %663, %13, %cst_164 {dimension_numbers = #tpu.dot_dimension_numbers<[1], [0], [0], [1], [0, 0, 1, 1], [], []>} : vector<8x32xbf16>, vector<32x64xbf16>, vector<8x64xf32> -> vector<8x64xf32>
    %665 = arith.addf %654, %664 : vector<8x64xf32>
    %666 = arith.truncf %665 : vector<8x64xf32> to vector<8x64xbf16>
    %c0_165 = arith.constant 0 : index
    %c56 = arith.constant 56 : index
    %c0_166 = arith.constant 0 : index
    %667 = vector.load %arg6[%c0_165, %c56, %c0_166] : memref<1x64x64xbf16, #tpu.memory_space<vmem>>, vector<1x8x64xbf16>
    %668 = vector.shape_cast %667 : vector<1x8x64xbf16> to vector<8x64xbf16>
    %669 = vector.shape_cast %666 : vector<8x64xbf16> to vector<1x8x64xbf16>
    tpu.vector_store %arg6[%c0_165, %c56, %c0_166], %669 {strides = array<i32>} : memref<1x64x64xbf16, #tpu.memory_space<vmem>>, vector<1x8x64xbf16>,
    return
  }
  func.func @transform_0(%arg0: i32, %arg1: i32) -> (i32, i32, i32) {
    %c0_i32 = arith.constant 0 : i32
    %c0_i32_0 = arith.constant 0 : i32
    return %arg0, %arg1, %c0_i32 : i32, i32, i32
  }
  func.func @transform_1(%arg0: i32, %arg1: i32) -> (i32, i32) {
    %c0_i32 = arith.constant 0 : i32
    %c0_i32_0 = arith.constant 0 : i32
    %c0_i32_1 = arith.constant 0 : i32
    return %c0_i32, %c0_i32_0 : i32, i32
  }
  func.func @transform_2(%arg0: i32, %arg1: i32) -> (i32, i32) {
    %c0_i32 = arith.constant 0 : i32
    %c0_i32_0 = arith.constant 0 : i32
    %c0_i32_1 = arith.constant 0 : i32
    return %c0_i32, %c0_i32_0 : i32, i32
  }
  func.func @transform_3(%arg0: i32, %arg1: i32) -> (i32, i32) {
    %c0_i32 = arith.constant 0 : i32
    %c0_i32_0 = arith.constant 0 : i32
    %c0_i32_1 = arith.constant 0 : i32
    return %c0_i32, %c0_i32_0 : i32, i32
  }
  func.func @transform_4(%arg0: i32, %arg1: i32) -> (i32, i32, i32) {
    %c0_i32 = arith.constant 0 : i32
    %c0_i32_0 = arith.constant 0 : i32
    return %arg0, %arg1, %c0_i32 : i32, i32, i32
  }
}

module attributes {stable_mosaic.version = 11 : i64} {
  func.func @kernel(%arg0: i32, %arg1: i32, %arg2: memref<1x256x32xf32, #tpu.memory_space<vmem>>, %arg3: memref<1x128xf32, #tpu.memory_space<vmem>>, %arg4: memref<1x128xf32, #tpu.memory_space<vmem>>, %arg5: memref<128x64xbf16, #tpu.memory_space<vmem>>, %arg6: memref<1x64x64xbf16, #tpu.memory_space<vmem>>) attributes {dimension_semantics = [#tpu.dimension_semantics<parallel>, #tpu.dimension_semantics<parallel>], iteration_bounds = array<i64: 2, 1>, scalar_prefetch = 0 : i64, scratch_operands = 0 : i64, tpu.core_type = #tpu.core_type<tc>, window_params = [{transform_indices = @transform_0, window_bounds = array<i64: 1, 256, 32>}, {pipeline_mode = #tpu.pipeline_mode<synchronous>, transform_indices = @transform_1, window_bounds = array<i64: 1, 128>}, {pipeline_mode = #tpu.pipeline_mode<synchronous>, transform_indices = @transform_2, window_bounds = array<i64: 1, 128>}, {pipeline_mode = #tpu.pipeline_mode<synchronous>, transform_indices = @transform_3, window_bounds = array<i64: 128, 64>}, {transform_indices = @transform_4, window_bounds = array<i64: 1, 64, 64>}]} {
    %c0 = arith.constant 0 : index
    %c0_0 = arith.constant 0 : index
    %0 = vector.load %arg3[%c0, %c0_0] : memref<1x128xf32, #tpu.memory_space<vmem>>, vector<1x128xf32>
    %c0_1 = arith.constant 0 : index
    %c0_2 = arith.constant 0 : index
    %1 = vector.load %arg4[%c0_1, %c0_2] : memref<1x128xf32, #tpu.memory_space<vmem>>, vector<1x128xf32>
    %2 = vector.extract_strided_slice %0 {offsets = [0, 0], sizes = [1, 32], strides = [1, 1]} : vector<1x128xf32> to vector<1x32xf32>
    %3 = vector.extract_strided_slice %0 {offsets = [0, 32], sizes = [1, 32], strides = [1, 1]} : vector<1x128xf32> to vector<1x32xf32>
    %4 = vector.extract_strided_slice %0 {offsets = [0, 64], sizes = [1, 32], strides = [1, 1]} : vector<1x128xf32> to vector<1x32xf32>
    %5 = vector.extract_strided_slice %0 {offsets = [0, 96], sizes = [1, 32], strides = [1, 1]} : vector<1x128xf32> to vector<1x32xf32>
    %6 = vector.extract_strided_slice %1 {offsets = [0, 0], sizes = [1, 32], strides = [1, 1]} : vector<1x128xf32> to vector<1x32xf32>
    %7 = vector.extract_strided_slice %1 {offsets = [0, 32], sizes = [1, 32], strides = [1, 1]} : vector<1x128xf32> to vector<1x32xf32>
    %8 = vector.extract_strided_slice %1 {offsets = [0, 64], sizes = [1, 32], strides = [1, 1]} : vector<1x128xf32> to vector<1x32xf32>
    %9 = vector.extract_strided_slice %1 {offsets = [0, 96], sizes = [1, 32], strides = [1, 1]} : vector<1x128xf32> to vector<1x32xf32>
    %c0_3 = arith.constant 0 : index
    %c0_4 = arith.constant 0 : index
    %10 = vector.load %arg5[%c0_3, %c0_4] : memref<128x64xbf16, #tpu.memory_space<vmem>>, vector<32x64xbf16>
    %c32 = arith.constant 32 : index
    %c0_5 = arith.constant 0 : index
    %11 = vector.load %arg5[%c32, %c0_5] : memref<128x64xbf16, #tpu.memory_space<vmem>>, vector<32x64xbf16>
    %c64 = arith.constant 64 : index
    %c0_6 = arith.constant 0 : index
    %12 = vector.load %arg5[%c64, %c0_6] : memref<128x64xbf16, #tpu.memory_space<vmem>>, vector<32x64xbf16>
    %c96 = arith.constant 96 : index
    %c0_7 = arith.constant 0 : index
    %13 = vector.load %arg5[%c96, %c0_7] : memref<128x64xbf16, #tpu.memory_space<vmem>>, vector<32x64xbf16>
    %c0_8 = arith.constant 0 : index
    %c0_9 = arith.constant 0 : index
    %c0_10 = arith.constant 0 : index
    %14 = tpu.strided_load %arg2[%c0_8, %c0_9, %c0_10] {strides = array<i32: 1, 2, 1>} : memref<1x256x32xf32, #tpu.memory_space<vmem>>, vector<1x8x32xf32>
    %15 = vector.shape_cast %14 : vector<1x8x32xf32> to vector<8x32xf32>
    %c0_11 = arith.constant 0 : index
    %c16 = arith.constant 16 : index
    %c0_12 = arith.constant 0 : index
    %16 = tpu.strided_load %arg2[%c0_11, %c16, %c0_12] {strides = array<i32: 1, 2, 1>} : memref<1x256x32xf32, #tpu.memory_space<vmem>>, vector<1x8x32xf32>
    %17 = vector.shape_cast %16 : vector<1x8x32xf32> to vector<8x32xf32>
    %c0_13 = arith.constant 0 : index
    %c1 = arith.constant 1 : index
    %c0_14 = arith.constant 0 : index
    %18 = tpu.strided_load %arg2[%c0_13, %c1, %c0_14] {strides = array<i32: 1, 2, 1>} : memref<1x256x32xf32, #tpu.memory_space<vmem>>, vector<1x8x32xf32>
    %19 = vector.shape_cast %18 : vector<1x8x32xf32> to vector<8x32xf32>
    %c0_15 = arith.constant 0 : index
    %c17 = arith.constant 17 : index
    %c0_16 = arith.constant 0 : index
    %20 = tpu.strided_load %arg2[%c0_15, %c17, %c0_16] {strides = array<i32: 1, 2, 1>} : memref<1x256x32xf32, #tpu.memory_space<vmem>>, vector<1x8x32xf32>
    %21 = vector.shape_cast %20 : vector<1x8x32xf32> to vector<8x32xf32>
    %22 = arith.addf %15, %17 : vector<8x32xf32>
    %23 = arith.addf %22, %19 : vector<8x32xf32>
    %24 = arith.addf %23, %21 : vector<8x32xf32>
    %cst = arith.constant dense<0.000000e+00> : vector<8xf32>
    %25 = vector.multi_reduction <add>, %24, %cst [1] : vector<8x32xf32> to vector<8xf32>
    %26 = vector.shape_cast %25 : vector<8xf32> to vector<8x1xf32>
    %27 = arith.mulf %15, %15 : vector<8x32xf32>
    %28 = arith.mulf %17, %17 : vector<8x32xf32>
    %29 = arith.addf %27, %28 : vector<8x32xf32>
    %30 = arith.mulf %19, %19 : vector<8x32xf32>
    %31 = arith.addf %29, %30 : vector<8x32xf32>
    %32 = arith.mulf %21, %21 : vector<8x32xf32>
    %33 = arith.addf %31, %32 : vector<8x32xf32>
    %cst_17 = arith.constant dense<0.000000e+00> : vector<8xf32>
    %34 = vector.multi_reduction <add>, %33, %cst_17 [1] : vector<8x32xf32> to vector<8xf32>
    %35 = vector.shape_cast %34 : vector<8xf32> to vector<8x1xf32>
    %cst_18 = arith.constant 7.812500e-03 : f32
    %36 = vector.broadcast %cst_18 : f32 to vector<8x1xf32>
    %37 = arith.mulf %26, %36 : vector<8x1xf32>
    %cst_19 = arith.constant 7.812500e-03 : f32
    %38 = vector.broadcast %cst_19 : f32 to vector<8x1xf32>
    %39 = arith.mulf %35, %38 : vector<8x1xf32>
    %40 = arith.mulf %37, %37 : vector<8x1xf32>
    %41 = arith.subf %39, %40 : vector<8x1xf32>
    %cst_20 = arith.constant 9.99999974E-6 : f32
    %42 = vector.broadcast %cst_20 : f32 to vector<8x1xf32>
    %43 = arith.addf %41, %42 : vector<8x1xf32>
    %44 = math.rsqrt %43 : vector<8x1xf32>
    %45 = vector.broadcast %37 : vector<8x1xf32> to vector<8x32xf32>
    %46 = arith.subf %15, %45 : vector<8x32xf32>
    %47 = vector.broadcast %44 : vector<8x1xf32> to vector<8x32xf32>
    %48 = arith.mulf %46, %47 : vector<8x32xf32>
    %49 = vector.broadcast %2 : vector<1x32xf32> to vector<8x32xf32>
    %50 = arith.mulf %48, %49 : vector<8x32xf32>
    %51 = vector.broadcast %6 : vector<1x32xf32> to vector<8x32xf32>
    %52 = arith.addf %50, %51 : vector<8x32xf32>
    %53 = arith.truncf %52 : vector<8x32xf32> to vector<8x32xbf16>
    %cst_21 = arith.constant dense<0.000000e+00> : vector<8x64xf32>
    %54 = tpu.matmul %53, %10, %cst_21 {dimension_numbers = #tpu.dot_dimension_numbers<[1], [0], [0], [1], [0, 0, 1, 1], [], []>} : vector<8x32xbf16>, vector<32x64xbf16>, vector<8x64xf32> -> vector<8x64xf32>
    %55 = vector.broadcast %37 : vector<8x1xf32> to vector<8x32xf32>
    %56 = arith.subf %17, %55 : vector<8x32xf32>
    %57 = vector.broadcast %44 : vector<8x1xf32> to vector<8x32xf32>
    %58 = arith.mulf %56, %57 : vector<8x32xf32>
    %59 = vector.broadcast %3 : vector<1x32xf32> to vector<8x32xf32>
    %60 = arith.mulf %58, %59 : vector<8x32xf32>
    %61 = vector.broadcast %7 : vector<1x32xf32> to vector<8x32xf32>
    %62 = arith.addf %60, %61 : vector<8x32xf32>
    %63 = arith.truncf %62 : vector<8x32xf32> to vector<8x32xbf16>
    %cst_22 = arith.constant dense<0.000000e+00> : vector<8x64xf32>
    %64 = tpu.matmul %63, %11, %cst_22 {dimension_numbers = #tpu.dot_dimension_numbers<[1], [0], [0], [1], [0, 0, 1, 1], [], []>} : vector<8x32xbf16>, vector<32x64xbf16>, vector<8x64xf32> -> vector<8x64xf32>
    %65 = arith.addf %54, %64 : vector<8x64xf32>
    %66 = vector.broadcast %37 : vector<8x1xf32> to vector<8x32xf32>
    %67 = arith.subf %19, %66 : vector<8x32xf32>
    %68 = vector.broadcast %44 : vector<8x1xf32> to vector<8x32xf32>
    %69 = arith.mulf %67, %68 : vector<8x32xf32>
    %70 = vector.broadcast %4 : vector<1x32xf32> to vector<8x32xf32>
    %71 = arith.mulf %69, %70 : vector<8x32xf32>
    %72 = vector.broadcast %8 : vector<1x32xf32> to vector<8x32xf32>
    %73 = arith.addf %71, %72 : vector<8x32xf32>
    %74 = arith.truncf %73 : vector<8x32xf32> to vector<8x32xbf16>
    %cst_23 = arith.constant dense<0.000000e+00> : vector<8x64xf32>
    %75 = tpu.matmul %74, %12, %cst_23 {dimension_numbers = #tpu.dot_dimension_numbers<[1], [0], [0], [1], [0, 0, 1, 1], [], []>} : vector<8x32xbf16>, vector<32x64xbf16>, vector<8x64xf32> -> vector<8x64xf32>
    %76 = arith.addf %65, %75 : vector<8x64xf32>
    %77 = vector.broadcast %37 : vector<8x1xf32> to vector<8x32xf32>
    %78 = arith.subf %21, %77 : vector<8x32xf32>
    %79 = vector.broadcast %44 : vector<8x1xf32> to vector<8x32xf32>
    %80 = arith.mulf %78, %79 : vector<8x32xf32>
    %81 = vector.broadcast %5 : vector<1x32xf32> to vector<8x32xf32>
    %82 = arith.mulf %80, %81 : vector<8x32xf32>
    %83 = vector.broadcast %9 : vector<1x32xf32> to vector<8x32xf32>
    %84 = arith.addf %82, %83 : vector<8x32xf32>
    %85 = arith.truncf %84 : vector<8x32xf32> to vector<8x32xbf16>
    %cst_24 = arith.constant dense<0.000000e+00> : vector<8x64xf32>
    %86 = tpu.matmul %85, %13, %cst_24 {dimension_numbers = #tpu.dot_dimension_numbers<[1], [0], [0], [1], [0, 0, 1, 1], [], []>} : vector<8x32xbf16>, vector<32x64xbf16>, vector<8x64xf32> -> vector<8x64xf32>
    %87 = arith.addf %76, %86 : vector<8x64xf32>
    %88 = arith.truncf %87 : vector<8x64xf32> to vector<8x64xbf16>
    %c0_25 = arith.constant 0 : index
    %c0_26 = arith.constant 0 : index
    %c0_27 = arith.constant 0 : index
    %89 = vector.load %arg6[%c0_25, %c0_26, %c0_27] : memref<1x64x64xbf16, #tpu.memory_space<vmem>>, vector<1x8x64xbf16>
    %90 = vector.shape_cast %89 : vector<1x8x64xbf16> to vector<8x64xbf16>
    %91 = vector.shape_cast %88 : vector<8x64xbf16> to vector<1x8x64xbf16>
    tpu.vector_store %arg6[%c0_25, %c0_26, %c0_27], %91 {strides = array<i32>} : memref<1x64x64xbf16, #tpu.memory_space<vmem>>, vector<1x8x64xbf16>,
    %c0_28 = arith.constant 0 : index
    %c32_29 = arith.constant 32 : index
    %c0_30 = arith.constant 0 : index
    %92 = tpu.strided_load %arg2[%c0_28, %c32_29, %c0_30] {strides = array<i32: 1, 2, 1>} : memref<1x256x32xf32, #tpu.memory_space<vmem>>, vector<1x8x32xf32>
    %93 = vector.shape_cast %92 : vector<1x8x32xf32> to vector<8x32xf32>
    %c0_31 = arith.constant 0 : index
    %c48 = arith.constant 48 : index
    %c0_32 = arith.constant 0 : index
    %94 = tpu.strided_load %arg2[%c0_31, %c48, %c0_32] {strides = array<i32: 1, 2, 1>} : memref<1x256x32xf32, #tpu.memory_space<vmem>>, vector<1x8x32xf32>
    %95 = vector.shape_cast %94 : vector<1x8x32xf32> to vector<8x32xf32>
    %c0_33 = arith.constant 0 : index
    %c33 = arith.constant 33 : index
    %c0_34 = arith.constant 0 : index
    %96 = tpu.strided_load %arg2[%c0_33, %c33, %c0_34] {strides = array<i32: 1, 2, 1>} : memref<1x256x32xf32, #tpu.memory_space<vmem>>, vector<1x8x32xf32>
    %97 = vector.shape_cast %96 : vector<1x8x32xf32> to vector<8x32xf32>
    %c0_35 = arith.constant 0 : index
    %c49 = arith.constant 49 : index
    %c0_36 = arith.constant 0 : index
    %98 = tpu.strided_load %arg2[%c0_35, %c49, %c0_36] {strides = array<i32: 1, 2, 1>} : memref<1x256x32xf32, #tpu.memory_space<vmem>>, vector<1x8x32xf32>
    %99 = vector.shape_cast %98 : vector<1x8x32xf32> to vector<8x32xf32>
    %100 = arith.addf %93, %95 : vector<8x32xf32>
    %101 = arith.addf %100, %97 : vector<8x32xf32>
    %102 = arith.addf %101, %99 : vector<8x32xf32>
    %cst_37 = arith.constant dense<0.000000e+00> : vector<8xf32>
    %103 = vector.multi_reduction <add>, %102, %cst_37 [1] : vector<8x32xf32> to vector<8xf32>
    %104 = vector.shape_cast %103 : vector<8xf32> to vector<8x1xf32>
    %105 = arith.mulf %93, %93 : vector<8x32xf32>
    %106 = arith.mulf %95, %95 : vector<8x32xf32>
    %107 = arith.addf %105, %106 : vector<8x32xf32>
    %108 = arith.mulf %97, %97 : vector<8x32xf32>
    %109 = arith.addf %107, %108 : vector<8x32xf32>
    %110 = arith.mulf %99, %99 : vector<8x32xf32>
    %111 = arith.addf %109, %110 : vector<8x32xf32>
    %cst_38 = arith.constant dense<0.000000e+00> : vector<8xf32>
    %112 = vector.multi_reduction <add>, %111, %cst_38 [1] : vector<8x32xf32> to vector<8xf32>
    %113 = vector.shape_cast %112 : vector<8xf32> to vector<8x1xf32>
    %cst_39 = arith.constant 7.812500e-03 : f32
    %114 = vector.broadcast %cst_39 : f32 to vector<8x1xf32>
    %115 = arith.mulf %104, %114 : vector<8x1xf32>
    %cst_40 = arith.constant 7.812500e-03 : f32
    %116 = vector.broadcast %cst_40 : f32 to vector<8x1xf32>
    %117 = arith.mulf %113, %116 : vector<8x1xf32>
    %118 = arith.mulf %115, %115 : vector<8x1xf32>
    %119 = arith.subf %117, %118 : vector<8x1xf32>
    %cst_41 = arith.constant 9.99999974E-6 : f32
    %120 = vector.broadcast %cst_41 : f32 to vector<8x1xf32>
    %121 = arith.addf %119, %120 : vector<8x1xf32>
    %122 = math.rsqrt %121 : vector<8x1xf32>
    %123 = vector.broadcast %115 : vector<8x1xf32> to vector<8x32xf32>
    %124 = arith.subf %93, %123 : vector<8x32xf32>
    %125 = vector.broadcast %122 : vector<8x1xf32> to vector<8x32xf32>
    %126 = arith.mulf %124, %125 : vector<8x32xf32>
    %127 = vector.broadcast %2 : vector<1x32xf32> to vector<8x32xf32>
    %128 = arith.mulf %126, %127 : vector<8x32xf32>
    %129 = vector.broadcast %6 : vector<1x32xf32> to vector<8x32xf32>
    %130 = arith.addf %128, %129 : vector<8x32xf32>
    %131 = arith.truncf %130 : vector<8x32xf32> to vector<8x32xbf16>
    %cst_42 = arith.constant dense<0.000000e+00> : vector<8x64xf32>
    %132 = tpu.matmul %131, %10, %cst_42 {dimension_numbers = #tpu.dot_dimension_numbers<[1], [0], [0], [1], [0, 0, 1, 1], [], []>} : vector<8x32xbf16>, vector<32x64xbf16>, vector<8x64xf32> -> vector<8x64xf32>
    %133 = vector.broadcast %115 : vector<8x1xf32> to vector<8x32xf32>
    %134 = arith.subf %95, %133 : vector<8x32xf32>
    %135 = vector.broadcast %122 : vector<8x1xf32> to vector<8x32xf32>
    %136 = arith.mulf %134, %135 : vector<8x32xf32>
    %137 = vector.broadcast %3 : vector<1x32xf32> to vector<8x32xf32>
    %138 = arith.mulf %136, %137 : vector<8x32xf32>
    %139 = vector.broadcast %7 : vector<1x32xf32> to vector<8x32xf32>
    %140 = arith.addf %138, %139 : vector<8x32xf32>
    %141 = arith.truncf %140 : vector<8x32xf32> to vector<8x32xbf16>
    %cst_43 = arith.constant dense<0.000000e+00> : vector<8x64xf32>
    %142 = tpu.matmul %141, %11, %cst_43 {dimension_numbers = #tpu.dot_dimension_numbers<[1], [0], [0], [1], [0, 0, 1, 1], [], []>} : vector<8x32xbf16>, vector<32x64xbf16>, vector<8x64xf32> -> vector<8x64xf32>
    %143 = arith.addf %132, %142 : vector<8x64xf32>
    %144 = vector.broadcast %115 : vector<8x1xf32> to vector<8x32xf32>
    %145 = arith.subf %97, %144 : vector<8x32xf32>
    %146 = vector.broadcast %122 : vector<8x1xf32> to vector<8x32xf32>
    %147 = arith.mulf %145, %146 : vector<8x32xf32>
    %148 = vector.broadcast %4 : vector<1x32xf32> to vector<8x32xf32>
    %149 = arith.mulf %147, %148 : vector<8x32xf32>
    %150 = vector.broadcast %8 : vector<1x32xf32> to vector<8x32xf32>
    %151 = arith.addf %149, %150 : vector<8x32xf32>
    %152 = arith.truncf %151 : vector<8x32xf32> to vector<8x32xbf16>
    %cst_44 = arith.constant dense<0.000000e+00> : vector<8x64xf32>
    %153 = tpu.matmul %152, %12, %cst_44 {dimension_numbers = #tpu.dot_dimension_numbers<[1], [0], [0], [1], [0, 0, 1, 1], [], []>} : vector<8x32xbf16>, vector<32x64xbf16>, vector<8x64xf32> -> vector<8x64xf32>
    %154 = arith.addf %143, %153 : vector<8x64xf32>
    %155 = vector.broadcast %115 : vector<8x1xf32> to vector<8x32xf32>
    %156 = arith.subf %99, %155 : vector<8x32xf32>
    %157 = vector.broadcast %122 : vector<8x1xf32> to vector<8x32xf32>
    %158 = arith.mulf %156, %157 : vector<8x32xf32>
    %159 = vector.broadcast %5 : vector<1x32xf32> to vector<8x32xf32>
    %160 = arith.mulf %158, %159 : vector<8x32xf32>
    %161 = vector.broadcast %9 : vector<1x32xf32> to vector<8x32xf32>
    %162 = arith.addf %160, %161 : vector<8x32xf32>
    %163 = arith.truncf %162 : vector<8x32xf32> to vector<8x32xbf16>
    %cst_45 = arith.constant dense<0.000000e+00> : vector<8x64xf32>
    %164 = tpu.matmul %163, %13, %cst_45 {dimension_numbers = #tpu.dot_dimension_numbers<[1], [0], [0], [1], [0, 0, 1, 1], [], []>} : vector<8x32xbf16>, vector<32x64xbf16>, vector<8x64xf32> -> vector<8x64xf32>
    %165 = arith.addf %154, %164 : vector<8x64xf32>
    %166 = arith.truncf %165 : vector<8x64xf32> to vector<8x64xbf16>
    %c0_46 = arith.constant 0 : index
    %c8 = arith.constant 8 : index
    %c0_47 = arith.constant 0 : index
    %167 = vector.load %arg6[%c0_46, %c8, %c0_47] : memref<1x64x64xbf16, #tpu.memory_space<vmem>>, vector<1x8x64xbf16>
    %168 = vector.shape_cast %167 : vector<1x8x64xbf16> to vector<8x64xbf16>
    %169 = vector.shape_cast %166 : vector<8x64xbf16> to vector<1x8x64xbf16>
    tpu.vector_store %arg6[%c0_46, %c8, %c0_47], %169 {strides = array<i32>} : memref<1x64x64xbf16, #tpu.memory_space<vmem>>, vector<1x8x64xbf16>,
    %c0_48 = arith.constant 0 : index
    %c64_49 = arith.constant 64 : index
    %c0_50 = arith.constant 0 : index
    %170 = tpu.strided_load %arg2[%c0_48, %c64_49, %c0_50] {strides = array<i32: 1, 2, 1>} : memref<1x256x32xf32, #tpu.memory_space<vmem>>, vector<1x8x32xf32>
    %171 = vector.shape_cast %170 : vector<1x8x32xf32> to vector<8x32xf32>
    %c0_51 = arith.constant 0 : index
    %c80 = arith.constant 80 : index
    %c0_52 = arith.constant 0 : index
    %172 = tpu.strided_load %arg2[%c0_51, %c80, %c0_52] {strides = array<i32: 1, 2, 1>} : memref<1x256x32xf32, #tpu.memory_space<vmem>>, vector<1x8x32xf32>
    %173 = vector.shape_cast %172 : vector<1x8x32xf32> to vector<8x32xf32>
    %c0_53 = arith.constant 0 : index
    %c65 = arith.constant 65 : index
    %c0_54 = arith.constant 0 : index
    %174 = tpu.strided_load %arg2[%c0_53, %c65, %c0_54] {strides = array<i32: 1, 2, 1>} : memref<1x256x32xf32, #tpu.memory_space<vmem>>, vector<1x8x32xf32>
    %175 = vector.shape_cast %174 : vector<1x8x32xf32> to vector<8x32xf32>
    %c0_55 = arith.constant 0 : index
    %c81 = arith.constant 81 : index
    %c0_56 = arith.constant 0 : index
    %176 = tpu.strided_load %arg2[%c0_55, %c81, %c0_56] {strides = array<i32: 1, 2, 1>} : memref<1x256x32xf32, #tpu.memory_space<vmem>>, vector<1x8x32xf32>
    %177 = vector.shape_cast %176 : vector<1x8x32xf32> to vector<8x32xf32>
    %178 = arith.addf %171, %173 : vector<8x32xf32>
    %179 = arith.addf %178, %175 : vector<8x32xf32>
    %180 = arith.addf %179, %177 : vector<8x32xf32>
    %cst_57 = arith.constant dense<0.000000e+00> : vector<8xf32>
    %181 = vector.multi_reduction <add>, %180, %cst_57 [1] : vector<8x32xf32> to vector<8xf32>
    %182 = vector.shape_cast %181 : vector<8xf32> to vector<8x1xf32>
    %183 = arith.mulf %171, %171 : vector<8x32xf32>
    %184 = arith.mulf %173, %173 : vector<8x32xf32>
    %185 = arith.addf %183, %184 : vector<8x32xf32>
    %186 = arith.mulf %175, %175 : vector<8x32xf32>
    %187 = arith.addf %185, %186 : vector<8x32xf32>
    %188 = arith.mulf %177, %177 : vector<8x32xf32>
    %189 = arith.addf %187, %188 : vector<8x32xf32>
    %cst_58 = arith.constant dense<0.000000e+00> : vector<8xf32>
    %190 = vector.multi_reduction <add>, %189, %cst_58 [1] : vector<8x32xf32> to vector<8xf32>
    %191 = vector.shape_cast %190 : vector<8xf32> to vector<8x1xf32>
    %cst_59 = arith.constant 7.812500e-03 : f32
    %192 = vector.broadcast %cst_59 : f32 to vector<8x1xf32>
    %193 = arith.mulf %182, %192 : vector<8x1xf32>
    %cst_60 = arith.constant 7.812500e-03 : f32
    %194 = vector.broadcast %cst_60 : f32 to vector<8x1xf32>
    %195 = arith.mulf %191, %194 : vector<8x1xf32>
    %196 = arith.mulf %193, %193 : vector<8x1xf32>
    %197 = arith.subf %195, %196 : vector<8x1xf32>
    %cst_61 = arith.constant 9.99999974E-6 : f32
    %198 = vector.broadcast %cst_61 : f32 to vector<8x1xf32>
    %199 = arith.addf %197, %198 : vector<8x1xf32>
    %200 = math.rsqrt %199 : vector<8x1xf32>
    %201 = vector.broadcast %193 : vector<8x1xf32> to vector<8x32xf32>
    %202 = arith.subf %171, %201 : vector<8x32xf32>
    %203 = vector.broadcast %200 : vector<8x1xf32> to vector<8x32xf32>
    %204 = arith.mulf %202, %203 : vector<8x32xf32>
    %205 = vector.broadcast %2 : vector<1x32xf32> to vector<8x32xf32>
    %206 = arith.mulf %204, %205 : vector<8x32xf32>
    %207 = vector.broadcast %6 : vector<1x32xf32> to vector<8x32xf32>
    %208 = arith.addf %206, %207 : vector<8x32xf32>
    %209 = arith.truncf %208 : vector<8x32xf32> to vector<8x32xbf16>
    %cst_62 = arith.constant dense<0.000000e+00> : vector<8x64xf32>
    %210 = tpu.matmul %209, %10, %cst_62 {dimension_numbers = #tpu.dot_dimension_numbers<[1], [0], [0], [1], [0, 0, 1, 1], [], []>} : vector<8x32xbf16>, vector<32x64xbf16>, vector<8x64xf32> -> vector<8x64xf32>
    %211 = vector.broadcast %193 : vector<8x1xf32> to vector<8x32xf32>
    %212 = arith.subf %173, %211 : vector<8x32xf32>
    %213 = vector.broadcast %200 : vector<8x1xf32> to vector<8x32xf32>
    %214 = arith.mulf %212, %213 : vector<8x32xf32>
    %215 = vector.broadcast %3 : vector<1x32xf32> to vector<8x32xf32>
    %216 = arith.mulf %214, %215 : vector<8x32xf32>
    %217 = vector.broadcast %7 : vector<1x32xf32> to vector<8x32xf32>
    %218 = arith.addf %216, %217 : vector<8x32xf32>
    %219 = arith.truncf %218 : vector<8x32xf32> to vector<8x32xbf16>
    %cst_63 = arith.constant dense<0.000000e+00> : vector<8x64xf32>
    %220 = tpu.matmul %219, %11, %cst_63 {dimension_numbers = #tpu.dot_dimension_numbers<[1], [0], [0], [1], [0, 0, 1, 1], [], []>} : vector<8x32xbf16>, vector<32x64xbf16>, vector<8x64xf32> -> vector<8x64xf32>
    %221 = arith.addf %210, %220 : vector<8x64xf32>
    %222 = vector.broadcast %193 : vector<8x1xf32> to vector<8x32xf32>
    %223 = arith.subf %175, %222 : vector<8x32xf32>
    %224 = vector.broadcast %200 : vector<8x1xf32> to vector<8x32xf32>
    %225 = arith.mulf %223, %224 : vector<8x32xf32>
    %226 = vector.broadcast %4 : vector<1x32xf32> to vector<8x32xf32>
    %227 = arith.mulf %225, %226 : vector<8x32xf32>
    %228 = vector.broadcast %8 : vector<1x32xf32> to vector<8x32xf32>
    %229 = arith.addf %227, %228 : vector<8x32xf32>
    %230 = arith.truncf %229 : vector<8x32xf32> to vector<8x32xbf16>
    %cst_64 = arith.constant dense<0.000000e+00> : vector<8x64xf32>
    %231 = tpu.matmul %230, %12, %cst_64 {dimension_numbers = #tpu.dot_dimension_numbers<[1], [0], [0], [1], [0, 0, 1, 1], [], []>} : vector<8x32xbf16>, vector<32x64xbf16>, vector<8x64xf32> -> vector<8x64xf32>
    %232 = arith.addf %221, %231 : vector<8x64xf32>
    %233 = vector.broadcast %193 : vector<8x1xf32> to vector<8x32xf32>
    %234 = arith.subf %177, %233 : vector<8x32xf32>
    %235 = vector.broadcast %200 : vector<8x1xf32> to vector<8x32xf32>
    %236 = arith.mulf %234, %235 : vector<8x32xf32>
    %237 = vector.broadcast %5 : vector<1x32xf32> to vector<8x32xf32>
    %238 = arith.mulf %236, %237 : vector<8x32xf32>
    %239 = vector.broadcast %9 : vector<1x32xf32> to vector<8x32xf32>
    %240 = arith.addf %238, %239 : vector<8x32xf32>
    %241 = arith.truncf %240 : vector<8x32xf32> to vector<8x32xbf16>
    %cst_65 = arith.constant dense<0.000000e+00> : vector<8x64xf32>
    %242 = tpu.matmul %241, %13, %cst_65 {dimension_numbers = #tpu.dot_dimension_numbers<[1], [0], [0], [1], [0, 0, 1, 1], [], []>} : vector<8x32xbf16>, vector<32x64xbf16>, vector<8x64xf32> -> vector<8x64xf32>
    %243 = arith.addf %232, %242 : vector<8x64xf32>
    %244 = arith.truncf %243 : vector<8x64xf32> to vector<8x64xbf16>
    %c0_66 = arith.constant 0 : index
    %c16_67 = arith.constant 16 : index
    %c0_68 = arith.constant 0 : index
    %245 = vector.load %arg6[%c0_66, %c16_67, %c0_68] : memref<1x64x64xbf16, #tpu.memory_space<vmem>>, vector<1x8x64xbf16>
    %246 = vector.shape_cast %245 : vector<1x8x64xbf16> to vector<8x64xbf16>
    %247 = vector.shape_cast %244 : vector<8x64xbf16> to vector<1x8x64xbf16>
    tpu.vector_store %arg6[%c0_66, %c16_67, %c0_68], %247 {strides = array<i32>} : memref<1x64x64xbf16, #tpu.memory_space<vmem>>, vector<1x8x64xbf16>,
    %c0_69 = arith.constant 0 : index
    %c96_70 = arith.constant 96 : index
    %c0_71 = arith.constant 0 : index
    %248 = tpu.strided_load %arg2[%c0_69, %c96_70, %c0_71] {strides = array<i32: 1, 2, 1>} : memref<1x256x32xf32, #tpu.memory_space<vmem>>, vector<1x8x32xf32>
    %249 = vector.shape_cast %248 : vector<1x8x32xf32> to vector<8x32xf32>
    %c0_72 = arith.constant 0 : index
    %c112 = arith.constant 112 : index
    %c0_73 = arith.constant 0 : index
    %250 = tpu.strided_load %arg2[%c0_72, %c112, %c0_73] {strides = array<i32: 1, 2, 1>} : memref<1x256x32xf32, #tpu.memory_space<vmem>>, vector<1x8x32xf32>
    %251 = vector.shape_cast %250 : vector<1x8x32xf32> to vector<8x32xf32>
    %c0_74 = arith.constant 0 : index
    %c97 = arith.constant 97 : index
    %c0_75 = arith.constant 0 : index
    %252 = tpu.strided_load %arg2[%c0_74, %c97, %c0_75] {strides = array<i32: 1, 2, 1>} : memref<1x256x32xf32, #tpu.memory_space<vmem>>, vector<1x8x32xf32>
    %253 = vector.shape_cast %252 : vector<1x8x32xf32> to vector<8x32xf32>
    %c0_76 = arith.constant 0 : index
    %c113 = arith.constant 113 : index
    %c0_77 = arith.constant 0 : index
    %254 = tpu.strided_load %arg2[%c0_76, %c113, %c0_77] {strides = array<i32: 1, 2, 1>} : memref<1x256x32xf32, #tpu.memory_space<vmem>>, vector<1x8x32xf32>
    %255 = vector.shape_cast %254 : vector<1x8x32xf32> to vector<8x32xf32>
    %256 = arith.addf %249, %251 : vector<8x32xf32>
    %257 = arith.addf %256, %253 : vector<8x32xf32>
    %258 = arith.addf %257, %255 : vector<8x32xf32>
    %cst_78 = arith.constant dense<0.000000e+00> : vector<8xf32>
    %259 = vector.multi_reduction <add>, %258, %cst_78 [1] : vector<8x32xf32> to vector<8xf32>
    %260 = vector.shape_cast %259 : vector<8xf32> to vector<8x1xf32>
    %261 = arith.mulf %249, %249 : vector<8x32xf32>
    %262 = arith.mulf %251, %251 : vector<8x32xf32>
    %263 = arith.addf %261, %262 : vector<8x32xf32>
    %264 = arith.mulf %253, %253 : vector<8x32xf32>
    %265 = arith.addf %263, %264 : vector<8x32xf32>
    %266 = arith.mulf %255, %255 : vector<8x32xf32>
    %267 = arith.addf %265, %266 : vector<8x32xf32>
    %cst_79 = arith.constant dense<0.000000e+00> : vector<8xf32>
    %268 = vector.multi_reduction <add>, %267, %cst_79 [1] : vector<8x32xf32> to vector<8xf32>
    %269 = vector.shape_cast %268 : vector<8xf32> to vector<8x1xf32>
    %cst_80 = arith.constant 7.812500e-03 : f32
    %270 = vector.broadcast %cst_80 : f32 to vector<8x1xf32>
    %271 = arith.mulf %260, %270 : vector<8x1xf32>
    %cst_81 = arith.constant 7.812500e-03 : f32
    %272 = vector.broadcast %cst_81 : f32 to vector<8x1xf32>
    %273 = arith.mulf %269, %272 : vector<8x1xf32>
    %274 = arith.mulf %271, %271 : vector<8x1xf32>
    %275 = arith.subf %273, %274 : vector<8x1xf32>
    %cst_82 = arith.constant 9.99999974E-6 : f32
    %276 = vector.broadcast %cst_82 : f32 to vector<8x1xf32>
    %277 = arith.addf %275, %276 : vector<8x1xf32>
    %278 = math.rsqrt %277 : vector<8x1xf32>
    %279 = vector.broadcast %271 : vector<8x1xf32> to vector<8x32xf32>
    %280 = arith.subf %249, %279 : vector<8x32xf32>
    %281 = vector.broadcast %278 : vector<8x1xf32> to vector<8x32xf32>
    %282 = arith.mulf %280, %281 : vector<8x32xf32>
    %283 = vector.broadcast %2 : vector<1x32xf32> to vector<8x32xf32>
    %284 = arith.mulf %282, %283 : vector<8x32xf32>
    %285 = vector.broadcast %6 : vector<1x32xf32> to vector<8x32xf32>
    %286 = arith.addf %284, %285 : vector<8x32xf32>
    %287 = arith.truncf %286 : vector<8x32xf32> to vector<8x32xbf16>
    %cst_83 = arith.constant dense<0.000000e+00> : vector<8x64xf32>
    %288 = tpu.matmul %287, %10, %cst_83 {dimension_numbers = #tpu.dot_dimension_numbers<[1], [0], [0], [1], [0, 0, 1, 1], [], []>} : vector<8x32xbf16>, vector<32x64xbf16>, vector<8x64xf32> -> vector<8x64xf32>
    %289 = vector.broadcast %271 : vector<8x1xf32> to vector<8x32xf32>
    %290 = arith.subf %251, %289 : vector<8x32xf32>
    %291 = vector.broadcast %278 : vector<8x1xf32> to vector<8x32xf32>
    %292 = arith.mulf %290, %291 : vector<8x32xf32>
    %293 = vector.broadcast %3 : vector<1x32xf32> to vector<8x32xf32>
    %294 = arith.mulf %292, %293 : vector<8x32xf32>
    %295 = vector.broadcast %7 : vector<1x32xf32> to vector<8x32xf32>
    %296 = arith.addf %294, %295 : vector<8x32xf32>
    %297 = arith.truncf %296 : vector<8x32xf32> to vector<8x32xbf16>
    %cst_84 = arith.constant dense<0.000000e+00> : vector<8x64xf32>
    %298 = tpu.matmul %297, %11, %cst_84 {dimension_numbers = #tpu.dot_dimension_numbers<[1], [0], [0], [1], [0, 0, 1, 1], [], []>} : vector<8x32xbf16>, vector<32x64xbf16>, vector<8x64xf32> -> vector<8x64xf32>
    %299 = arith.addf %288, %298 : vector<8x64xf32>
    %300 = vector.broadcast %271 : vector<8x1xf32> to vector<8x32xf32>
    %301 = arith.subf %253, %300 : vector<8x32xf32>
    %302 = vector.broadcast %278 : vector<8x1xf32> to vector<8x32xf32>
    %303 = arith.mulf %301, %302 : vector<8x32xf32>
    %304 = vector.broadcast %4 : vector<1x32xf32> to vector<8x32xf32>
    %305 = arith.mulf %303, %304 : vector<8x32xf32>
    %306 = vector.broadcast %8 : vector<1x32xf32> to vector<8x32xf32>
    %307 = arith.addf %305, %306 : vector<8x32xf32>
    %308 = arith.truncf %307 : vector<8x32xf32> to vector<8x32xbf16>
    %cst_85 = arith.constant dense<0.000000e+00> : vector<8x64xf32>
    %309 = tpu.matmul %308, %12, %cst_85 {dimension_numbers = #tpu.dot_dimension_numbers<[1], [0], [0], [1], [0, 0, 1, 1], [], []>} : vector<8x32xbf16>, vector<32x64xbf16>, vector<8x64xf32> -> vector<8x64xf32>
    %310 = arith.addf %299, %309 : vector<8x64xf32>
    %311 = vector.broadcast %271 : vector<8x1xf32> to vector<8x32xf32>
    %312 = arith.subf %255, %311 : vector<8x32xf32>
    %313 = vector.broadcast %278 : vector<8x1xf32> to vector<8x32xf32>
    %314 = arith.mulf %312, %313 : vector<8x32xf32>
    %315 = vector.broadcast %5 : vector<1x32xf32> to vector<8x32xf32>
    %316 = arith.mulf %314, %315 : vector<8x32xf32>
    %317 = vector.broadcast %9 : vector<1x32xf32> to vector<8x32xf32>
    %318 = arith.addf %316, %317 : vector<8x32xf32>
    %319 = arith.truncf %318 : vector<8x32xf32> to vector<8x32xbf16>
    %cst_86 = arith.constant dense<0.000000e+00> : vector<8x64xf32>
    %320 = tpu.matmul %319, %13, %cst_86 {dimension_numbers = #tpu.dot_dimension_numbers<[1], [0], [0], [1], [0, 0, 1, 1], [], []>} : vector<8x32xbf16>, vector<32x64xbf16>, vector<8x64xf32> -> vector<8x64xf32>
    %321 = arith.addf %310, %320 : vector<8x64xf32>
    %322 = arith.truncf %321 : vector<8x64xf32> to vector<8x64xbf16>
    %c0_87 = arith.constant 0 : index
    %c24 = arith.constant 24 : index
    %c0_88 = arith.constant 0 : index
    %323 = vector.load %arg6[%c0_87, %c24, %c0_88] : memref<1x64x64xbf16, #tpu.memory_space<vmem>>, vector<1x8x64xbf16>
    %324 = vector.shape_cast %323 : vector<1x8x64xbf16> to vector<8x64xbf16>
    %325 = vector.shape_cast %322 : vector<8x64xbf16> to vector<1x8x64xbf16>
    tpu.vector_store %arg6[%c0_87, %c24, %c0_88], %325 {strides = array<i32>} : memref<1x64x64xbf16, #tpu.memory_space<vmem>>, vector<1x8x64xbf16>,
    %c0_89 = arith.constant 0 : index
    %c128 = arith.constant 128 : index
    %c0_90 = arith.constant 0 : index
    %326 = tpu.strided_load %arg2[%c0_89, %c128, %c0_90] {strides = array<i32: 1, 2, 1>} : memref<1x256x32xf32, #tpu.memory_space<vmem>>, vector<1x8x32xf32>
    %327 = vector.shape_cast %326 : vector<1x8x32xf32> to vector<8x32xf32>
    %c0_91 = arith.constant 0 : index
    %c144 = arith.constant 144 : index
    %c0_92 = arith.constant 0 : index
    %328 = tpu.strided_load %arg2[%c0_91, %c144, %c0_92] {strides = array<i32: 1, 2, 1>} : memref<1x256x32xf32, #tpu.memory_space<vmem>>, vector<1x8x32xf32>
    %329 = vector.shape_cast %328 : vector<1x8x32xf32> to vector<8x32xf32>
    %c0_93 = arith.constant 0 : index
    %c129 = arith.constant 129 : index
    %c0_94 = arith.constant 0 : index
    %330 = tpu.strided_load %arg2[%c0_93, %c129, %c0_94] {strides = array<i32: 1, 2, 1>} : memref<1x256x32xf32, #tpu.memory_space<vmem>>, vector<1x8x32xf32>
    %331 = vector.shape_cast %330 : vector<1x8x32xf32> to vector<8x32xf32>
    %c0_95 = arith.constant 0 : index
    %c145 = arith.constant 145 : index
    %c0_96 = arith.constant 0 : index
    %332 = tpu.strided_load %arg2[%c0_95, %c145, %c0_96] {strides = array<i32: 1, 2, 1>} : memref<1x256x32xf32, #tpu.memory_space<vmem>>, vector<1x8x32xf32>
    %333 = vector.shape_cast %332 : vector<1x8x32xf32> to vector<8x32xf32>
    %334 = arith.addf %327, %329 : vector<8x32xf32>
    %335 = arith.addf %334, %331 : vector<8x32xf32>
    %336 = arith.addf %335, %333 : vector<8x32xf32>
    %cst_97 = arith.constant dense<0.000000e+00> : vector<8xf32>
    %337 = vector.multi_reduction <add>, %336, %cst_97 [1] : vector<8x32xf32> to vector<8xf32>
    %338 = vector.shape_cast %337 : vector<8xf32> to vector<8x1xf32>
    %339 = arith.mulf %327, %327 : vector<8x32xf32>
    %340 = arith.mulf %329, %329 : vector<8x32xf32>
    %341 = arith.addf %339, %340 : vector<8x32xf32>
    %342 = arith.mulf %331, %331 : vector<8x32xf32>
    %343 = arith.addf %341, %342 : vector<8x32xf32>
    %344 = arith.mulf %333, %333 : vector<8x32xf32>
    %345 = arith.addf %343, %344 : vector<8x32xf32>
    %cst_98 = arith.constant dense<0.000000e+00> : vector<8xf32>
    %346 = vector.multi_reduction <add>, %345, %cst_98 [1] : vector<8x32xf32> to vector<8xf32>
    %347 = vector.shape_cast %346 : vector<8xf32> to vector<8x1xf32>
    %cst_99 = arith.constant 7.812500e-03 : f32
    %348 = vector.broadcast %cst_99 : f32 to vector<8x1xf32>
    %349 = arith.mulf %338, %348 : vector<8x1xf32>
    %cst_100 = arith.constant 7.812500e-03 : f32
    %350 = vector.broadcast %cst_100 : f32 to vector<8x1xf32>
    %351 = arith.mulf %347, %350 : vector<8x1xf32>
    %352 = arith.mulf %349, %349 : vector<8x1xf32>
    %353 = arith.subf %351, %352 : vector<8x1xf32>
    %cst_101 = arith.constant 9.99999974E-6 : f32
    %354 = vector.broadcast %cst_101 : f32 to vector<8x1xf32>
    %355 = arith.addf %353, %354 : vector<8x1xf32>
    %356 = math.rsqrt %355 : vector<8x1xf32>
    %357 = vector.broadcast %349 : vector<8x1xf32> to vector<8x32xf32>
    %358 = arith.subf %327, %357 : vector<8x32xf32>
    %359 = vector.broadcast %356 : vector<8x1xf32> to vector<8x32xf32>
    %360 = arith.mulf %358, %359 : vector<8x32xf32>
    %361 = vector.broadcast %2 : vector<1x32xf32> to vector<8x32xf32>
    %362 = arith.mulf %360, %361 : vector<8x32xf32>
    %363 = vector.broadcast %6 : vector<1x32xf32> to vector<8x32xf32>
    %364 = arith.addf %362, %363 : vector<8x32xf32>
    %365 = arith.truncf %364 : vector<8x32xf32> to vector<8x32xbf16>
    %cst_102 = arith.constant dense<0.000000e+00> : vector<8x64xf32>
    %366 = tpu.matmul %365, %10, %cst_102 {dimension_numbers = #tpu.dot_dimension_numbers<[1], [0], [0], [1], [0, 0, 1, 1], [], []>} : vector<8x32xbf16>, vector<32x64xbf16>, vector<8x64xf32> -> vector<8x64xf32>
    %367 = vector.broadcast %349 : vector<8x1xf32> to vector<8x32xf32>
    %368 = arith.subf %329, %367 : vector<8x32xf32>
    %369 = vector.broadcast %356 : vector<8x1xf32> to vector<8x32xf32>
    %370 = arith.mulf %368, %369 : vector<8x32xf32>
    %371 = vector.broadcast %3 : vector<1x32xf32> to vector<8x32xf32>
    %372 = arith.mulf %370, %371 : vector<8x32xf32>
    %373 = vector.broadcast %7 : vector<1x32xf32> to vector<8x32xf32>
    %374 = arith.addf %372, %373 : vector<8x32xf32>
    %375 = arith.truncf %374 : vector<8x32xf32> to vector<8x32xbf16>
    %cst_103 = arith.constant dense<0.000000e+00> : vector<8x64xf32>
    %376 = tpu.matmul %375, %11, %cst_103 {dimension_numbers = #tpu.dot_dimension_numbers<[1], [0], [0], [1], [0, 0, 1, 1], [], []>} : vector<8x32xbf16>, vector<32x64xbf16>, vector<8x64xf32> -> vector<8x64xf32>
    %377 = arith.addf %366, %376 : vector<8x64xf32>
    %378 = vector.broadcast %349 : vector<8x1xf32> to vector<8x32xf32>
    %379 = arith.subf %331, %378 : vector<8x32xf32>
    %380 = vector.broadcast %356 : vector<8x1xf32> to vector<8x32xf32>
    %381 = arith.mulf %379, %380 : vector<8x32xf32>
    %382 = vector.broadcast %4 : vector<1x32xf32> to vector<8x32xf32>
    %383 = arith.mulf %381, %382 : vector<8x32xf32>
    %384 = vector.broadcast %8 : vector<1x32xf32> to vector<8x32xf32>
    %385 = arith.addf %383, %384 : vector<8x32xf32>
    %386 = arith.truncf %385 : vector<8x32xf32> to vector<8x32xbf16>
    %cst_104 = arith.constant dense<0.000000e+00> : vector<8x64xf32>
    %387 = tpu.matmul %386, %12, %cst_104 {dimension_numbers = #tpu.dot_dimension_numbers<[1], [0], [0], [1], [0, 0, 1, 1], [], []>} : vector<8x32xbf16>, vector<32x64xbf16>, vector<8x64xf32> -> vector<8x64xf32>
    %388 = arith.addf %377, %387 : vector<8x64xf32>
    %389 = vector.broadcast %349 : vector<8x1xf32> to vector<8x32xf32>
    %390 = arith.subf %333, %389 : vector<8x32xf32>
    %391 = vector.broadcast %356 : vector<8x1xf32> to vector<8x32xf32>
    %392 = arith.mulf %390, %391 : vector<8x32xf32>
    %393 = vector.broadcast %5 : vector<1x32xf32> to vector<8x32xf32>
    %394 = arith.mulf %392, %393 : vector<8x32xf32>
    %395 = vector.broadcast %9 : vector<1x32xf32> to vector<8x32xf32>
    %396 = arith.addf %394, %395 : vector<8x32xf32>
    %397 = arith.truncf %396 : vector<8x32xf32> to vector<8x32xbf16>
    %cst_105 = arith.constant dense<0.000000e+00> : vector<8x64xf32>
    %398 = tpu.matmul %397, %13, %cst_105 {dimension_numbers = #tpu.dot_dimension_numbers<[1], [0], [0], [1], [0, 0, 1, 1], [], []>} : vector<8x32xbf16>, vector<32x64xbf16>, vector<8x64xf32> -> vector<8x64xf32>
    %399 = arith.addf %388, %398 : vector<8x64xf32>
    %400 = arith.truncf %399 : vector<8x64xf32> to vector<8x64xbf16>
    %c0_106 = arith.constant 0 : index
    %c32_107 = arith.constant 32 : index
    %c0_108 = arith.constant 0 : index
    %401 = vector.load %arg6[%c0_106, %c32_107, %c0_108] : memref<1x64x64xbf16, #tpu.memory_space<vmem>>, vector<1x8x64xbf16>
    %402 = vector.shape_cast %401 : vector<1x8x64xbf16> to vector<8x64xbf16>
    %403 = vector.shape_cast %400 : vector<8x64xbf16> to vector<1x8x64xbf16>
    tpu.vector_store %arg6[%c0_106, %c32_107, %c0_108], %403 {strides = array<i32>} : memref<1x64x64xbf16, #tpu.memory_space<vmem>>, vector<1x8x64xbf16>,
    %c0_109 = arith.constant 0 : index
    %c160 = arith.constant 160 : index
    %c0_110 = arith.constant 0 : index
    %404 = tpu.strided_load %arg2[%c0_109, %c160, %c0_110] {strides = array<i32: 1, 2, 1>} : memref<1x256x32xf32, #tpu.memory_space<vmem>>, vector<1x8x32xf32>
    %405 = vector.shape_cast %404 : vector<1x8x32xf32> to vector<8x32xf32>
    %c0_111 = arith.constant 0 : index
    %c176 = arith.constant 176 : index
    %c0_112 = arith.constant 0 : index
    %406 = tpu.strided_load %arg2[%c0_111, %c176, %c0_112] {strides = array<i32: 1, 2, 1>} : memref<1x256x32xf32, #tpu.memory_space<vmem>>, vector<1x8x32xf32>
    %407 = vector.shape_cast %406 : vector<1x8x32xf32> to vector<8x32xf32>
    %c0_113 = arith.constant 0 : index
    %c161 = arith.constant 161 : index
    %c0_114 = arith.constant 0 : index
    %408 = tpu.strided_load %arg2[%c0_113, %c161, %c0_114] {strides = array<i32: 1, 2, 1>} : memref<1x256x32xf32, #tpu.memory_space<vmem>>, vector<1x8x32xf32>
    %409 = vector.shape_cast %408 : vector<1x8x32xf32> to vector<8x32xf32>
    %c0_115 = arith.constant 0 : index
    %c177 = arith.constant 177 : index
    %c0_116 = arith.constant 0 : index
    %410 = tpu.strided_load %arg2[%c0_115, %c177, %c0_116] {strides = array<i32: 1, 2, 1>} : memref<1x256x32xf32, #tpu.memory_space<vmem>>, vector<1x8x32xf32>
    %411 = vector.shape_cast %410 : vector<1x8x32xf32> to vector<8x32xf32>
    %412 = arith.addf %405, %407 : vector<8x32xf32>
    %413 = arith.addf %412, %409 : vector<8x32xf32>
    %414 = arith.addf %413, %411 : vector<8x32xf32>
    %cst_117 = arith.constant dense<0.000000e+00> : vector<8xf32>
    %415 = vector.multi_reduction <add>, %414, %cst_117 [1] : vector<8x32xf32> to vector<8xf32>
    %416 = vector.shape_cast %415 : vector<8xf32> to vector<8x1xf32>
    %417 = arith.mulf %405, %405 : vector<8x32xf32>
    %418 = arith.mulf %407, %407 : vector<8x32xf32>
    %419 = arith.addf %417, %418 : vector<8x32xf32>
    %420 = arith.mulf %409, %409 : vector<8x32xf32>
    %421 = arith.addf %419, %420 : vector<8x32xf32>
    %422 = arith.mulf %411, %411 : vector<8x32xf32>
    %423 = arith.addf %421, %422 : vector<8x32xf32>
    %cst_118 = arith.constant dense<0.000000e+00> : vector<8xf32>
    %424 = vector.multi_reduction <add>, %423, %cst_118 [1] : vector<8x32xf32> to vector<8xf32>
    %425 = vector.shape_cast %424 : vector<8xf32> to vector<8x1xf32>
    %cst_119 = arith.constant 7.812500e-03 : f32
    %426 = vector.broadcast %cst_119 : f32 to vector<8x1xf32>
    %427 = arith.mulf %416, %426 : vector<8x1xf32>
    %cst_120 = arith.constant 7.812500e-03 : f32
    %428 = vector.broadcast %cst_120 : f32 to vector<8x1xf32>
    %429 = arith.mulf %425, %428 : vector<8x1xf32>
    %430 = arith.mulf %427, %427 : vector<8x1xf32>
    %431 = arith.subf %429, %430 : vector<8x1xf32>
    %cst_121 = arith.constant 9.99999974E-6 : f32
    %432 = vector.broadcast %cst_121 : f32 to vector<8x1xf32>
    %433 = arith.addf %431, %432 : vector<8x1xf32>
    %434 = math.rsqrt %433 : vector<8x1xf32>
    %435 = vector.broadcast %427 : vector<8x1xf32> to vector<8x32xf32>
    %436 = arith.subf %405, %435 : vector<8x32xf32>
    %437 = vector.broadcast %434 : vector<8x1xf32> to vector<8x32xf32>
    %438 = arith.mulf %436, %437 : vector<8x32xf32>
    %439 = vector.broadcast %2 : vector<1x32xf32> to vector<8x32xf32>
    %440 = arith.mulf %438, %439 : vector<8x32xf32>
    %441 = vector.broadcast %6 : vector<1x32xf32> to vector<8x32xf32>
    %442 = arith.addf %440, %441 : vector<8x32xf32>
    %443 = arith.truncf %442 : vector<8x32xf32> to vector<8x32xbf16>
    %cst_122 = arith.constant dense<0.000000e+00> : vector<8x64xf32>
    %444 = tpu.matmul %443, %10, %cst_122 {dimension_numbers = #tpu.dot_dimension_numbers<[1], [0], [0], [1], [0, 0, 1, 1], [], []>} : vector<8x32xbf16>, vector<32x64xbf16>, vector<8x64xf32> -> vector<8x64xf32>
    %445 = vector.broadcast %427 : vector<8x1xf32> to vector<8x32xf32>
    %446 = arith.subf %407, %445 : vector<8x32xf32>
    %447 = vector.broadcast %434 : vector<8x1xf32> to vector<8x32xf32>
    %448 = arith.mulf %446, %447 : vector<8x32xf32>
    %449 = vector.broadcast %3 : vector<1x32xf32> to vector<8x32xf32>
    %450 = arith.mulf %448, %449 : vector<8x32xf32>
    %451 = vector.broadcast %7 : vector<1x32xf32> to vector<8x32xf32>
    %452 = arith.addf %450, %451 : vector<8x32xf32>
    %453 = arith.truncf %452 : vector<8x32xf32> to vector<8x32xbf16>
    %cst_123 = arith.constant dense<0.000000e+00> : vector<8x64xf32>
    %454 = tpu.matmul %453, %11, %cst_123 {dimension_numbers = #tpu.dot_dimension_numbers<[1], [0], [0], [1], [0, 0, 1, 1], [], []>} : vector<8x32xbf16>, vector<32x64xbf16>, vector<8x64xf32> -> vector<8x64xf32>
    %455 = arith.addf %444, %454 : vector<8x64xf32>
    %456 = vector.broadcast %427 : vector<8x1xf32> to vector<8x32xf32>
    %457 = arith.subf %409, %456 : vector<8x32xf32>
    %458 = vector.broadcast %434 : vector<8x1xf32> to vector<8x32xf32>
    %459 = arith.mulf %457, %458 : vector<8x32xf32>
    %460 = vector.broadcast %4 : vector<1x32xf32> to vector<8x32xf32>
    %461 = arith.mulf %459, %460 : vector<8x32xf32>
    %462 = vector.broadcast %8 : vector<1x32xf32> to vector<8x32xf32>
    %463 = arith.addf %461, %462 : vector<8x32xf32>
    %464 = arith.truncf %463 : vector<8x32xf32> to vector<8x32xbf16>
    %cst_124 = arith.constant dense<0.000000e+00> : vector<8x64xf32>
    %465 = tpu.matmul %464, %12, %cst_124 {dimension_numbers = #tpu.dot_dimension_numbers<[1], [0], [0], [1], [0, 0, 1, 1], [], []>} : vector<8x32xbf16>, vector<32x64xbf16>, vector<8x64xf32> -> vector<8x64xf32>
    %466 = arith.addf %455, %465 : vector<8x64xf32>
    %467 = vector.broadcast %427 : vector<8x1xf32> to vector<8x32xf32>
    %468 = arith.subf %411, %467 : vector<8x32xf32>
    %469 = vector.broadcast %434 : vector<8x1xf32> to vector<8x32xf32>
    %470 = arith.mulf %468, %469 : vector<8x32xf32>
    %471 = vector.broadcast %5 : vector<1x32xf32> to vector<8x32xf32>
    %472 = arith.mulf %470, %471 : vector<8x32xf32>
    %473 = vector.broadcast %9 : vector<1x32xf32> to vector<8x32xf32>
    %474 = arith.addf %472, %473 : vector<8x32xf32>
    %475 = arith.truncf %474 : vector<8x32xf32> to vector<8x32xbf16>
    %cst_125 = arith.constant dense<0.000000e+00> : vector<8x64xf32>
    %476 = tpu.matmul %475, %13, %cst_125 {dimension_numbers = #tpu.dot_dimension_numbers<[1], [0], [0], [1], [0, 0, 1, 1], [], []>} : vector<8x32xbf16>, vector<32x64xbf16>, vector<8x64xf32> -> vector<8x64xf32>
    %477 = arith.addf %466, %476 : vector<8x64xf32>
    %478 = arith.truncf %477 : vector<8x64xf32> to vector<8x64xbf16>
    %c0_126 = arith.constant 0 : index
    %c40 = arith.constant 40 : index
    %c0_127 = arith.constant 0 : index
    %479 = vector.load %arg6[%c0_126, %c40, %c0_127] : memref<1x64x64xbf16, #tpu.memory_space<vmem>>, vector<1x8x64xbf16>
    %480 = vector.shape_cast %479 : vector<1x8x64xbf16> to vector<8x64xbf16>
    %481 = vector.shape_cast %478 : vector<8x64xbf16> to vector<1x8x64xbf16>
    tpu.vector_store %arg6[%c0_126, %c40, %c0_127], %481 {strides = array<i32>} : memref<1x64x64xbf16, #tpu.memory_space<vmem>>, vector<1x8x64xbf16>,
    %c0_128 = arith.constant 0 : index
    %c192 = arith.constant 192 : index
    %c0_129 = arith.constant 0 : index
    %482 = tpu.strided_load %arg2[%c0_128, %c192, %c0_129] {strides = array<i32: 1, 2, 1>} : memref<1x256x32xf32, #tpu.memory_space<vmem>>, vector<1x8x32xf32>
    %483 = vector.shape_cast %482 : vector<1x8x32xf32> to vector<8x32xf32>
    %c0_130 = arith.constant 0 : index
    %c208 = arith.constant 208 : index
    %c0_131 = arith.constant 0 : index
    %484 = tpu.strided_load %arg2[%c0_130, %c208, %c0_131] {strides = array<i32: 1, 2, 1>} : memref<1x256x32xf32, #tpu.memory_space<vmem>>, vector<1x8x32xf32>
    %485 = vector.shape_cast %484 : vector<1x8x32xf32> to vector<8x32xf32>
    %c0_132 = arith.constant 0 : index
    %c193 = arith.constant 193 : index
    %c0_133 = arith.constant 0 : index
    %486 = tpu.strided_load %arg2[%c0_132, %c193, %c0_133] {strides = array<i32: 1, 2, 1>} : memref<1x256x32xf32, #tpu.memory_space<vmem>>, vector<1x8x32xf32>
    %487 = vector.shape_cast %486 : vector<1x8x32xf32> to vector<8x32xf32>
    %c0_134 = arith.constant 0 : index
    %c209 = arith.constant 209 : index
    %c0_135 = arith.constant 0 : index
    %488 = tpu.strided_load %arg2[%c0_134, %c209, %c0_135] {strides = array<i32: 1, 2, 1>} : memref<1x256x32xf32, #tpu.memory_space<vmem>>, vector<1x8x32xf32>
    %489 = vector.shape_cast %488 : vector<1x8x32xf32> to vector<8x32xf32>
    %490 = arith.addf %483, %485 : vector<8x32xf32>
    %491 = arith.addf %490, %487 : vector<8x32xf32>
    %492 = arith.addf %491, %489 : vector<8x32xf32>
    %cst_136 = arith.constant dense<0.000000e+00> : vector<8xf32>
    %493 = vector.multi_reduction <add>, %492, %cst_136 [1] : vector<8x32xf32> to vector<8xf32>
    %494 = vector.shape_cast %493 : vector<8xf32> to vector<8x1xf32>
    %495 = arith.mulf %483, %483 : vector<8x32xf32>
    %496 = arith.mulf %485, %485 : vector<8x32xf32>
    %497 = arith.addf %495, %496 : vector<8x32xf32>
    %498 = arith.mulf %487, %487 : vector<8x32xf32>
    %499 = arith.addf %497, %498 : vector<8x32xf32>
    %500 = arith.mulf %489, %489 : vector<8x32xf32>
    %501 = arith.addf %499, %500 : vector<8x32xf32>
    %cst_137 = arith.constant dense<0.000000e+00> : vector<8xf32>
    %502 = vector.multi_reduction <add>, %501, %cst_137 [1] : vector<8x32xf32> to vector<8xf32>
    %503 = vector.shape_cast %502 : vector<8xf32> to vector<8x1xf32>
    %cst_138 = arith.constant 7.812500e-03 : f32
    %504 = vector.broadcast %cst_138 : f32 to vector<8x1xf32>
    %505 = arith.mulf %494, %504 : vector<8x1xf32>
    %cst_139 = arith.constant 7.812500e-03 : f32
    %506 = vector.broadcast %cst_139 : f32 to vector<8x1xf32>
    %507 = arith.mulf %503, %506 : vector<8x1xf32>
    %508 = arith.mulf %505, %505 : vector<8x1xf32>
    %509 = arith.subf %507, %508 : vector<8x1xf32>
    %cst_140 = arith.constant 9.99999974E-6 : f32
    %510 = vector.broadcast %cst_140 : f32 to vector<8x1xf32>
    %511 = arith.addf %509, %510 : vector<8x1xf32>
    %512 = math.rsqrt %511 : vector<8x1xf32>
    %513 = vector.broadcast %505 : vector<8x1xf32> to vector<8x32xf32>
    %514 = arith.subf %483, %513 : vector<8x32xf32>
    %515 = vector.broadcast %512 : vector<8x1xf32> to vector<8x32xf32>
    %516 = arith.mulf %514, %515 : vector<8x32xf32>
    %517 = vector.broadcast %2 : vector<1x32xf32> to vector<8x32xf32>
    %518 = arith.mulf %516, %517 : vector<8x32xf32>
    %519 = vector.broadcast %6 : vector<1x32xf32> to vector<8x32xf32>
    %520 = arith.addf %518, %519 : vector<8x32xf32>
    %521 = arith.truncf %520 : vector<8x32xf32> to vector<8x32xbf16>
    %cst_141 = arith.constant dense<0.000000e+00> : vector<8x64xf32>
    %522 = tpu.matmul %521, %10, %cst_141 {dimension_numbers = #tpu.dot_dimension_numbers<[1], [0], [0], [1], [0, 0, 1, 1], [], []>} : vector<8x32xbf16>, vector<32x64xbf16>, vector<8x64xf32> -> vector<8x64xf32>
    %523 = vector.broadcast %505 : vector<8x1xf32> to vector<8x32xf32>
    %524 = arith.subf %485, %523 : vector<8x32xf32>
    %525 = vector.broadcast %512 : vector<8x1xf32> to vector<8x32xf32>
    %526 = arith.mulf %524, %525 : vector<8x32xf32>
    %527 = vector.broadcast %3 : vector<1x32xf32> to vector<8x32xf32>
    %528 = arith.mulf %526, %527 : vector<8x32xf32>
    %529 = vector.broadcast %7 : vector<1x32xf32> to vector<8x32xf32>
    %530 = arith.addf %528, %529 : vector<8x32xf32>
    %531 = arith.truncf %530 : vector<8x32xf32> to vector<8x32xbf16>
    %cst_142 = arith.constant dense<0.000000e+00> : vector<8x64xf32>
    %532 = tpu.matmul %531, %11, %cst_142 {dimension_numbers = #tpu.dot_dimension_numbers<[1], [0], [0], [1], [0, 0, 1, 1], [], []>} : vector<8x32xbf16>, vector<32x64xbf16>, vector<8x64xf32> -> vector<8x64xf32>
    %533 = arith.addf %522, %532 : vector<8x64xf32>
    %534 = vector.broadcast %505 : vector<8x1xf32> to vector<8x32xf32>
    %535 = arith.subf %487, %534 : vector<8x32xf32>
    %536 = vector.broadcast %512 : vector<8x1xf32> to vector<8x32xf32>
    %537 = arith.mulf %535, %536 : vector<8x32xf32>
    %538 = vector.broadcast %4 : vector<1x32xf32> to vector<8x32xf32>
    %539 = arith.mulf %537, %538 : vector<8x32xf32>
    %540 = vector.broadcast %8 : vector<1x32xf32> to vector<8x32xf32>
    %541 = arith.addf %539, %540 : vector<8x32xf32>
    %542 = arith.truncf %541 : vector<8x32xf32> to vector<8x32xbf16>
    %cst_143 = arith.constant dense<0.000000e+00> : vector<8x64xf32>
    %543 = tpu.matmul %542, %12, %cst_143 {dimension_numbers = #tpu.dot_dimension_numbers<[1], [0], [0], [1], [0, 0, 1, 1], [], []>} : vector<8x32xbf16>, vector<32x64xbf16>, vector<8x64xf32> -> vector<8x64xf32>
    %544 = arith.addf %533, %543 : vector<8x64xf32>
    %545 = vector.broadcast %505 : vector<8x1xf32> to vector<8x32xf32>
    %546 = arith.subf %489, %545 : vector<8x32xf32>
    %547 = vector.broadcast %512 : vector<8x1xf32> to vector<8x32xf32>
    %548 = arith.mulf %546, %547 : vector<8x32xf32>
    %549 = vector.broadcast %5 : vector<1x32xf32> to vector<8x32xf32>
    %550 = arith.mulf %548, %549 : vector<8x32xf32>
    %551 = vector.broadcast %9 : vector<1x32xf32> to vector<8x32xf32>
    %552 = arith.addf %550, %551 : vector<8x32xf32>
    %553 = arith.truncf %552 : vector<8x32xf32> to vector<8x32xbf16>
    %cst_144 = arith.constant dense<0.000000e+00> : vector<8x64xf32>
    %554 = tpu.matmul %553, %13, %cst_144 {dimension_numbers = #tpu.dot_dimension_numbers<[1], [0], [0], [1], [0, 0, 1, 1], [], []>} : vector<8x32xbf16>, vector<32x64xbf16>, vector<8x64xf32> -> vector<8x64xf32>
    %555 = arith.addf %544, %554 : vector<8x64xf32>
    %556 = arith.truncf %555 : vector<8x64xf32> to vector<8x64xbf16>
    %c0_145 = arith.constant 0 : index
    %c48_146 = arith.constant 48 : index
    %c0_147 = arith.constant 0 : index
    %557 = vector.load %arg6[%c0_145, %c48_146, %c0_147] : memref<1x64x64xbf16, #tpu.memory_space<vmem>>, vector<1x8x64xbf16>
    %558 = vector.shape_cast %557 : vector<1x8x64xbf16> to vector<8x64xbf16>
    %559 = vector.shape_cast %556 : vector<8x64xbf16> to vector<1x8x64xbf16>
    tpu.vector_store %arg6[%c0_145, %c48_146, %c0_147], %559 {strides = array<i32>} : memref<1x64x64xbf16, #tpu.memory_space<vmem>>, vector<1x8x64xbf16>,
    %c0_148 = arith.constant 0 : index
    %c224 = arith.constant 224 : index
    %c0_149 = arith.constant 0 : index
    %560 = tpu.strided_load %arg2[%c0_148, %c224, %c0_149] {strides = array<i32: 1, 2, 1>} : memref<1x256x32xf32, #tpu.memory_space<vmem>>, vector<1x8x32xf32>
    %561 = vector.shape_cast %560 : vector<1x8x32xf32> to vector<8x32xf32>
    %c0_150 = arith.constant 0 : index
    %c240 = arith.constant 240 : index
    %c0_151 = arith.constant 0 : index
    %562 = tpu.strided_load %arg2[%c0_150, %c240, %c0_151] {strides = array<i32: 1, 2, 1>} : memref<1x256x32xf32, #tpu.memory_space<vmem>>, vector<1x8x32xf32>
    %563 = vector.shape_cast %562 : vector<1x8x32xf32> to vector<8x32xf32>
    %c0_152 = arith.constant 0 : index
    %c225 = arith.constant 225 : index
    %c0_153 = arith.constant 0 : index
    %564 = tpu.strided_load %arg2[%c0_152, %c225, %c0_153] {strides = array<i32: 1, 2, 1>} : memref<1x256x32xf32, #tpu.memory_space<vmem>>, vector<1x8x32xf32>
    %565 = vector.shape_cast %564 : vector<1x8x32xf32> to vector<8x32xf32>
    %c0_154 = arith.constant 0 : index
    %c241 = arith.constant 241 : index
    %c0_155 = arith.constant 0 : index
    %566 = tpu.strided_load %arg2[%c0_154, %c241, %c0_155] {strides = array<i32: 1, 2, 1>} : memref<1x256x32xf32, #tpu.memory_space<vmem>>, vector<1x8x32xf32>
    %567 = vector.shape_cast %566 : vector<1x8x32xf32> to vector<8x32xf32>
    %568 = arith.addf %561, %563 : vector<8x32xf32>
    %569 = arith.addf %568, %565 : vector<8x32xf32>
    %570 = arith.addf %569, %567 : vector<8x32xf32>
    %cst_156 = arith.constant dense<0.000000e+00> : vector<8xf32>
    %571 = vector.multi_reduction <add>, %570, %cst_156 [1] : vector<8x32xf32> to vector<8xf32>
    %572 = vector.shape_cast %571 : vector<8xf32> to vector<8x1xf32>
    %573 = arith.mulf %561, %561 : vector<8x32xf32>
    %574 = arith.mulf %563, %563 : vector<8x32xf32>
    %575 = arith.addf %573, %574 : vector<8x32xf32>
    %576 = arith.mulf %565, %565 : vector<8x32xf32>
    %577 = arith.addf %575, %576 : vector<8x32xf32>
    %578 = arith.mulf %567, %567 : vector<8x32xf32>
    %579 = arith.addf %577, %578 : vector<8x32xf32>
    %cst_157 = arith.constant dense<0.000000e+00> : vector<8xf32>
    %580 = vector.multi_reduction <add>, %579, %cst_157 [1] : vector<8x32xf32> to vector<8xf32>
    %581 = vector.shape_cast %580 : vector<8xf32> to vector<8x1xf32>
    %cst_158 = arith.constant 7.812500e-03 : f32
    %582 = vector.broadcast %cst_158 : f32 to vector<8x1xf32>
    %583 = arith.mulf %572, %582 : vector<8x1xf32>
    %cst_159 = arith.constant 7.812500e-03 : f32
    %584 = vector.broadcast %cst_159 : f32 to vector<8x1xf32>
    %585 = arith.mulf %581, %584 : vector<8x1xf32>
    %586 = arith.mulf %583, %583 : vector<8x1xf32>
    %587 = arith.subf %585, %586 : vector<8x1xf32>
    %cst_160 = arith.constant 9.99999974E-6 : f32
    %588 = vector.broadcast %cst_160 : f32 to vector<8x1xf32>
    %589 = arith.addf %587, %588 : vector<8x1xf32>
    %590 = math.rsqrt %589 : vector<8x1xf32>
    %591 = vector.broadcast %583 : vector<8x1xf32> to vector<8x32xf32>
    %592 = arith.subf %561, %591 : vector<8x32xf32>
    %593 = vector.broadcast %590 : vector<8x1xf32> to vector<8x32xf32>
    %594 = arith.mulf %592, %593 : vector<8x32xf32>
    %595 = vector.broadcast %2 : vector<1x32xf32> to vector<8x32xf32>
    %596 = arith.mulf %594, %595 : vector<8x32xf32>
    %597 = vector.broadcast %6 : vector<1x32xf32> to vector<8x32xf32>
    %598 = arith.addf %596, %597 : vector<8x32xf32>
    %599 = arith.truncf %598 : vector<8x32xf32> to vector<8x32xbf16>
    %cst_161 = arith.constant dense<0.000000e+00> : vector<8x64xf32>
    %600 = tpu.matmul %599, %10, %cst_161 {dimension_numbers = #tpu.dot_dimension_numbers<[1], [0], [0], [1], [0, 0, 1, 1], [], []>} : vector<8x32xbf16>, vector<32x64xbf16>, vector<8x64xf32> -> vector<8x64xf32>
    %601 = vector.broadcast %583 : vector<8x1xf32> to vector<8x32xf32>
    %602 = arith.subf %563, %601 : vector<8x32xf32>
    %603 = vector.broadcast %590 : vector<8x1xf32> to vector<8x32xf32>
    %604 = arith.mulf %602, %603 : vector<8x32xf32>
    %605 = vector.broadcast %3 : vector<1x32xf32> to vector<8x32xf32>
    %606 = arith.mulf %604, %605 : vector<8x32xf32>
    %607 = vector.broadcast %7 : vector<1x32xf32> to vector<8x32xf32>
    %608 = arith.addf %606, %607 : vector<8x32xf32>
    %609 = arith.truncf %608 : vector<8x32xf32> to vector<8x32xbf16>
    %cst_162 = arith.constant dense<0.000000e+00> : vector<8x64xf32>
    %610 = tpu.matmul %609, %11, %cst_162 {dimension_numbers = #tpu.dot_dimension_numbers<[1], [0], [0], [1], [0, 0, 1, 1], [], []>} : vector<8x32xbf16>, vector<32x64xbf16>, vector<8x64xf32> -> vector<8x64xf32>
    %611 = arith.addf %600, %610 : vector<8x64xf32>
    %612 = vector.broadcast %583 : vector<8x1xf32> to vector<8x32xf32>
    %613 = arith.subf %565, %612 : vector<8x32xf32>
    %614 = vector.broadcast %590 : vector<8x1xf32> to vector<8x32xf32>
    %615 = arith.mulf %613, %614 : vector<8x32xf32>
    %616 = vector.broadcast %4 : vector<1x32xf32> to vector<8x32xf32>
    %617 = arith.mulf %615, %616 : vector<8x32xf32>
    %618 = vector.broadcast %8 : vector<1x32xf32> to vector<8x32xf32>
    %619 = arith.addf %617, %618 : vector<8x32xf32>
    %620 = arith.truncf %619 : vector<8x32xf32> to vector<8x32xbf16>
    %cst_163 = arith.constant dense<0.000000e+00> : vector<8x64xf32>
    %621 = tpu.matmul %620, %12, %cst_163 {dimension_numbers = #tpu.dot_dimension_numbers<[1], [0], [0], [1], [0, 0, 1, 1], [], []>} : vector<8x32xbf16>, vector<32x64xbf16>, vector<8x64xf32> -> vector<8x64xf32>
    %622 = arith.addf %611, %621 : vector<8x64xf32>
    %623 = vector.broadcast %583 : vector<8x1xf32> to vector<8x32xf32>
    %624 = arith.subf %567, %623 : vector<8x32xf32>
    %625 = vector.broadcast %590 : vector<8x1xf32> to vector<8x32xf32>
    %626 = arith.mulf %624, %625 : vector<8x32xf32>
    %627 = vector.broadcast %5 : vector<1x32xf32> to vector<8x32xf32>
    %628 = arith.mulf %626, %627 : vector<8x32xf32>
    %629 = vector.broadcast %9 : vector<1x32xf32> to vector<8x32xf32>
    %630 = arith.addf %628, %629 : vector<8x32xf32>
    %631 = arith.truncf %630 : vector<8x32xf32> to vector<8x32xbf16>
    %cst_164 = arith.constant dense<0.000000e+00> : vector<8x64xf32>
    %632 = tpu.matmul %631, %13, %cst_164 {dimension_numbers = #tpu.dot_dimension_numbers<[1], [0], [0], [1], [0, 0, 1, 1], [], []>} : vector<8x32xbf16>, vector<32x64xbf16>, vector<8x64xf32> -> vector<8x64xf32>
    %633 = arith.addf %622, %632 : vector<8x64xf32>
    %634 = arith.truncf %633 : vector<8x64xf32> to vector<8x64xbf16>
    %c0_165 = arith.constant 0 : index
    %c56 = arith.constant 56 : index
    %c0_166 = arith.constant 0 : index
    %635 = vector.load %arg6[%c0_165, %c56, %c0_166] : memref<1x64x64xbf16, #tpu.memory_space<vmem>>, vector<1x8x64xbf16>
    %636 = vector.shape_cast %635 : vector<1x8x64xbf16> to vector<8x64xbf16>
    %637 = vector.shape_cast %634 : vector<8x64xbf16> to vector<1x8x64xbf16>
    tpu.vector_store %arg6[%c0_165, %c56, %c0_166], %637 {strides = array<i32>} : memref<1x64x64xbf16, #tpu.memory_space<vmem>>, vector<1x8x64xbf16>,
    return
  }
  func.func @transform_0(%arg0: i32, %arg1: i32) -> (i32, i32, i32) {
    %c0_i32 = arith.constant 0 : i32
    %c0_i32_0 = arith.constant 0 : i32
    return %arg0, %arg1, %c0_i32 : i32, i32, i32
  }
  func.func @transform_1(%arg0: i32, %arg1: i32) -> (i32, i32) {
    %c0_i32 = arith.constant 0 : i32
    %c0_i32_0 = arith.constant 0 : i32
    %c0_i32_1 = arith.constant 0 : i32
    return %c0_i32, %c0_i32_0 : i32, i32
  }
  func.func @transform_2(%arg0: i32, %arg1: i32) -> (i32, i32) {
    %c0_i32 = arith.constant 0 : i32
    %c0_i32_0 = arith.constant 0 : i32
    %c0_i32_1 = arith.constant 0 : i32
    return %c0_i32, %c0_i32_0 : i32, i32
  }
  func.func @transform_3(%arg0: i32, %arg1: i32) -> (i32, i32) {
    %c0_i32 = arith.constant 0 : i32
    %c0_i32_0 = arith.constant 0 : i32
    %c0_i32_1 = arith.constant 0 : i32
    return %c0_i32, %c0_i32_0 : i32, i32
  }
  func.func @transform_4(%arg0: i32, %arg1: i32) -> (i32, i32, i32) {
    %c0_i32 = arith.constant 0 : i32
    %c0_i32_0 = arith.constant 0 : i32
    return %arg0, %arg1, %c0_i32 : i32, i32, i32
  }
}

module attributes {stable_mosaic.version = 11 : i64} {
  func.func @_ln_reduce_kernel(%arg0: i32, %arg1: memref<128x128xbf16, #tpu.memory_space<vmem>>, %arg2: memref<1x128xf32, #tpu.memory_space<vmem>>, %arg3: memref<1x128xf32, #tpu.memory_space<vmem>>, %arg4: memref<128x64xbf16, #tpu.memory_space<vmem>>, %arg5: memref<128x64xbf16, #tpu.memory_space<vmem>>) attributes {dimension_semantics = [#tpu.dimension_semantics<parallel>], iteration_bounds = array<i64: 1>, scalar_prefetch = 0 : i64, scratch_operands = 0 : i64, tpu.core_type = #tpu.core_type<tc>, window_params = [{transform_indices = @transform_0, window_bounds = array<i64: 128, 128>}, {pipeline_mode = #tpu.pipeline_mode<synchronous>, transform_indices = @transform_1, window_bounds = array<i64: 1, 128>}, {pipeline_mode = #tpu.pipeline_mode<synchronous>, transform_indices = @transform_2, window_bounds = array<i64: 1, 128>}, {pipeline_mode = #tpu.pipeline_mode<synchronous>, transform_indices = @transform_3, window_bounds = array<i64: 128, 64>}, {transform_indices = @transform_4, window_bounds = array<i64: 128, 64>}]} {
    %c0 = arith.constant 0 : index
    %c0_0 = arith.constant 0 : index
    %0 = vector.load %arg1[%c0, %c0_0] : memref<128x128xbf16, #tpu.memory_space<vmem>>, vector<128x128xbf16>
    %1 = arith.extf %0 : vector<128x128xbf16> to vector<128x128xf32>
    %cst = arith.constant dense<0.000000e+00> : vector<128xf32>
    %2 = vector.multi_reduction <add>, %1, %cst [1] : vector<128x128xf32> to vector<128xf32>
    %3 = vector.shape_cast %2 : vector<128xf32> to vector<128x1xf32>
    %4 = arith.mulf %1, %1 : vector<128x128xf32>
    %cst_1 = arith.constant dense<0.000000e+00> : vector<128xf32>
    %5 = vector.multi_reduction <add>, %4, %cst_1 [1] : vector<128x128xf32> to vector<128xf32>
    %6 = vector.shape_cast %5 : vector<128xf32> to vector<128x1xf32>
    %cst_2 = arith.constant 1.280000e+02 : f32
    %7 = vector.broadcast %cst_2 : f32 to vector<128x1xf32>
    %8 = arith.divf %3, %7 : vector<128x1xf32>
    %cst_3 = arith.constant 1.280000e+02 : f32
    %9 = vector.broadcast %cst_3 : f32 to vector<128x1xf32>
    %10 = arith.divf %6, %9 : vector<128x1xf32>
    %11 = arith.mulf %8, %8 : vector<128x1xf32>
    %12 = arith.subf %10, %11 : vector<128x1xf32>
    %13 = vector.broadcast %8 : vector<128x1xf32> to vector<128x128xf32>
    %14 = arith.subf %1, %13 : vector<128x128xf32>
    %cst_4 = arith.constant 9.99999974E-6 : f32
    %15 = vector.broadcast %cst_4 : f32 to vector<128x1xf32>
    %16 = arith.addf %12, %15 : vector<128x1xf32>
    %17 = math.rsqrt %16 : vector<128x1xf32>
    %18 = vector.broadcast %17 : vector<128x1xf32> to vector<128x128xf32>
    %19 = arith.mulf %14, %18 : vector<128x128xf32>
    %c0_5 = arith.constant 0 : index
    %c0_6 = arith.constant 0 : index
    %20 = vector.load %arg2[%c0_5, %c0_6] : memref<1x128xf32, #tpu.memory_space<vmem>>, vector<1x128xf32>
    %21 = vector.broadcast %20 : vector<1x128xf32> to vector<128x128xf32>
    %22 = arith.mulf %19, %21 : vector<128x128xf32>
    %c0_7 = arith.constant 0 : index
    %c0_8 = arith.constant 0 : index
    %23 = vector.load %arg3[%c0_7, %c0_8] : memref<1x128xf32, #tpu.memory_space<vmem>>, vector<1x128xf32>
    %24 = vector.broadcast %23 : vector<1x128xf32> to vector<128x128xf32>
    %25 = arith.addf %22, %24 : vector<128x128xf32>
    %26 = arith.truncf %25 : vector<128x128xf32> to vector<128x128xbf16>
    %c0_9 = arith.constant 0 : index
    %c0_10 = arith.constant 0 : index
    %27 = vector.load %arg4[%c0_9, %c0_10] : memref<128x64xbf16, #tpu.memory_space<vmem>>, vector<128x64xbf16>
    %cst_11 = arith.constant dense<0.000000e+00> : vector<128x64xf32>
    %28 = tpu.matmul %26, %27, %cst_11 {dimension_numbers = #tpu.dot_dimension_numbers<[1], [0], [0], [1], [0, 0, 1, 1], [], []>} : vector<128x128xbf16>, vector<128x64xbf16>, vector<128x64xf32> -> vector<128x64xf32>
    %29 = arith.truncf %28 : vector<128x64xf32> to vector<128x64xbf16>
    %c0_12 = arith.constant 0 : index
    %c0_13 = arith.constant 0 : index
    %30 = vector.load %arg5[%c0_12, %c0_13] : memref<128x64xbf16, #tpu.memory_space<vmem>>, vector<128x64xbf16>
    tpu.vector_store %arg5[%c0_12, %c0_13], %29 {strides = array<i32>} : memref<128x64xbf16, #tpu.memory_space<vmem>>, vector<128x64xbf16>,
    return
  }
  func.func @transform_0(%arg0: i32) -> (i32, i32) {
    %c0_i32 = arith.constant 0 : i32
    %c0_i32_0 = arith.constant 0 : i32
    return %arg0, %c0_i32 : i32, i32
  }
  func.func @transform_1(%arg0: i32) -> (i32, i32) {
    %c0_i32 = arith.constant 0 : i32
    %c0_i32_0 = arith.constant 0 : i32
    %c0_i32_1 = arith.constant 0 : i32
    return %c0_i32, %c0_i32_0 : i32, i32
  }
  func.func @transform_2(%arg0: i32) -> (i32, i32) {
    %c0_i32 = arith.constant 0 : i32
    %c0_i32_0 = arith.constant 0 : i32
    %c0_i32_1 = arith.constant 0 : i32
    return %c0_i32, %c0_i32_0 : i32, i32
  }
  func.func @transform_3(%arg0: i32) -> (i32, i32) {
    %c0_i32 = arith.constant 0 : i32
    %c0_i32_0 = arith.constant 0 : i32
    %c0_i32_1 = arith.constant 0 : i32
    return %c0_i32, %c0_i32_0 : i32, i32
  }
  func.func @transform_4(%arg0: i32) -> (i32, i32) {
    %c0_i32 = arith.constant 0 : i32
    %c0_i32_0 = arith.constant 0 : i32
    return %arg0, %c0_i32 : i32, i32
  }
}

</mosaic_0001>

<llo_original>
// kernel: tpu_custom_call.1
$region0: #{tpu_custom_call.1}
  #allocation0 [shape = 'u32[]', space=smem, size = 0x4, offset = 0x4, fixed_abs, tag = 'smem constant byte address 0x4 - core index']
  #allocation1 [shape = 'u32[144,128]{1,0:T(1,128)}', space=vmem, size = 0x12000, scoped, tag = 'internal scratch']
  %s0 = inlined_call_operand.vmem [shape: f32[2,256,32], index: 0, kind: input, shape index: {}]
  %s1 = inlined_call_operand.vmem [shape: f32[1,128], index: 1, kind: input, shape index: {}]
  %s2 = inlined_call_operand.vmem [shape: f32[1,128], index: 2, kind: input, shape index: {}]
  %s3 = inlined_call_operand.vmem [shape: bf16[128,64], index: 3, kind: input, shape index: {}]
  %s4 = inlined_call_operand.hbm [shape: bf16[2,64,64], index: 4, kind: output, shape index: {}]
  %s5 = sld [smem:[#allocation0]]
  $region49: #{tpu_custom_call.1} parent=0
    _
  %s7 = ssub.s32 1, %s5
  %s8 = scalar_select 0, %s7, %s5
  $region1: #{tpu_custom_call.1} parent=0
    #allocation2 [shape = 'u8[32768]{0}', space=vmem, size = 0x8000, scoped, tag = 'output window, operand 0']
    #allocation3 [shape = 's32[2]{0}', space=sflag, size = 0x8, scoped, tag = 'scoped memory for tpu_custom_call.1']
    %9 = vsyncpa [#allocation3], 0
    %s10 = scalar_lea.sflag [#allocation3], 1
    %11 = vsyncpa %s10, 0
    loop: start=0, step=1, limit=4
    $region2: #{tpu_custom_call.1} parent=1 // loop_pre_header
      _
    $region3: #{tpu_custom_call.1} parent=1 // loop_header
      %s13 = sphi 0, %s17
      %p14 = scmp.ge.s32.totalorder %s13, 4
      %s20 = sphi 0, %s32
      %s21 = sphi 0, %s28
      %s22 = sphi 0, %s20
      %s23 = sphi 0, %s21
      %s24 = sphi 0, %s22
      %s25 = sphi 0, %s23
      %s37 = sphi 0, %s39
      %s40 = sphi 0, %s37
      %s41 = sphi 0, %s40
      %s57 = sphi 0, %s41
      %s61 = sphi 0, %s61
      %s63 = sphi 0, %s61
      %s64 = sphi 0, %s63
      %s78 = sphi 0, %s64
      %s82 = sphi 0, %s82
      %s84 = sphi 0, %s82
      %s85 = sphi 0, %s84
      %s99 = sphi 0, %s85
      %s103 = sphi 0, %s103
      %s105 = sphi 0, %s103
      %s106 = sphi 0, %s105
      %s120 = sphi 0, %s106
      %s128 = sphi 0, %s130
      %s131 = sphi 0, %s128
      %s132 = sphi 0, %s131
      %s148 = sphi 0, %s132
    $region4: #{tpu_custom_call.1} parent=1 // loop_header_branch
      %16 = sbr.rel (%p14) target = $region8
    $region5: #{tpu_custom_call.1} parent=1 // loop_body
      %s18 = ssub.s32 %s13, 1
      %s19 = ssub.s32 %s13, 2
      %s26 = sadd.s32 1, %s21
      %p27 = scmp.ge.s32.totalorder %s26, 1
      %s28 = scalar_select %p27, 0, %s26
      %s29 = sadd.s32 1, %s20
      %s30 = scalar_select %p27, %s29, %s20
      %p31 = scmp.ge.s32.totalorder %s30, 2
      %s32 = scalar_select %p31, 0, %s30
      %s33 = ssub.s32 %s20, %s32
      %s34 = ssub.s32 %s21, %s28
      %s35 = sor.u32 %s33, %s34
      %p36 = scmp.eq.s32.totalorder %s35, 0
      %s38 = sadd.s32 %s37, 1
      %s39 = scalar_select %p36, %s37, %s38
      %p42 = pneg %p36
      %p43 = scmp.eq.s32.totalorder %s13, 1
      %p44 = por %p42, %p43
      %p45 = scmp.ne.s32.totalorder %s37, %s40
      %p46 = scmp.eq.s32.totalorder %s13, 0
      %p47 = por %p45, %p46
      %p48 = scmp.ne.s32.totalorder %s37, %s40
      %p49 = scmp.eq.s32.totalorder %s18, 1
      %p50 = por %p48, %p49
      %p51 = scmp.ne.s32.totalorder %s40, %s41
      %p52 = scmp.eq.s32.totalorder %s18, 0
      %p53 = por %p51, %p52
      %p54 = scmp.ne.s32.totalorder %s40, %s41
      %p55 = scmp.eq.s32.totalorder %s19, 1
      %p56 = por %p54, %p55
      %p58 = scmp.ne.s32.totalorder %s41, %s57
      %p59 = scmp.eq.s32.totalorder %s19, 0
      %p60 = por %p58, %p59
      %s62 = sadd.s32 %s61, 1
      %p65 = scmp.eq.s32.totalorder %s13, 1
      %p66 = scmp.ne.s32.totalorder %s61, %s63
      %p67 = scmp.eq.s32.totalorder %s13, 0
      %p68 = por %p66, %p67
      %p69 = scmp.ne.s32.totalorder %s61, %s63
      %p70 = scmp.eq.s32.totalorder %s18, 1
      %p71 = por %p69, %p70
      %p72 = scmp.ne.s32.totalorder %s63, %s64
      %p73 = scmp.eq.s32.totalorder %s18, 0
      %p74 = por %p72, %p73
      %p75 = scmp.ne.s32.totalorder %s63, %s64
      %p76 = scmp.eq.s32.totalorder %s19, 1
      %p77 = por %p75, %p76
      %p79 = scmp.ne.s32.totalorder %s64, %s78
      %p80 = scmp.eq.s32.totalorder %s19, 0
      %p81 = por %p79, %p80
      %s83 = sadd.s32 %s82, 1
      %p86 = scmp.eq.s32.totalorder %s13, 1
      %p87 = scmp.ne.s32.totalorder %s82, %s84
      %p88 = scmp.eq.s32.totalorder %s13, 0
      %p89 = por %p87, %p88
      %p90 = scmp.ne.s32.totalorder %s82, %s84
      %p91 = scmp.eq.s32.totalorder %s18, 1
      %p92 = por %p90, %p91
      %p93 = scmp.ne.s32.totalorder %s84, %s85
      %p94 = scmp.eq.s32.totalorder %s18, 0
      %p95 = por %p93, %p94
      %p96 = scmp.ne.s32.totalorder %s84, %s85
      %p97 = scmp.eq.s32.totalorder %s19, 1
      %p98 = por %p96, %p97
      %p100 = scmp.ne.s32.totalorder %s85, %s99
      %p101 = scmp.eq.s32.totalorder %s19, 0
      %p102 = por %p100, %p101
      %s104 = sadd.s32 %s103, 1
      %p107 = scmp.eq.s32.totalorder %s13, 1
      %p108 = scmp.ne.s32.totalorder %s103, %s105
      %p109 = scmp.eq.s32.totalorder %s13, 0
      %p110 = por %p108, %p109
      %p111 = scmp.ne.s32.totalorder %s103, %s105
      %p112 = scmp.eq.s32.totalorder %s18, 1
      %p113 = por %p111, %p112
      %p114 = scmp.ne.s32.totalorder %s105, %s106
      %p115 = scmp.eq.s32.totalorder %s18, 0
      %p116 = por %p114, %p115
      %p117 = scmp.ne.s32.totalorder %s105, %s106
      %p118 = scmp.eq.s32.totalorder %s19, 1
      %p119 = por %p117, %p118
      %p121 = scmp.ne.s32.totalorder %s106, %s120
      %p122 = scmp.eq.s32.totalorder %s19, 0
      %p123 = por %p121, %p122
      %s124 = ssub.s32 %s20, %s32
      %s125 = ssub.s32 %s21, %s28
      %s126 = sor.u32 %s124, %s125
      %p127 = scmp.eq.s32.totalorder %s126, 0
      %s129 = sadd.s32 %s128, 1
      %s130 = scalar_select %p127, %s128, %s129
      %p133 = pneg %p127
      %p134 = scmp.eq.s32.totalorder %s13, 1
      %p135 = por %p133, %p134
      %p136 = scmp.ne.s32.totalorder %s128, %s131
      %p137 = scmp.eq.s32.totalorder %s13, 0
      %p138 = por %p136, %p137
      %p139 = scmp.ne.s32.totalorder %s128, %s131
      %p140 = scmp.eq.s32.totalorder %s18, 1
      %p141 = por %p139, %p140
      %p142 = scmp.ne.s32.totalorder %s131, %s132
      %p143 = scmp.eq.s32.totalorder %s18, 0
      %p144 = por %p142, %p143
      %p145 = scmp.ne.s32.totalorder %s131, %s132
      %p146 = scmp.eq.s32.totalorder %s19, 1
      %p147 = por %p145, %p146
      %p149 = scmp.ne.s32.totalorder %s132, %s148
      %p150 = scmp.eq.s32.totalorder %s19, 0
      %p151 = por %p149, %p150
      %p152 = scmp.le.s32.totalorder 1, %s13
      %p153 = scmp.lt.s32.totalorder %s13, 3
      %p154 = pnand %p152, %p153
      %p155 = pneg %p154
      // Predicated region
      $region9: #{tpu_custom_call.1} parent=5 // pred_check
        _
      $region10: #{tpu_custom_call.1} parent=5 // pred_check_branch
        %157 = sbr.rel (%p154) target = $region12
      $region11: #{tpu_custom_call.1} parent=5 // pred_region
        %s158 = ssub.s32 %s13, 1
        // Predicated region
        $region13: #{tpu_custom_call.1} parent=11 // pred_check
          %p159 = pneg %p74
        $region14: #{tpu_custom_call.1} parent=11 // pred_check_branch
          %161 = sbr.rel (%p159) target = $region16
        $region15: #{tpu_custom_call.1} parent=11 // pred_region
          _
        $region16: #{tpu_custom_call.1} parent=11 // pred_fallthru
          _
        // Predicated region
        $region17: #{tpu_custom_call.1} parent=11 // pred_check
          %p162 = pneg %p95
        $region18: #{tpu_custom_call.1} parent=11 // pred_check_branch
          %164 = sbr.rel (%p162) target = $region20
        $region19: #{tpu_custom_call.1} parent=11 // pred_region
          _
        $region20: #{tpu_custom_call.1} parent=11 // pred_fallthru
          _
        // Predicated region
        $region21: #{tpu_custom_call.1} parent=11 // pred_check
          %p165 = pneg %p116
        $region22: #{tpu_custom_call.1} parent=11 // pred_check_branch
          %167 = sbr.rel (%p165) target = $region24
        $region23: #{tpu_custom_call.1} parent=11 // pred_region
          _
        $region24: #{tpu_custom_call.1} parent=11 // pred_fallthru
          _
      $region12: #{tpu_custom_call.1} parent=5 // pred_fallthru
        _
      %p168 = scmp.lt.s32.totalorder %s13, 2
      // Predicated region
      $region25: #{tpu_custom_call.1} parent=5 // pred_check
        %p169 = pneg %p168
      $region26: #{tpu_custom_call.1} parent=5 // pred_check_branch
        %171 = sbr.rel (%p169) target = $region28
      $region27: #{tpu_custom_call.1} parent=5 // pred_region
        // Predicated region
        $region29: #{tpu_custom_call.1} parent=27 // pred_check
          %p172 = pneg %p47
        $region30: #{tpu_custom_call.1} parent=27 // pred_check_branch
          %174 = sbr.rel (%p172) target = $region32
        $region31: #{tpu_custom_call.1} parent=27 // pred_region
          %s175 = smul.u32 32, %s21
          %p176 = scmp.lt.s32.totalorder %s20, 1
          %s177 = scalar_select %p176, %s20, 1
          %p178 = scmp.lt.s32.totalorder %s175, 31
          %s179 = scalar_select %p178, %s175, 31
          %s180 = smul.addr %s177, 32
          %s181 = sadd.s32 %s179, %s180
          %s182 = smul.addr %s181, 8
          %s183 = scalar_lea.vmem %s0, %s182
          %s184 = smul.u32 32, %s21
        $region32: #{tpu_custom_call.1} parent=27 // pred_fallthru
          _
      $region28: #{tpu_custom_call.1} parent=5 // pred_fallthru
        _
      %p185 = scmp.le.s32.totalorder 1, %s13
      %p186 = scmp.lt.s32.totalorder %s13, 3
      %p187 = pnand %p185, %p186
      %p188 = pneg %p187
      // Predicated region
      $region33: #{tpu_custom_call.1} parent=5 // pred_check
        _
      $region34: #{tpu_custom_call.1} parent=5 // pred_check_branch
        %190 = sbr.rel (%p187) target = $region36
      $region35: #{tpu_custom_call.1} parent=5 // pred_region
        %s191 = ssub.s32 %s13, 1
        %s192 = smul.u32 32, %s23
        %p193 = scmp.lt.s32.totalorder %s22, 1
        %s194 = scalar_select %p193, %s22, 1
        %p195 = scmp.lt.s32.totalorder %s192, 31
        %s196 = scalar_select %p195, %s192, 31
        %s197 = smul.addr %s194, 32
        %s198 = sadd.s32 %s196, %s197
        %s199 = smul.addr %s198, 8
        %s200 = scalar_lea.vmem %s0, %s199
        %p201 = pneg %p53
        %p202 = pneg %p50
        %p203 = pneg %p74
        %p204 = pneg %p71
        %p205 = pneg %p95
        %p206 = pneg %p92
        %p207 = pneg %p116
        %p208 = pneg %p113
        %p209 = pneg %p144
        %p210 = pneg %p141
        %s211 = sand.u32 %s131, 1
        %s212 = scalar_lea.sflag [#allocation3], %s211
        %s213 = sand.u32 %s131, 1
        %s214 = smul.addr %s213, 32
        %s215 = scalar_lea.vmem [#allocation2], %s214
        %s216 = smul.u32 32, %s23
        %p217 = scmp.lt.s32.totalorder %s22, 1
        %s218 = scalar_select %p217, %s22, 1
        %p219 = scmp.lt.s32.totalorder %s216, 31
        %s220 = scalar_select %p219, %s216, 31
        %s221 = smul.addr %s218, 32
        %s222 = sadd.s32 %s220, %s221
        %s223 = smul.addr %s222, 8
        %s224 = scalar_lea.vmem %s0, %s223
        %s225 = smul.u32 32, %s23
        %s226 = smul.u32 8, %s23
        %v228 = vld [vmem:[%s1] sm:$0x1]
        %v229 = vld [vmem:[%s2] sm:$0x1]
        %v230 = vld [vmem:[%s3] sm:$0xf]
        %v231 = vld [vmem:[%s3 + $0x4] sm:$0xf]
        %v232 = vld [vmem:[%s3 + $0x8] sm:$0xf]
        %v233 = vld [vmem:[%s3 + $0xc] sm:$0xf]
        %v234 = vld [vmem:[%s3 + $0x10] sm:$0xf]
        %v235 = vld [vmem:[%s3 + $0x14] sm:$0xf]
        %v236 = vld [vmem:[%s3 + $0x18] sm:$0xf]
        %v237 = vld [vmem:[%s3 + $0x1c] sm:$0xf]
        %v238 = vld [vmem:[%s3 + $0x20] sm:$0xf]
        %v239 = vld [vmem:[%s3 + $0x24] sm:$0xf]
        %v240 = vld [vmem:[%s3 + $0x28] sm:$0xf]
        %v241 = vld [vmem:[%s3 + $0x2c] sm:$0xf]
        %v242 = vld [vmem:[%s3 + $0x30] sm:$0xf]
        %v243 = vld [vmem:[%s3 + $0x34] sm:$0xf]
        %v244 = vld [vmem:[%s3 + $0x38] sm:$0xf]
        %v245 = vld [vmem:[%s3 + $0x3c] sm:$0xf]
        %v246 = vld [vmem:[%s224] ss:$2 sm:$0xff]
        %s247 = scalar_lea.vmem %s224, 16
        %v248 = vld [vmem:[%s247] ss:$2 sm:$0xff]
        %s249 = scalar_lea.vmem %s224, 1
        %v250 = vld [vmem:[%s249] ss:$2 sm:$0xff]
        %s251 = scalar_lea.vmem %s224, 17
        %v252 = vld [vmem:[%s251] ss:$2 sm:$0xff]
        %v253 = vadd.f32 %v246, %v248
        %v254 = vadd.f32 %v253, %v250
        %v255 = vadd.f32 %v254, %v252
        %vm256 = vcmask 261120
        %v257 = vsel %vm256, %v255, 0.0
        %258 = vadd.xlane.f32.xlu0 %v257
        %v259 = vpop.xlane.xlu0 %258
        %v260 = vmul.f32 %v246, %v246
        %v261 = vmul.f32 %v248, %v248
        %v262 = vadd.f32 %v260, %v261
        %v263 = vmul.f32 %v250, %v250
        %v264 = vadd.f32 %v262, %v263
        %v265 = vmul.f32 %v252, %v252
        %v266 = vadd.f32 %v264, %v265
        %v267 = vsel %vm256, %v266, 0.0
        %268 = vadd.xlane.f32.xlu0 %v267
        %v269 = vpop.xlane.xlu0 %268
        %v270 = vmul.f32 %v259, 0.0078125
        %v271 = vmul.f32 %v269, 0.0078125
        %v272 = vmul.f32 %v270, %v270
        %v273 = vsub.f32 %v271, %v272
        %v274 = vadd.f32 %v273, 1e-05
        %v275 = vrsqrt.pop %v274
        %v276 = vsub.f32 %v246, %v270
        %v277 = vmul.f32 %v276, %v275
        %v279 = vlaneseq
        %v280 = vshrl.u32 %v279, 7
        %v281 = vsub.s32 0, %v280
        %v282 = vrot.slane %v228, %v281
        %v284 = vmul.f32 %v277, %v282
        %v286 = vlaneseq
        %v287 = vshrl.u32 %v286, 7
        %v288 = vsub.s32 0, %v287
        %v289 = vrot.slane %v229, %v288
        %v291 = vadd.f32 %v284, %v289
        %v292 = vpack.c.bf16 %v291, %v291
        %v293 = vsub.f32 %v248, %v270
        %v294 = vmul.f32 %v293, %v275
        %295 = vrot.lane.b32.xlu0 %v282, 96
        %v296 = vpop.permute.xlu0 %295
        %v298 = vmul.f32 %v294, %v296
        %299 = vrot.lane.b32.xlu0 %v289, 96
        %v300 = vpop.permute.xlu0 %299
        %v302 = vadd.f32 %v298, %v300
        %v303 = vpack.c.bf16 %v302, %v302
        %v308 = vunpack.c.l.b16 %v234
        %v309 = vunpack.c.l.b16 %v235
        %v310 = vunpack.c.l.b16 %v236
        %v311 = vunpack.c.l.b16 %v237
        %v312 = vpack.c.b16 %v309, %v308
        %v313 = vpack.c.b16 %v311, %v310
        %v317 = vsel %vm256, %v303, 0
        %319 = vmatprep.subr.bf16.mxu0 0
        %320 = vmatpush1.bf16.msra.mxu0 0
        %321 = vmatprep.subr.bf16.mxu0 0
        %322 = vmatpush1.bf16.msra.mxu0 0
        %323 = vmatprep.subr.bf16.mxu0 0
        %324 = vmatpush1.bf16.msra.mxu0 0
        %325 = vmatprep.subr.bf16.mxu0 0
        %326 = vmatpush1.bf16.msra.mxu0 0
        %327 = vmatprep.subr.bf16.mxu0 0
        %328 = vmatpush1.bf16.msra.mxu0 0
        %329 = vmatprep.subr.bf16.mxu0 0
        %330 = vmatpush1.bf16.msra.mxu0 0
        %331 = vmatprep.subr.bf16.mxu0 0
        %332 = vmatpush1.bf16.msra.mxu0 %v313
        %333 = vmatprep.subr.bf16.mxu0 0
        %334 = vmatpush1.bf16.msra.mxu0 %v312
        %335 = vmatprep.subr.bf16.mxu0 0
        %336 = vmatpush2.bf16.msra.mxu0 0
        %337 = vmatprep.subr.bf16.mxu0 0
        %338 = vmatpush2.bf16.msra.mxu0 0
        %339 = vmatprep.subr.bf16.mxu0 0
        %340 = vmatpush2.bf16.msra.mxu0 0
        %341 = vmatprep.subr.bf16.mxu0 0
        %342 = vmatpush2.bf16.msra.mxu0 0
        %343 = vmatprep.subr.bf16.mxu0 0
        %344 = vmatpush2.bf16.msra.mxu0 0
        %345 = vmatprep.subr.bf16.mxu0 0
        %346 = vmatpush2.bf16.msra.mxu0 0
        %347 = vmatprep.subr.bf16.mxu0 0
        %348 = vmatpush2.bf16.msra.mxu0 0
        %349 = vmatprep.subr.bf16.mxu0 0
        %350 = vmatpush2.bf16.msra.mxu0 0
        %351 = vmatprep.mubr.bf16.mxu0 0
        %352 = vmatmul.mubr.bf16.gmra.mxu0 %v317
        %v353 = vpop.f32.mrf.mxu0
        %v354 = vadd.f32 0.0, %v353
        %v355 = vpop.f32.mrf.mxu0
        %v356 = vpop.f32.mrf.mxu0
        %v357 = vpop.f32.mrf.mxu0
        %358 = vdwg.mxu0
        %v363 = vunpack.c.l.b16 %v230
        %v364 = vunpack.c.l.b16 %v231
        %v365 = vunpack.c.l.b16 %v232
        %v366 = vunpack.c.l.b16 %v233
        %v367 = vpack.c.b16 %v364, %v363
        %v368 = vpack.c.b16 %v366, %v365
        %v372 = vsel %vm256, %v292, 0
        %374 = vmatprep.subr.bf16.mxu0 0
        %375 = vmatpush1.bf16.msra.mxu0 0
        %376 = vmatprep.subr.bf16.mxu0 0
        %377 = vmatpush1.bf16.msra.mxu0 0
        %378 = vmatprep.subr.bf16.mxu0 0
        %379 = vmatpush1.bf16.msra.mxu0 0
        %380 = vmatprep.subr.bf16.mxu0 0
        %381 = vmatpush1.bf16.msra.mxu0 0
        %382 = vmatprep.subr.bf16.mxu0 0
        %383 = vmatpush1.bf16.msra.mxu0 0
        %384 = vmatprep.subr.bf16.mxu0 0
        %385 = vmatpush1.bf16.msra.mxu0 0
        %386 = vmatprep.subr.bf16.mxu0 0
        %387 = vmatpush1.bf16.msra.mxu0 %v368
        %388 = vmatprep.subr.bf16.mxu0 0
        %389 = vmatpush1.bf16.msra.mxu0 %v367
        %390 = vmatprep.subr.bf16.mxu0 0
        %391 = vmatpush2.bf16.msra.mxu0 0
        %392 = vmatprep.subr.bf16.mxu0 0
        %393 = vmatpush2.bf16.msra.mxu0 0
        %394 = vmatprep.subr.bf16.mxu0 0
        %395 = vmatpush2.bf16.msra.mxu0 0
        %396 = vmatprep.subr.bf16.mxu0 0
        %397 = vmatpush2.bf16.msra.mxu0 0
        %398 = vmatprep.subr.bf16.mxu0 0
        %399 = vmatpush2.bf16.msra.mxu0 0
        %400 = vmatprep.subr.bf16.mxu0 0
        %401 = vmatpush2.bf16.msra.mxu0 0
        %402 = vmatprep.subr.bf16.mxu0 0
        %403 = vmatpush2.bf16.msra.mxu0 0
        %404 = vmatprep.subr.bf16.mxu0 0
        %405 = vmatpush2.bf16.msra.mxu0 0
        %406 = vmatprep.mubr.bf16.mxu0 0
        %407 = vmatmul.mubr.bf16.gmra.mxu0 %v372
        %v408 = vpop.f32.mrf.mxu0
        %v409 = vadd.f32 %v354, %v408
        %v410 = vpop.f32.mrf.mxu0
        %v411 = vpop.f32.mrf.mxu0
        %v412 = vpop.f32.mrf.mxu0
        %413 = vdwg.mxu0
        %v414 = vsub.f32 %v250, %v270
        %v415 = vmul.f32 %v414, %v275
        %416 = vrot.lane.b32.xlu0 %v282, 64
        %v417 = vpop.permute.xlu0 %416
        %v419 = vmul.f32 %v415, %v417
        %420 = vrot.lane.b32.xlu0 %v289, 64
        %v421 = vpop.permute.xlu0 %420
        %v423 = vadd.f32 %v419, %v421
        %v424 = vpack.c.bf16 %v423, %v423
        %v429 = vunpack.c.l.b16 %v238
        %v430 = vunpack.c.l.b16 %v239
        %v431 = vunpack.c.l.b16 %v240
        %v432 = vunpack.c.l.b16 %v241
        %v433 = vpack.c.b16 %v430, %v429
        %v434 = vpack.c.b16 %v432, %v431
        %v438 = vsel %vm256, %v424, 0
        %440 = vmatprep.subr.bf16.mxu0 0
        %441 = vmatpush1.bf16.msra.mxu0 0
        %442 = vmatprep.subr.bf16.mxu0 0
        %443 = vmatpush1.bf16.msra.mxu0 0
        %444 = vmatprep.subr.bf16.mxu0 0
        %445 = vmatpush1.bf16.msra.mxu0 0
        %446 = vmatprep.subr.bf16.mxu0 0
        %447 = vmatpush1.bf16.msra.mxu0 0
        %448 = vmatprep.subr.bf16.mxu0 0
        %449 = vmatpush1.bf16.msra.mxu0 0
        %450 = vmatprep.subr.bf16.mxu0 0
        %451 = vmatpush1.bf16.msra.mxu0 0
        %452 = vmatprep.subr.bf16.mxu0 0
        %453 = vmatpush1.bf16.msra.mxu0 %v434
        %454 = vmatprep.subr.bf16.mxu0 0
        %455 = vmatpush1.bf16.msra.mxu0 %v433
        %456 = vmatprep.subr.bf16.mxu0 0
        %457 = vmatpush2.bf16.msra.mxu0 0
        %458 = vmatprep.subr.bf16.mxu0 0
        %459 = vmatpush2.bf16.msra.mxu0 0
        %460 = vmatprep.subr.bf16.mxu0 0
        %461 = vmatpush2.bf16.msra.mxu0 0
        %462 = vmatprep.subr.bf16.mxu0 0
        %463 = vmatpush2.bf16.msra.mxu0 0
        %464 = vmatprep.subr.bf16.mxu0 0
        %465 = vmatpush2.bf16.msra.mxu0 0
        %466 = vmatprep.subr.bf16.mxu0 0
        %467 = vmatpush2.bf16.msra.mxu0 0
        %468 = vmatprep.subr.bf16.mxu0 0
        %469 = vmatpush2.bf16.msra.mxu0 0
        %470 = vmatprep.subr.bf16.mxu0 0
        %471 = vmatpush2.bf16.msra.mxu0 0
        %472 = vmatprep.mubr.bf16.mxu0 0
        %473 = vmatmul.mubr.bf16.gmra.mxu0 %v438
        %v474 = vpop.f32.mrf.mxu0
        %v475 = vadd.f32 0.0, %v474
        %v476 = vpop.f32.mrf.mxu0
        %v477 = vpop.f32.mrf.mxu0
        %v478 = vpop.f32.mrf.mxu0
        %479 = vdwg.mxu0
        %v480 = vadd.f32 %v409, %v475
        %v481 = vsub.f32 %v252, %v270
        %v482 = vmul.f32 %v481, %v275
        %483 = vrot.lane.b32.xlu0 %v282, 32
        %v484 = vpop.permute.xlu0 %483
        %v486 = vmul.f32 %v482, %v484
        %487 = vrot.lane.b32.xlu0 %v289, 32
        %v488 = vpop.permute.xlu0 %487
        %v490 = vadd.f32 %v486, %v488
        %v491 = vpack.c.bf16 %v490, %v490
        %v496 = vunpack.c.l.b16 %v242
        %v497 = vunpack.c.l.b16 %v243
        %v498 = vunpack.c.l.b16 %v244
        %v499 = vunpack.c.l.b16 %v245
        %v500 = vpack.c.b16 %v497, %v496
        %v501 = vpack.c.b16 %v499, %v498
        %v505 = vsel %vm256, %v491, 0
        %507 = vmatprep.subr.bf16.mxu0 0
        %508 = vmatpush1.bf16.msra.mxu0 0
        %509 = vmatprep.subr.bf16.mxu0 0
        %510 = vmatpush1.bf16.msra.mxu0 0
        %511 = vmatprep.subr.bf16.mxu0 0
        %512 = vmatpush1.bf16.msra.mxu0 0
        %513 = vmatprep.subr.bf16.mxu0 0
        %514 = vmatpush1.bf16.msra.mxu0 0
        %515 = vmatprep.subr.bf16.mxu0 0
        %516 = vmatpush1.bf16.msra.mxu0 0
        %517 = vmatprep.subr.bf16.mxu0 0
        %518 = vmatpush1.bf16.msra.mxu0 0
        %519 = vmatprep.subr.bf16.mxu0 0
        %520 = vmatpush1.bf16.msra.mxu0 %v501
        %521 = vmatprep.subr.bf16.mxu0 0
        %522 = vmatpush1.bf16.msra.mxu0 %v500
        %523 = vmatprep.subr.bf16.mxu0 0
        %524 = vmatpush2.bf16.msra.mxu0 0
        %525 = vmatprep.subr.bf16.mxu0 0
        %526 = vmatpush2.bf16.msra.mxu0 0
        %527 = vmatprep.subr.bf16.mxu0 0
        %528 = vmatpush2.bf16.msra.mxu0 0
        %529 = vmatprep.subr.bf16.mxu0 0
        %530 = vmatpush2.bf16.msra.mxu0 0
        %531 = vmatprep.subr.bf16.mxu0 0
        %532 = vmatpush2.bf16.msra.mxu0 0
        %533 = vmatprep.subr.bf16.mxu0 0
        %534 = vmatpush2.bf16.msra.mxu0 0
        %535 = vmatprep.subr.bf16.mxu0 0
        %536 = vmatpush2.bf16.msra.mxu0 0
        %537 = vmatprep.subr.bf16.mxu0 0
        %538 = vmatpush2.bf16.msra.mxu0 0
        %539 = vmatprep.mubr.bf16.mxu0 0
        %540 = vmatmul.mubr.bf16.gmra.mxu0 %v505
        %v541 = vpop.f32.mrf.mxu0
        %v542 = vadd.f32 0.0, %v541
        %v543 = vpop.f32.mrf.mxu0
        %v544 = vpop.f32.mrf.mxu0
        %v545 = vpop.f32.mrf.mxu0
        %546 = vdwg.mxu0
        %v547 = vadd.f32 %v480, %v542
        %v548 = vpack.c.bf16 %v547, %v547
        %vm549 = vcmask 519168
        %550 = vst.msk [vmem:[%s215] sm:$0xf] %vm549, %v548
        %s551 = scalar_lea.vmem %s224, 32
        %v552 = vld [vmem:[%s551] ss:$2 sm:$0xff]
        %s553 = scalar_lea.vmem %s224, 48
        %v554 = vld [vmem:[%s553] ss:$2 sm:$0xff]
        %s555 = scalar_lea.vmem %s224, 33
        %v556 = vld [vmem:[%s555] ss:$2 sm:$0xff]
        %s557 = scalar_lea.vmem %s224, 49
        %v558 = vld [vmem:[%s557] ss:$2 sm:$0xff]
        %v559 = vadd.f32 %v552, %v554
        %v560 = vadd.f32 %v559, %v556
        %v561 = vadd.f32 %v560, %v558
        %v562 = vsel %vm256, %v561, 0.0
        %563 = vadd.xlane.f32.xlu0 %v562
        %v564 = vpop.xlane.xlu0 %563
        %v565 = vmul.f32 %v552, %v552
        %v566 = vmul.f32 %v554, %v554
        %v567 = vadd.f32 %v565, %v566
        %v568 = vmul.f32 %v556, %v556
        %v569 = vadd.f32 %v567, %v568
        %v570 = vmul.f32 %v558, %v558
        %v571 = vadd.f32 %v569, %v570
        %v572 = vsel %vm256, %v571, 0.0
        %573 = vadd.xlane.f32.xlu0 %v572
        %v574 = vpop.xlane.xlu0 %573
        %v575 = vmul.f32 %v564, 0.0078125
        %v576 = vmul.f32 %v574, 0.0078125
        %v577 = vmul.f32 %v575, %v575
        %v578 = vsub.f32 %v576, %v577
        %v579 = vadd.f32 %v578, 1e-05
        %v580 = vrsqrt.pop %v579
        %v581 = vsub.f32 %v552, %v575
        %v582 = vmul.f32 %v581, %v580
        %v583 = vmul.f32 %v582, %v282
        %v584 = vadd.f32 %v583, %v289
        %v585 = vpack.c.bf16 %v584, %v584
        %v586 = vsub.f32 %v554, %v575
        %v587 = vmul.f32 %v586, %v580
        %v588 = vmul.f32 %v587, %v296
        %v589 = vadd.f32 %v588, %v300
        %v590 = vpack.c.bf16 %v589, %v589
        %v592 = vsel %vm256, %v590, 0
        %594 = vmatprep.subr.bf16.mxu0 0
        %595 = vmatpush1.bf16.msra.mxu0 0
        %596 = vmatprep.subr.bf16.mxu0 0
        %597 = vmatpush1.bf16.msra.mxu0 0
        %598 = vmatprep.subr.bf16.mxu0 0
        %599 = vmatpush1.bf16.msra.mxu0 0
        %600 = vmatprep.subr.bf16.mxu0 0
        %601 = vmatpush1.bf16.msra.mxu0 0
        %602 = vmatprep.subr.bf16.mxu0 0
        %603 = vmatpush1.bf16.msra.mxu0 0
        %604 = vmatprep.subr.bf16.mxu0 0
        %605 = vmatpush1.bf16.msra.mxu0 0
        %606 = vmatprep.subr.bf16.mxu0 0
        %607 = vmatpush1.bf16.msra.mxu0 %v313
        %608 = vmatprep.subr.bf16.mxu0 0
        %609 = vmatpush1.bf16.msra.mxu0 %v312
        %610 = vmatprep.subr.bf16.mxu0 0
        %611 = vmatpush2.bf16.msra.mxu0 0
        %612 = vmatprep.subr.bf16.mxu0 0
        %613 = vmatpush2.bf16.msra.mxu0 0
        %614 = vmatprep.subr.bf16.mxu0 0
        %615 = vmatpush2.bf16.msra.mxu0 0
        %616 = vmatprep.subr.bf16.mxu0 0
        %617 = vmatpush2.bf16.msra.mxu0 0
        %618 = vmatprep.subr.bf16.mxu0 0
        %619 = vmatpush2.bf16.msra.mxu0 0
        %620 = vmatprep.subr.bf16.mxu0 0
        %621 = vmatpush2.bf16.msra.mxu0 0
        %622 = vmatprep.subr.bf16.mxu0 0
        %623 = vmatpush2.bf16.msra.mxu0 0
        %624 = vmatprep.subr.bf16.mxu0 0
        %625 = vmatpush2.bf16.msra.mxu0 0
        %626 = vmatprep.mubr.bf16.mxu0 0
        %627 = vmatmul.mubr.bf16.gmra.mxu0 %v592
        %v628 = vpop.f32.mrf.mxu0
        %v629 = vadd.f32 0.0, %v628
        %v630 = vpop.f32.mrf.mxu0
        %v631 = vpop.f32.mrf.mxu0
        %v632 = vpop.f32.mrf.mxu0
        %633 = vdwg.mxu0
        %v635 = vsel %vm256, %v585, 0
        %637 = vmatprep.subr.bf16.mxu0 0
        %638 = vmatpush1.bf16.msra.mxu0 0
        %639 = vmatprep.subr.bf16.mxu0 0
        %640 = vmatpush1.bf16.msra.mxu0 0
        %641 = vmatprep.subr.bf16.mxu0 0
        %642 = vmatpush1.bf16.msra.mxu0 0
        %643 = vmatprep.subr.bf16.mxu0 0
        %644 = vmatpush1.bf16.msra.mxu0 0
        %645 = vmatprep.subr.bf16.mxu0 0
        %646 = vmatpush1.bf16.msra.mxu0 0
        %647 = vmatprep.subr.bf16.mxu0 0
        %648 = vmatpush1.bf16.msra.mxu0 0
        %649 = vmatprep.subr.bf16.mxu0 0
        %650 = vmatpush1.bf16.msra.mxu0 %v368
        %651 = vmatprep.subr.bf16.mxu0 0
        %652 = vmatpush1.bf16.msra.mxu0 %v367
        %653 = vmatprep.subr.bf16.mxu0 0
        %654 = vmatpush2.bf16.msra.mxu0 0
        %655 = vmatprep.subr.bf16.mxu0 0
        %656 = vmatpush2.bf16.msra.mxu0 0
        %657 = vmatprep.subr.bf16.mxu0 0
        %658 = vmatpush2.bf16.msra.mxu0 0
        %659 = vmatprep.subr.bf16.mxu0 0
        %660 = vmatpush2.bf16.msra.mxu0 0
        %661 = vmatprep.subr.bf16.mxu0 0
        %662 = vmatpush2.bf16.msra.mxu0 0
        %663 = vmatprep.subr.bf16.mxu0 0
        %664 = vmatpush2.bf16.msra.mxu0 0
        %665 = vmatprep.subr.bf16.mxu0 0
        %666 = vmatpush2.bf16.msra.mxu0 0
        %667 = vmatprep.subr.bf16.mxu0 0
        %668 = vmatpush2.bf16.msra.mxu0 0
        %669 = vmatprep.mubr.bf16.mxu0 0
        %670 = vmatmul.mubr.bf16.gmra.mxu0 %v635
        %v671 = vpop.f32.mrf.mxu0
        %v672 = vadd.f32 %v629, %v671
        %v673 = vpop.f32.mrf.mxu0
        %v674 = vpop.f32.mrf.mxu0
        %v675 = vpop.f32.mrf.mxu0
        %676 = vdwg.mxu0
        %v677 = vsub.f32 %v556, %v575
        %v678 = vmul.f32 %v677, %v580
        %v679 = vmul.f32 %v678, %v417
        %v680 = vadd.f32 %v679, %v421
        %v681 = vpack.c.bf16 %v680, %v680
        %v683 = vsel %vm256, %v681, 0
        %685 = vmatprep.subr.bf16.mxu0 0
        %686 = vmatpush1.bf16.msra.mxu0 0
        %687 = vmatprep.subr.bf16.mxu0 0
        %688 = vmatpush1.bf16.msra.mxu0 0
        %689 = vmatprep.subr.bf16.mxu0 0
        %690 = vmatpush1.bf16.msra.mxu0 0
        %691 = vmatprep.subr.bf16.mxu0 0
        %692 = vmatpush1.bf16.msra.mxu0 0
        %693 = vmatprep.subr.bf16.mxu0 0
        %694 = vmatpush1.bf16.msra.mxu0 0
        %695 = vmatprep.subr.bf16.mxu0 0
        %696 = vmatpush1.bf16.msra.mxu0 0
        %697 = vmatprep.subr.bf16.mxu0 0
        %698 = vmatpush1.bf16.msra.mxu0 %v434
        %699 = vmatprep.subr.bf16.mxu0 0
        %700 = vmatpush1.bf16.msra.mxu0 %v433
        %701 = vmatprep.subr.bf16.mxu0 0
        %702 = vmatpush2.bf16.msra.mxu0 0
        %703 = vmatprep.subr.bf16.mxu0 0
        %704 = vmatpush2.bf16.msra.mxu0 0
        %705 = vmatprep.subr.bf16.mxu0 0
        %706 = vmatpush2.bf16.msra.mxu0 0
        %707 = vmatprep.subr.bf16.mxu0 0
        %708 = vmatpush2.bf16.msra.mxu0 0
        %709 = vmatprep.subr.bf16.mxu0 0
        %710 = vmatpush2.bf16.msra.mxu0 0
        %711 = vmatprep.subr.bf16.mxu0 0
        %712 = vmatpush2.bf16.msra.mxu0 0
        %713 = vmatprep.subr.bf16.mxu0 0
        %714 = vmatpush2.bf16.msra.mxu0 0
        %715 = vmatprep.subr.bf16.mxu0 0
        %716 = vmatpush2.bf16.msra.mxu0 0
        %717 = vmatprep.mubr.bf16.mxu0 0
        %718 = vmatmul.mubr.bf16.gmra.mxu0 %v683
        %v719 = vpop.f32.mrf.mxu0
        %v720 = vadd.f32 0.0, %v719
        %v721 = vpop.f32.mrf.mxu0
        %v722 = vpop.f32.mrf.mxu0
        %v723 = vpop.f32.mrf.mxu0
        %724 = vdwg.mxu0
        %v725 = vadd.f32 %v672, %v720
        %v726 = vsub.f32 %v558, %v575
        %v727 = vmul.f32 %v726, %v580
        %v728 = vmul.f32 %v727, %v484
        %v729 = vadd.f32 %v728, %v488
        %v730 = vpack.c.bf16 %v729, %v729
        %v732 = vsel %vm256, %v730, 0
        %734 = vmatprep.subr.bf16.mxu0 0
        %735 = vmatpush1.bf16.msra.mxu0 0
        %736 = vmatprep.subr.bf16.mxu0 0
        %737 = vmatpush1.bf16.msra.mxu0 0
        %738 = vmatprep.subr.bf16.mxu0 0
        %739 = vmatpush1.bf16.msra.mxu0 0
        %740 = vmatprep.subr.bf16.mxu0 0
        %741 = vmatpush1.bf16.msra.mxu0 0
        %742 = vmatprep.subr.bf16.mxu0 0
        %743 = vmatpush1.bf16.msra.mxu0 0
        %744 = vmatprep.subr.bf16.mxu0 0
        %745 = vmatpush1.bf16.msra.mxu0 0
        %746 = vmatprep.subr.bf16.mxu0 0
        %747 = vmatpush1.bf16.msra.mxu0 %v501
        %748 = vmatprep.subr.bf16.mxu0 0
        %749 = vmatpush1.bf16.msra.mxu0 %v500
        %750 = vmatprep.subr.bf16.mxu0 0
        %751 = vmatpush2.bf16.msra.mxu0 0
        %752 = vmatprep.subr.bf16.mxu0 0
        %753 = vmatpush2.bf16.msra.mxu0 0
        %754 = vmatprep.subr.bf16.mxu0 0
        %755 = vmatpush2.bf16.msra.mxu0 0
        %756 = vmatprep.subr.bf16.mxu0 0
        %757 = vmatpush2.bf16.msra.mxu0 0
        %758 = vmatprep.subr.bf16.mxu0 0
        %759 = vmatpush2.bf16.msra.mxu0 0
        %760 = vmatprep.subr.bf16.mxu0 0
        %761 = vmatpush2.bf16.msra.mxu0 0
        %762 = vmatprep.subr.bf16.mxu0 0
        %763 = vmatpush2.bf16.msra.mxu0 0
        %764 = vmatprep.subr.bf16.mxu0 0
        %765 = vmatpush2.bf16.msra.mxu0 0
        %766 = vmatprep.mubr.bf16.mxu0 0
        %767 = vmatmul.mubr.bf16.gmra.mxu0 %v732
        %v768 = vpop.f32.mrf.mxu0
        %v769 = vadd.f32 0.0, %v768
        %v770 = vpop.f32.mrf.mxu0
        %v771 = vpop.f32.mrf.mxu0
        %v772 = vpop.f32.mrf.mxu0
        %773 = vdwg.mxu0
        %v774 = vadd.f32 %v725, %v769
        %v775 = vpack.c.bf16 %v774, %v774
        %776 = vst.msk [vmem:[%s215 + $0x4] sm:$0xf] %vm549, %v775
        %s777 = scalar_lea.vmem %s224, 64
        %v778 = vld [vmem:[%s777] ss:$2 sm:$0xff]
        %s779 = scalar_lea.vmem %s224, 80
        %v780 = vld [vmem:[%s779] ss:$2 sm:$0xff]
        %s781 = scalar_lea.vmem %s224, 65
        %v782 = vld [vmem:[%s781] ss:$2 sm:$0xff]
        %s783 = scalar_lea.vmem %s224, 81
        %v784 = vld [vmem:[%s783] ss:$2 sm:$0xff]
        %v785 = vadd.f32 %v778, %v780
        %v786 = vadd.f32 %v785, %v782
        %v787 = vadd.f32 %v786, %v784
        %v788 = vsel %vm256, %v787, 0.0
        %789 = vadd.xlane.f32.xlu0 %v788
        %v790 = vpop.xlane.xlu0 %789
        %v791 = vmul.f32 %v778, %v778
        %v792 = vmul.f32 %v780, %v780
        %v793 = vadd.f32 %v791, %v792
        %v794 = vmul.f32 %v782, %v782
        %v795 = vadd.f32 %v793, %v794
        %v796 = vmul.f32 %v784, %v784
        %v797 = vadd.f32 %v795, %v796
        %v798 = vsel %vm256, %v797, 0.0
        %799 = vadd.xlane.f32.xlu0 %v798
        %v800 = vpop.xlane.xlu0 %799
        %v801 = vmul.f32 %v790, 0.0078125
        %v802 = vmul.f32 %v800, 0.0078125
        %v803 = vmul.f32 %v801, %v801
        %v804 = vsub.f32 %v802, %v803
        %v805 = vadd.f32 %v804, 1e-05
        %v806 = vrsqrt.pop %v805
        %v807 = vsub.f32 %v778, %v801
        %v808 = vmul.f32 %v807, %v806
        %v809 = vmul.f32 %v808, %v282
        %v810 = vadd.f32 %v809, %v289
        %v811 = vpack.c.bf16 %v810, %v810
        %v812 = vsub.f32 %v780, %v801
        %v813 = vmul.f32 %v812, %v806
        %v814 = vmul.f32 %v813, %v296
        %v815 = vadd.f32 %v814, %v300
        %v816 = vpack.c.bf16 %v815, %v815
        %v818 = vsel %vm256, %v816, 0
        %820 = vmatprep.subr.bf16.mxu0 0
        %821 = vmatpush1.bf16.msra.mxu0 0
        %822 = vmatprep.subr.bf16.mxu0 0
        %823 = vmatpush1.bf16.msra.mxu0 0
        %824 = vmatprep.subr.bf16.mxu0 0
        %825 = vmatpush1.bf16.msra.mxu0 0
        %826 = vmatprep.subr.bf16.mxu0 0
        %827 = vmatpush1.bf16.msra.mxu0 0
        %828 = vmatprep.subr.bf16.mxu0 0
        %829 = vmatpush1.bf16.msra.mxu0 0
        %830 = vmatprep.subr.bf16.mxu0 0
        %831 = vmatpush1.bf16.msra.mxu0 0
        %832 = vmatprep.subr.bf16.mxu0 0
        %833 = vmatpush1.bf16.msra.mxu0 %v313
        %834 = vmatprep.subr.bf16.mxu0 0
        %835 = vmatpush1.bf16.msra.mxu0 %v312
        %836 = vmatprep.subr.bf16.mxu0 0
        %837 = vmatpush2.bf16.msra.mxu0 0
        %838 = vmatprep.subr.bf16.mxu0 0
        %839 = vmatpush2.bf16.msra.mxu0 0
        %840 = vmatprep.subr.bf16.mxu0 0
        %841 = vmatpush2.bf16.msra.mxu0 0
        %842 = vmatprep.subr.bf16.mxu0 0
        %843 = vmatpush2.bf16.msra.mxu0 0
        %844 = vmatprep.subr.bf16.mxu0 0
        %845 = vmatpush2.bf16.msra.mxu0 0
        %846 = vmatprep.subr.bf16.mxu0 0
        %847 = vmatpush2.bf16.msra.mxu0 0
        %848 = vmatprep.subr.bf16.mxu0 0
        %849 = vmatpush2.bf16.msra.mxu0 0
        %850 = vmatprep.subr.bf16.mxu0 0
        %851 = vmatpush2.bf16.msra.mxu0 0
        %852 = vmatprep.mubr.bf16.mxu0 0
        %853 = vmatmul.mubr.bf16.gmra.mxu0 %v818
        %v854 = vpop.f32.mrf.mxu0
        %v855 = vadd.f32 0.0, %v854
        %v856 = vpop.f32.mrf.mxu0
        %v857 = vpop.f32.mrf.mxu0
        %v858 = vpop.f32.mrf.mxu0
        %859 = vdwg.mxu0
        %v861 = vsel %vm256, %v811, 0
        %863 = vmatprep.subr.bf16.mxu0 0
        %864 = vmatpush1.bf16.msra.mxu0 0
        %865 = vmatprep.subr.bf16.mxu0 0
        %866 = vmatpush1.bf16.msra.mxu0 0
        %867 = vmatprep.subr.bf16.mxu0 0
        %868 = vmatpush1.bf16.msra.mxu0 0
        %869 = vmatprep.subr.bf16.mxu0 0
        %870 = vmatpush1.bf16.msra.mxu0 0
        %871 = vmatprep.subr.bf16.mxu0 0
        %872 = vmatpush1.bf16.msra.mxu0 0
        %873 = vmatprep.subr.bf16.mxu0 0
        %874 = vmatpush1.bf16.msra.mxu0 0
        %875 = vmatprep.subr.bf16.mxu0 0
        %876 = vmatpush1.bf16.msra.mxu0 %v368
        %877 = vmatprep.subr.bf16.mxu0 0
        %878 = vmatpush1.bf16.msra.mxu0 %v367
        %879 = vmatprep.subr.bf16.mxu0 0
        %880 = vmatpush2.bf16.msra.mxu0 0
        %881 = vmatprep.subr.bf16.mxu0 0
        %882 = vmatpush2.bf16.msra.mxu0 0
        %883 = vmatprep.subr.bf16.mxu0 0
        %884 = vmatpush2.bf16.msra.mxu0 0
        %885 = vmatprep.subr.bf16.mxu0 0
        %886 = vmatpush2.bf16.msra.mxu0 0
        %887 = vmatprep.subr.bf16.mxu0 0
        %888 = vmatpush2.bf16.msra.mxu0 0
        %889 = vmatprep.subr.bf16.mxu0 0
        %890 = vmatpush2.bf16.msra.mxu0 0
        %891 = vmatprep.subr.bf16.mxu0 0
        %892 = vmatpush2.bf16.msra.mxu0 0
        %893 = vmatprep.subr.bf16.mxu0 0
        %894 = vmatpush2.bf16.msra.mxu0 0
        %895 = vmatprep.mubr.bf16.mxu0 0
        %896 = vmatmul.mubr.bf16.gmra.mxu0 %v861
        %v897 = vpop.f32.mrf.mxu0
        %v898 = vadd.f32 %v855, %v897
        %v899 = vpop.f32.mrf.mxu0
        %v900 = vpop.f32.mrf.mxu0
        %v901 = vpop.f32.mrf.mxu0
        %902 = vdwg.mxu0
        %v903 = vsub.f32 %v782, %v801
        %v904 = vmul.f32 %v903, %v806
        %v905 = vmul.f32 %v904, %v417
        %v906 = vadd.f32 %v905, %v421
        %v907 = vpack.c.bf16 %v906, %v906
        %v909 = vsel %vm256, %v907, 0
        %911 = vmatprep.subr.bf16.mxu0 0
        %912 = vmatpush1.bf16.msra.mxu0 0
        %913 = vmatprep.subr.bf16.mxu0 0
        %914 = vmatpush1.bf16.msra.mxu0 0
        %915 = vmatprep.subr.bf16.mxu0 0
        %916 = vmatpush1.bf16.msra.mxu0 0
        %917 = vmatprep.subr.bf16.mxu0 0
        %918 = vmatpush1.bf16.msra.mxu0 0
        %919 = vmatprep.subr.bf16.mxu0 0
        %920 = vmatpush1.bf16.msra.mxu0 0
        %921 = vmatprep.subr.bf16.mxu0 0
        %922 = vmatpush1.bf16.msra.mxu0 0
        %923 = vmatprep.subr.bf16.mxu0 0
        %924 = vmatpush1.bf16.msra.mxu0 %v434
        %925 = vmatprep.subr.bf16.mxu0 0
        %926 = vmatpush1.bf16.msra.mxu0 %v433
        %927 = vmatprep.subr.bf16.mxu0 0
        %928 = vmatpush2.bf16.msra.mxu0 0
        %929 = vmatprep.subr.bf16.mxu0 0
        %930 = vmatpush2.bf16.msra.mxu0 0
        %931 = vmatprep.subr.bf16.mxu0 0
        %932 = vmatpush2.bf16.msra.mxu0 0
        %933 = vmatprep.subr.bf16.mxu0 0
        %934 = vmatpush2.bf16.msra.mxu0 0
        %935 = vmatprep.subr.bf16.mxu0 0
        %936 = vmatpush2.bf16.msra.mxu0 0
        %937 = vmatprep.subr.bf16.mxu0 0
        %938 = vmatpush2.bf16.msra.mxu0 0
        %939 = vmatprep.subr.bf16.mxu0 0
        %940 = vmatpush2.bf16.msra.mxu0 0
        %941 = vmatprep.subr.bf16.mxu0 0
        %942 = vmatpush2.bf16.msra.mxu0 0
        %943 = vmatprep.mubr.bf16.mxu0 0
        %944 = vmatmul.mubr.bf16.gmra.mxu0 %v909
        %v945 = vpop.f32.mrf.mxu0
        %v946 = vadd.f32 0.0, %v945
        %v947 = vpop.f32.mrf.mxu0
        %v948 = vpop.f32.mrf.mxu0
        %v949 = vpop.f32.mrf.mxu0
        %950 = vdwg.mxu0
        %v951 = vadd.f32 %v898, %v946
        %v952 = vsub.f32 %v784, %v801
        %v953 = vmul.f32 %v952, %v806
        %v954 = vmul.f32 %v953, %v484
        %v955 = vadd.f32 %v954, %v488
        %v956 = vpack.c.bf16 %v955, %v955
        %v958 = vsel %vm256, %v956, 0
        %960 = vmatprep.subr.bf16.mxu0 0
        %961 = vmatpush1.bf16.msra.mxu0 0
        %962 = vmatprep.subr.bf16.mxu0 0
        %963 = vmatpush1.bf16.msra.mxu0 0
        %964 = vmatprep.subr.bf16.mxu0 0
        %965 = vmatpush1.bf16.msra.mxu0 0
        %966 = vmatprep.subr.bf16.mxu0 0
        %967 = vmatpush1.bf16.msra.mxu0 0
        %968 = vmatprep.subr.bf16.mxu0 0
        %969 = vmatpush1.bf16.msra.mxu0 0
        %970 = vmatprep.subr.bf16.mxu0 0
        %971 = vmatpush1.bf16.msra.mxu0 0
        %972 = vmatprep.subr.bf16.mxu0 0
        %973 = vmatpush1.bf16.msra.mxu0 %v501
        %974 = vmatprep.subr.bf16.mxu0 0
        %975 = vmatpush1.bf16.msra.mxu0 %v500
        %976 = vmatprep.subr.bf16.mxu0 0
        %977 = vmatpush2.bf16.msra.mxu0 0
        %978 = vmatprep.subr.bf16.mxu0 0
        %979 = vmatpush2.bf16.msra.mxu0 0
        %980 = vmatprep.subr.bf16.mxu0 0
        %981 = vmatpush2.bf16.msra.mxu0 0
        %982 = vmatprep.subr.bf16.mxu0 0
        %983 = vmatpush2.bf16.msra.mxu0 0
        %984 = vmatprep.subr.bf16.mxu0 0
        %985 = vmatpush2.bf16.msra.mxu0 0
        %986 = vmatprep.subr.bf16.mxu0 0
        %987 = vmatpush2.bf16.msra.mxu0 0
        %988 = vmatprep.subr.bf16.mxu0 0
        %989 = vmatpush2.bf16.msra.mxu0 0
        %990 = vmatprep.subr.bf16.mxu0 0
        %991 = vmatpush2.bf16.msra.mxu0 0
        %992 = vmatprep.mubr.bf16.mxu0 0
        %993 = vmatmul.mubr.bf16.gmra.mxu0 %v958
        %v994 = vpop.f32.mrf.mxu0
        %v995 = vadd.f32 0.0, %v994
        %v996 = vpop.f32.mrf.mxu0
        %v997 = vpop.f32.mrf.mxu0
        %v998 = vpop.f32.mrf.mxu0
        %999 = vdwg.mxu0
        %v1000 = vadd.f32 %v951, %v995
        %v1001 = vpack.c.bf16 %v1000, %v1000
        %1002 = vst.msk [vmem:[%s215 + $0x8] sm:$0xf] %vm549, %v1001
        %s1003 = scalar_lea.vmem %s224, 96
        %v1004 = vld [vmem:[%s1003] ss:$2 sm:$0xff]
        %s1005 = scalar_lea.vmem %s224, 112
        %v1006 = vld [vmem:[%s1005] ss:$2 sm:$0xff]
        %s1007 = scalar_lea.vmem %s224, 97
        %v1008 = vld [vmem:[%s1007] ss:$2 sm:$0xff]
        %s1009 = scalar_lea.vmem %s224, 113
        %v1010 = vld [vmem:[%s1009] ss:$2 sm:$0xff]
        %v1011 = vadd.f32 %v1004, %v1006
        %v1012 = vadd.f32 %v1011, %v1008
        %v1013 = vadd.f32 %v1012, %v1010
        %v1014 = vsel %vm256, %v1013, 0.0
        %1015 = vadd.xlane.f32.xlu0 %v1014
        %v1016 = vpop.xlane.xlu0 %1015
        %v1017 = vmul.f32 %v1004, %v1004
        %v1018 = vmul.f32 %v1006, %v1006
        %v1019 = vadd.f32 %v1017, %v1018
        %v1020 = vmul.f32 %v1008, %v1008
        %v1021 = vadd.f32 %v1019, %v1020
        %v1022 = vmul.f32 %v1010, %v1010
        %v1023 = vadd.f32 %v1021, %v1022
        %v1024 = vsel %vm256, %v1023, 0.0
        %1025 = vadd.xlane.f32.xlu0 %v1024
        %v1026 = vpop.xlane.xlu0 %1025
        %v1027 = vmul.f32 %v1016, 0.0078125
        %v1028 = vmul.f32 %v1026, 0.0078125
        %v1029 = vmul.f32 %v1027, %v1027
        %v1030 = vsub.f32 %v1028, %v1029
        %v1031 = vadd.f32 %v1030, 1e-05
        %v1032 = vrsqrt.pop %v1031
        %v1033 = vsub.f32 %v1004, %v1027
        %v1034 = vmul.f32 %v1033, %v1032
        %v1035 = vmul.f32 %v1034, %v282
        %v1036 = vadd.f32 %v1035, %v289
        %v1037 = vpack.c.bf16 %v1036, %v1036
        %v1038 = vsub.f32 %v1006, %v1027
        %v1039 = vmul.f32 %v1038, %v1032
        %v1040 = vmul.f32 %v1039, %v296
        %v1041 = vadd.f32 %v1040, %v300
        %v1042 = vpack.c.bf16 %v1041, %v1041
        %v1044 = vsel %vm256, %v1042, 0
        %1046 = vmatprep.subr.bf16.mxu0 0
        %1047 = vmatpush1.bf16.msra.mxu0 0
        %1048 = vmatprep.subr.bf16.mxu0 0
        %1049 = vmatpush1.bf16.msra.mxu0 0
        %1050 = vmatprep.subr.bf16.mxu0 0
        %1051 = vmatpush1.bf16.msra.mxu0 0
        %1052 = vmatprep.subr.bf16.mxu0 0
        %1053 = vmatpush1.bf16.msra.mxu0 0
        %1054 = vmatprep.subr.bf16.mxu0 0
        %1055 = vmatpush1.bf16.msra.mxu0 0
        %1056 = vmatprep.subr.bf16.mxu0 0
        %1057 = vmatpush1.bf16.msra.mxu0 0
        %1058 = vmatprep.subr.bf16.mxu0 0
        %1059 = vmatpush1.bf16.msra.mxu0 %v313
        %1060 = vmatprep.subr.bf16.mxu0 0
        %1061 = vmatpush1.bf16.msra.mxu0 %v312
        %1062 = vmatprep.subr.bf16.mxu0 0
        %1063 = vmatpush2.bf16.msra.mxu0 0
        %1064 = vmatprep.subr.bf16.mxu0 0
        %1065 = vmatpush2.bf16.msra.mxu0 0
        %1066 = vmatprep.subr.bf16.mxu0 0
        %1067 = vmatpush2.bf16.msra.mxu0 0
        %1068 = vmatprep.subr.bf16.mxu0 0
        %1069 = vmatpush2.bf16.msra.mxu0 0
        %1070 = vmatprep.subr.bf16.mxu0 0
        %1071 = vmatpush2.bf16.msra.mxu0 0
        %1072 = vmatprep.subr.bf16.mxu0 0
        %1073 = vmatpush2.bf16.msra.mxu0 0
        %1074 = vmatprep.subr.bf16.mxu0 0
        %1075 = vmatpush2.bf16.msra.mxu0 0
        %1076 = vmatprep.subr.bf16.mxu0 0
        %1077 = vmatpush2.bf16.msra.mxu0 0
        %1078 = vmatprep.mubr.bf16.mxu0 0
        %1079 = vmatmul.mubr.bf16.gmra.mxu0 %v1044
        %v1080 = vpop.f32.mrf.mxu0
        %v1081 = vadd.f32 0.0, %v1080
        %v1082 = vpop.f32.mrf.mxu0
        %v1083 = vpop.f32.mrf.mxu0
        %v1084 = vpop.f32.mrf.mxu0
        %1085 = vdwg.mxu0
        %v1087 = vsel %vm256, %v1037, 0
        %1089 = vmatprep.subr.bf16.mxu0 0
        %1090 = vmatpush1.bf16.msra.mxu0 0
        %1091 = vmatprep.subr.bf16.mxu0 0
        %1092 = vmatpush1.bf16.msra.mxu0 0
        %1093 = vmatprep.subr.bf16.mxu0 0
        %1094 = vmatpush1.bf16.msra.mxu0 0
        %1095 = vmatprep.subr.bf16.mxu0 0
        %1096 = vmatpush1.bf16.msra.mxu0 0
        %1097 = vmatprep.subr.bf16.mxu0 0
        %1098 = vmatpush1.bf16.msra.mxu0 0
        %1099 = vmatprep.subr.bf16.mxu0 0
        %1100 = vmatpush1.bf16.msra.mxu0 0
        %1101 = vmatprep.subr.bf16.mxu0 0
        %1102 = vmatpush1.bf16.msra.mxu0 %v368
        %1103 = vmatprep.subr.bf16.mxu0 0
        %1104 = vmatpush1.bf16.msra.mxu0 %v367
        %1105 = vmatprep.subr.bf16.mxu0 0
        %1106 = vmatpush2.bf16.msra.mxu0 0
        %1107 = vmatprep.subr.bf16.mxu0 0
        %1108 = vmatpush2.bf16.msra.mxu0 0
        %1109 = vmatprep.subr.bf16.mxu0 0
        %1110 = vmatpush2.bf16.msra.mxu0 0
        %1111 = vmatprep.subr.bf16.mxu0 0
        %1112 = vmatpush2.bf16.msra.mxu0 0
        %1113 = vmatprep.subr.bf16.mxu0 0
        %1114 = vmatpush2.bf16.msra.mxu0 0
        %1115 = vmatprep.subr.bf16.mxu0 0
        %1116 = vmatpush2.bf16.msra.mxu0 0
        %1117 = vmatprep.subr.bf16.mxu0 0
        %1118 = vmatpush2.bf16.msra.mxu0 0
        %1119 = vmatprep.subr.bf16.mxu0 0
        %1120 = vmatpush2.bf16.msra.mxu0 0
        %1121 = vmatprep.mubr.bf16.mxu0 0
        %1122 = vmatmul.mubr.bf16.gmra.mxu0 %v1087
        %v1123 = vpop.f32.mrf.mxu0
        %v1124 = vadd.f32 %v1081, %v1123
        %v1125 = vpop.f32.mrf.mxu0
        %v1126 = vpop.f32.mrf.mxu0
        %v1127 = vpop.f32.mrf.mxu0
        %1128 = vdwg.mxu0
        %v1129 = vsub.f32 %v1008, %v1027
        %v1130 = vmul.f32 %v1129, %v1032
        %v1131 = vmul.f32 %v1130, %v417
        %v1132 = vadd.f32 %v1131, %v421
        %v1133 = vpack.c.bf16 %v1132, %v1132
        %v1135 = vsel %vm256, %v1133, 0
        %1137 = vmatprep.subr.bf16.mxu0 0
        %1138 = vmatpush1.bf16.msra.mxu0 0
        %1139 = vmatprep.subr.bf16.mxu0 0
        %1140 = vmatpush1.bf16.msra.mxu0 0
        %1141 = vmatprep.subr.bf16.mxu0 0
        %1142 = vmatpush1.bf16.msra.mxu0 0
        %1143 = vmatprep.subr.bf16.mxu0 0
        %1144 = vmatpush1.bf16.msra.mxu0 0
        %1145 = vmatprep.subr.bf16.mxu0 0
        %1146 = vmatpush1.bf16.msra.mxu0 0
        %1147 = vmatprep.subr.bf16.mxu0 0
        %1148 = vmatpush1.bf16.msra.mxu0 0
        %1149 = vmatprep.subr.bf16.mxu0 0
        %1150 = vmatpush1.bf16.msra.mxu0 %v434
        %1151 = vmatprep.subr.bf16.mxu0 0
        %1152 = vmatpush1.bf16.msra.mxu0 %v433
        %1153 = vmatprep.subr.bf16.mxu0 0
        %1154 = vmatpush2.bf16.msra.mxu0 0
        %1155 = vmatprep.subr.bf16.mxu0 0
        %1156 = vmatpush2.bf16.msra.mxu0 0
        %1157 = vmatprep.subr.bf16.mxu0 0
        %1158 = vmatpush2.bf16.msra.mxu0 0
        %1159 = vmatprep.subr.bf16.mxu0 0
        %1160 = vmatpush2.bf16.msra.mxu0 0
        %1161 = vmatprep.subr.bf16.mxu0 0
        %1162 = vmatpush2.bf16.msra.mxu0 0
        %1163 = vmatprep.subr.bf16.mxu0 0
        %1164 = vmatpush2.bf16.msra.mxu0 0
        %1165 = vmatprep.subr.bf16.mxu0 0
        %1166 = vmatpush2.bf16.msra.mxu0 0
        %1167 = vmatprep.subr.bf16.mxu0 0
        %1168 = vmatpush2.bf16.msra.mxu0 0
        %1169 = vmatprep.mubr.bf16.mxu0 0
        %1170 = vmatmul.mubr.bf16.gmra.mxu0 %v1135
        %v1171 = vpop.f32.mrf.mxu0
        %v1172 = vadd.f32 0.0, %v1171
        %v1173 = vpop.f32.mrf.mxu0
        %v1174 = vpop.f32.mrf.mxu0
        %v1175 = vpop.f32.mrf.mxu0
        %1176 = vdwg.mxu0
        %v1177 = vadd.f32 %v1124, %v1172
        %v1178 = vsub.f32 %v1010, %v1027
        %v1179 = vmul.f32 %v1178, %v1032
        %v1180 = vmul.f32 %v1179, %v484
        %v1181 = vadd.f32 %v1180, %v488
        %v1182 = vpack.c.bf16 %v1181, %v1181
        %v1184 = vsel %vm256, %v1182, 0
        %1186 = vmatprep.subr.bf16.mxu0 0
        %1187 = vmatpush1.bf16.msra.mxu0 0
        %1188 = vmatprep.subr.bf16.mxu0 0
        %1189 = vmatpush1.bf16.msra.mxu0 0
        %1190 = vmatprep.subr.bf16.mxu0 0
        %1191 = vmatpush1.bf16.msra.mxu0 0
        %1192 = vmatprep.subr.bf16.mxu0 0
        %1193 = vmatpush1.bf16.msra.mxu0 0
        %1194 = vmatprep.subr.bf16.mxu0 0
        %1195 = vmatpush1.bf16.msra.mxu0 0
        %1196 = vmatprep.subr.bf16.mxu0 0
        %1197 = vmatpush1.bf16.msra.mxu0 0
        %1198 = vmatprep.subr.bf16.mxu0 0
        %1199 = vmatpush1.bf16.msra.mxu0 %v501
        %1200 = vmatprep.subr.bf16.mxu0 0
        %1201 = vmatpush1.bf16.msra.mxu0 %v500
        %1202 = vmatprep.subr.bf16.mxu0 0
        %1203 = vmatpush2.bf16.msra.mxu0 0
        %1204 = vmatprep.subr.bf16.mxu0 0
        %1205 = vmatpush2.bf16.msra.mxu0 0
        %1206 = vmatprep.subr.bf16.mxu0 0
        %1207 = vmatpush2.bf16.msra.mxu0 0
        %1208 = vmatprep.subr.bf16.mxu0 0
        %1209 = vmatpush2.bf16.msra.mxu0 0
        %1210 = vmatprep.subr.bf16.mxu0 0
        %1211 = vmatpush2.bf16.msra.mxu0 0
        %1212 = vmatprep.subr.bf16.mxu0 0
        %1213 = vmatpush2.bf16.msra.mxu0 0
        %1214 = vmatprep.subr.bf16.mxu0 0
        %1215 = vmatpush2.bf16.msra.mxu0 0
        %1216 = vmatprep.subr.bf16.mxu0 0
        %1217 = vmatpush2.bf16.msra.mxu0 0
        %1218 = vmatprep.mubr.bf16.mxu0 0
        %1219 = vmatmul.mubr.bf16.gmra.mxu0 %v1184
        %v1220 = vpop.f32.mrf.mxu0
        %v1221 = vadd.f32 0.0, %v1220
        %v1222 = vpop.f32.mrf.mxu0
        %v1223 = vpop.f32.mrf.mxu0
        %v1224 = vpop.f32.mrf.mxu0
        %1225 = vdwg.mxu0
        %v1226 = vadd.f32 %v1177, %v1221
        %v1227 = vpack.c.bf16 %v1226, %v1226
        %1228 = vst.msk [vmem:[%s215 + $0xc] sm:$0xf] %vm549, %v1227
        %s1229 = scalar_lea.vmem %s224, 128
        %v1230 = vld [vmem:[%s1229] ss:$2 sm:$0xff]
        %s1231 = scalar_lea.vmem %s224, 144
        %v1232 = vld [vmem:[%s1231] ss:$2 sm:$0xff]
        %s1233 = scalar_lea.vmem %s224, 129
        %v1234 = vld [vmem:[%s1233] ss:$2 sm:$0xff]
        %s1235 = scalar_lea.vmem %s224, 145
        %v1236 = vld [vmem:[%s1235] ss:$2 sm:$0xff]
        %v1237 = vadd.f32 %v1230, %v1232
        %v1238 = vadd.f32 %v1237, %v1234
        %v1239 = vadd.f32 %v1238, %v1236
        %v1240 = vsel %vm256, %v1239, 0.0
        %1241 = vadd.xlane.f32.xlu0 %v1240
        %v1242 = vpop.xlane.xlu0 %1241
        %v1243 = vmul.f32 %v1230, %v1230
        %v1244 = vmul.f32 %v1232, %v1232
        %v1245 = vadd.f32 %v1243, %v1244
        %v1246 = vmul.f32 %v1234, %v1234
        %v1247 = vadd.f32 %v1245, %v1246
        %v1248 = vmul.f32 %v1236, %v1236
        %v1249 = vadd.f32 %v1247, %v1248
        %v1250 = vsel %vm256, %v1249, 0.0
        %1251 = vadd.xlane.f32.xlu0 %v1250
        %v1252 = vpop.xlane.xlu0 %1251
        %v1253 = vmul.f32 %v1242, 0.0078125
        %v1254 = vmul.f32 %v1252, 0.0078125
        %v1255 = vmul.f32 %v1253, %v1253
        %v1256 = vsub.f32 %v1254, %v1255
        %v1257 = vadd.f32 %v1256, 1e-05
        %v1258 = vrsqrt.pop %v1257
        %v1259 = vsub.f32 %v1230, %v1253
        %v1260 = vmul.f32 %v1259, %v1258
        %v1261 = vmul.f32 %v1260, %v282
        %v1262 = vadd.f32 %v1261, %v289
        %v1263 = vpack.c.bf16 %v1262, %v1262
        %v1264 = vsub.f32 %v1232, %v1253
        %v1265 = vmul.f32 %v1264, %v1258
        %v1266 = vmul.f32 %v1265, %v296
        %v1267 = vadd.f32 %v1266, %v300
        %v1268 = vpack.c.bf16 %v1267, %v1267
        %v1270 = vsel %vm256, %v1268, 0
        %1272 = vmatprep.subr.bf16.mxu0 0
        %1273 = vmatpush1.bf16.msra.mxu0 0
        %1274 = vmatprep.subr.bf16.mxu0 0
        %1275 = vmatpush1.bf16.msra.mxu0 0
        %1276 = vmatprep.subr.bf16.mxu0 0
        %1277 = vmatpush1.bf16.msra.mxu0 0
        %1278 = vmatprep.subr.bf16.mxu0 0
        %1279 = vmatpush1.bf16.msra.mxu0 0
        %1280 = vmatprep.subr.bf16.mxu0 0
        %1281 = vmatpush1.bf16.msra.mxu0 0
        %1282 = vmatprep.subr.bf16.mxu0 0
        %1283 = vmatpush1.bf16.msra.mxu0 0
        %1284 = vmatprep.subr.bf16.mxu0 0
        %1285 = vmatpush1.bf16.msra.mxu0 %v313
        %1286 = vmatprep.subr.bf16.mxu0 0
        %1287 = vmatpush1.bf16.msra.mxu0 %v312
        %1288 = vmatprep.subr.bf16.mxu0 0
        %1289 = vmatpush2.bf16.msra.mxu0 0
        %1290 = vmatprep.subr.bf16.mxu0 0
        %1291 = vmatpush2.bf16.msra.mxu0 0
        %1292 = vmatprep.subr.bf16.mxu0 0
        %1293 = vmatpush2.bf16.msra.mxu0 0
        %1294 = vmatprep.subr.bf16.mxu0 0
        %1295 = vmatpush2.bf16.msra.mxu0 0
        %1296 = vmatprep.subr.bf16.mxu0 0
        %1297 = vmatpush2.bf16.msra.mxu0 0
        %1298 = vmatprep.subr.bf16.mxu0 0
        %1299 = vmatpush2.bf16.msra.mxu0 0
        %1300 = vmatprep.subr.bf16.mxu0 0
        %1301 = vmatpush2.bf16.msra.mxu0 0
        %1302 = vmatprep.subr.bf16.mxu0 0
        %1303 = vmatpush2.bf16.msra.mxu0 0
        %1304 = vmatprep.mubr.bf16.mxu0 0
        %1305 = vmatmul.mubr.bf16.gmra.mxu0 %v1270
        %v1306 = vpop.f32.mrf.mxu0
        %v1307 = vadd.f32 0.0, %v1306
        %v1308 = vpop.f32.mrf.mxu0
        %v1309 = vpop.f32.mrf.mxu0
        %v1310 = vpop.f32.mrf.mxu0
        %1311 = vdwg.mxu0
        %v1313 = vsel %vm256, %v1263, 0
        %1315 = vmatprep.subr.bf16.mxu0 0
        %1316 = vmatpush1.bf16.msra.mxu0 0
        %1317 = vmatprep.subr.bf16.mxu0 0
        %1318 = vmatpush1.bf16.msra.mxu0 0
        %1319 = vmatprep.subr.bf16.mxu0 0
        %1320 = vmatpush1.bf16.msra.mxu0 0
        %1321 = vmatprep.subr.bf16.mxu0 0
        %1322 = vmatpush1.bf16.msra.mxu0 0
        %1323 = vmatprep.subr.bf16.mxu0 0
        %1324 = vmatpush1.bf16.msra.mxu0 0
        %1325 = vmatprep.subr.bf16.mxu0 0
        %1326 = vmatpush1.bf16.msra.mxu0 0
        %1327 = vmatprep.subr.bf16.mxu0 0
        %1328 = vmatpush1.bf16.msra.mxu0 %v368
        %1329 = vmatprep.subr.bf16.mxu0 0
        %1330 = vmatpush1.bf16.msra.mxu0 %v367
        %1331 = vmatprep.subr.bf16.mxu0 0
        %1332 = vmatpush2.bf16.msra.mxu0 0
        %1333 = vmatprep.subr.bf16.mxu0 0
        %1334 = vmatpush2.bf16.msra.mxu0 0
        %1335 = vmatprep.subr.bf16.mxu0 0
        %1336 = vmatpush2.bf16.msra.mxu0 0
        %1337 = vmatprep.subr.bf16.mxu0 0
        %1338 = vmatpush2.bf16.msra.mxu0 0
        %1339 = vmatprep.subr.bf16.mxu0 0
        %1340 = vmatpush2.bf16.msra.mxu0 0
        %1341 = vmatprep.subr.bf16.mxu0 0
        %1342 = vmatpush2.bf16.msra.mxu0 0
        %1343 = vmatprep.subr.bf16.mxu0 0
        %1344 = vmatpush2.bf16.msra.mxu0 0
        %1345 = vmatprep.subr.bf16.mxu0 0
        %1346 = vmatpush2.bf16.msra.mxu0 0
        %1347 = vmatprep.mubr.bf16.mxu0 0
        %1348 = vmatmul.mubr.bf16.gmra.mxu0 %v1313
        %v1349 = vpop.f32.mrf.mxu0
        %v1350 = vadd.f32 %v1307, %v1349
        %v1351 = vpop.f32.mrf.mxu0
        %v1352 = vpop.f32.mrf.mxu0
        %v1353 = vpop.f32.mrf.mxu0
        %1354 = vdwg.mxu0
        %v1355 = vsub.f32 %v1234, %v1253
        %v1356 = vmul.f32 %v1355, %v1258
        %v1357 = vmul.f32 %v1356, %v417
        %v1358 = vadd.f32 %v1357, %v421
        %v1359 = vpack.c.bf16 %v1358, %v1358
        %v1361 = vsel %vm256, %v1359, 0
        %1363 = vmatprep.subr.bf16.mxu0 0
        %1364 = vmatpush1.bf16.msra.mxu0 0
        %1365 = vmatprep.subr.bf16.mxu0 0
        %1366 = vmatpush1.bf16.msra.mxu0 0
        %1367 = vmatprep.subr.bf16.mxu0 0
        %1368 = vmatpush1.bf16.msra.mxu0 0
        %1369 = vmatprep.subr.bf16.mxu0 0
        %1370 = vmatpush1.bf16.msra.mxu0 0
        %1371 = vmatprep.subr.bf16.mxu0 0
        %1372 = vmatpush1.bf16.msra.mxu0 0
        %1373 = vmatprep.subr.bf16.mxu0 0
        %1374 = vmatpush1.bf16.msra.mxu0 0
        %1375 = vmatprep.subr.bf16.mxu0 0
        %1376 = vmatpush1.bf16.msra.mxu0 %v434
        %1377 = vmatprep.subr.bf16.mxu0 0
        %1378 = vmatpush1.bf16.msra.mxu0 %v433
        %1379 = vmatprep.subr.bf16.mxu0 0
        %1380 = vmatpush2.bf16.msra.mxu0 0
        %1381 = vmatprep.subr.bf16.mxu0 0
        %1382 = vmatpush2.bf16.msra.mxu0 0
        %1383 = vmatprep.subr.bf16.mxu0 0
        %1384 = vmatpush2.bf16.msra.mxu0 0
        %1385 = vmatprep.subr.bf16.mxu0 0
        %1386 = vmatpush2.bf16.msra.mxu0 0
        %1387 = vmatprep.subr.bf16.mxu0 0
        %1388 = vmatpush2.bf16.msra.mxu0 0
        %1389 = vmatprep.subr.bf16.mxu0 0
        %1390 = vmatpush2.bf16.msra.mxu0 0
        %1391 = vmatprep.subr.bf16.mxu0 0
        %1392 = vmatpush2.bf16.msra.mxu0 0
        %1393 = vmatprep.subr.bf16.mxu0 0
        %1394 = vmatpush2.bf16.msra.mxu0 0
        %1395 = vmatprep.mubr.bf16.mxu0 0
        %1396 = vmatmul.mubr.bf16.gmra.mxu0 %v1361
        %v1397 = vpop.f32.mrf.mxu0
        %v1398 = vadd.f32 0.0, %v1397
        %v1399 = vpop.f32.mrf.mxu0
        %v1400 = vpop.f32.mrf.mxu0
        %v1401 = vpop.f32.mrf.mxu0
        %1402 = vdwg.mxu0
        %v1403 = vadd.f32 %v1350, %v1398
        %v1404 = vsub.f32 %v1236, %v1253
        %v1405 = vmul.f32 %v1404, %v1258
        %v1406 = vmul.f32 %v1405, %v484
        %v1407 = vadd.f32 %v1406, %v488
        %v1408 = vpack.c.bf16 %v1407, %v1407
        %v1410 = vsel %vm256, %v1408, 0
        %1412 = vmatprep.subr.bf16.mxu0 0
        %1413 = vmatpush1.bf16.msra.mxu0 0
        %1414 = vmatprep.subr.bf16.mxu0 0
        %1415 = vmatpush1.bf16.msra.mxu0 0
        %1416 = vmatprep.subr.bf16.mxu0 0
        %1417 = vmatpush1.bf16.msra.mxu0 0
        %1418 = vmatprep.subr.bf16.mxu0 0
        %1419 = vmatpush1.bf16.msra.mxu0 0
        %1420 = vmatprep.subr.bf16.mxu0 0
        %1421 = vmatpush1.bf16.msra.mxu0 0
        %1422 = vmatprep.subr.bf16.mxu0 0
        %1423 = vmatpush1.bf16.msra.mxu0 0
        %1424 = vmatprep.subr.bf16.mxu0 0
        %1425 = vmatpush1.bf16.msra.mxu0 %v501
        %1426 = vmatprep.subr.bf16.mxu0 0
        %1427 = vmatpush1.bf16.msra.mxu0 %v500
        %1428 = vmatprep.subr.bf16.mxu0 0
        %1429 = vmatpush2.bf16.msra.mxu0 0
        %1430 = vmatprep.subr.bf16.mxu0 0
        %1431 = vmatpush2.bf16.msra.mxu0 0
        %1432 = vmatprep.subr.bf16.mxu0 0
        %1433 = vmatpush2.bf16.msra.mxu0 0
        %1434 = vmatprep.subr.bf16.mxu0 0
        %1435 = vmatpush2.bf16.msra.mxu0 0
        %1436 = vmatprep.subr.bf16.mxu0 0
        %1437 = vmatpush2.bf16.msra.mxu0 0
        %1438 = vmatprep.subr.bf16.mxu0 0
        %1439 = vmatpush2.bf16.msra.mxu0 0
        %1440 = vmatprep.subr.bf16.mxu0 0
        %1441 = vmatpush2.bf16.msra.mxu0 0
        %1442 = vmatprep.subr.bf16.mxu0 0
        %1443 = vmatpush2.bf16.msra.mxu0 0
        %1444 = vmatprep.mubr.bf16.mxu0 0
        %1445 = vmatmul.mubr.bf16.gmra.mxu0 %v1410
        %v1446 = vpop.f32.mrf.mxu0
        %v1447 = vadd.f32 0.0, %v1446
        %v1448 = vpop.f32.mrf.mxu0
        %v1449 = vpop.f32.mrf.mxu0
        %v1450 = vpop.f32.mrf.mxu0
        %1451 = vdwg.mxu0
        %v1452 = vadd.f32 %v1403, %v1447
        %v1453 = vpack.c.bf16 %v1452, %v1452
        %1454 = vst.msk [vmem:[%s215 + $0x10] sm:$0xf] %vm549, %v1453
        %s1455 = scalar_lea.vmem %s224, 160
        %v1456 = vld [vmem:[%s1455] ss:$2 sm:$0xff]
        %s1457 = scalar_lea.vmem %s224, 176
        %v1458 = vld [vmem:[%s1457] ss:$2 sm:$0xff]
        %s1459 = scalar_lea.vmem %s224, 161
        %v1460 = vld [vmem:[%s1459] ss:$2 sm:$0xff]
        %s1461 = scalar_lea.vmem %s224, 177
        %v1462 = vld [vmem:[%s1461] ss:$2 sm:$0xff]
        %v1463 = vadd.f32 %v1456, %v1458
        %v1464 = vadd.f32 %v1463, %v1460
        %v1465 = vadd.f32 %v1464, %v1462
        %v1466 = vsel %vm256, %v1465, 0.0
        %1467 = vadd.xlane.f32.xlu0 %v1466
        %v1468 = vpop.xlane.xlu0 %1467
        %v1469 = vmul.f32 %v1456, %v1456
        %v1470 = vmul.f32 %v1458, %v1458
        %v1471 = vadd.f32 %v1469, %v1470
        %v1472 = vmul.f32 %v1460, %v1460
        %v1473 = vadd.f32 %v1471, %v1472
        %v1474 = vmul.f32 %v1462, %v1462
        %v1475 = vadd.f32 %v1473, %v1474
        %v1476 = vsel %vm256, %v1475, 0.0
        %1477 = vadd.xlane.f32.xlu0 %v1476
        %v1478 = vpop.xlane.xlu0 %1477
        %v1479 = vmul.f32 %v1468, 0.0078125
        %v1480 = vmul.f32 %v1478, 0.0078125
        %v1481 = vmul.f32 %v1479, %v1479
        %v1482 = vsub.f32 %v1480, %v1481
        %v1483 = vadd.f32 %v1482, 1e-05
        %v1484 = vrsqrt.pop %v1483
        %v1485 = vsub.f32 %v1456, %v1479
        %v1486 = vmul.f32 %v1485, %v1484
        %v1487 = vmul.f32 %v1486, %v282
        %v1488 = vadd.f32 %v1487, %v289
        %v1489 = vpack.c.bf16 %v1488, %v1488
        %v1490 = vsub.f32 %v1458, %v1479
        %v1491 = vmul.f32 %v1490, %v1484
        %v1492 = vmul.f32 %v1491, %v296
        %v1493 = vadd.f32 %v1492, %v300
        %v1494 = vpack.c.bf16 %v1493, %v1493
        %v1496 = vsel %vm256, %v1494, 0
        %1498 = vmatprep.subr.bf16.mxu0 0
        %1499 = vmatpush1.bf16.msra.mxu0 0
        %1500 = vmatprep.subr.bf16.mxu0 0
        %1501 = vmatpush1.bf16.msra.mxu0 0
        %1502 = vmatprep.subr.bf16.mxu0 0
        %1503 = vmatpush1.bf16.msra.mxu0 0
        %1504 = vmatprep.subr.bf16.mxu0 0
        %1505 = vmatpush1.bf16.msra.mxu0 0
        %1506 = vmatprep.subr.bf16.mxu0 0
        %1507 = vmatpush1.bf16.msra.mxu0 0
        %1508 = vmatprep.subr.bf16.mxu0 0
        %1509 = vmatpush1.bf16.msra.mxu0 0
        %1510 = vmatprep.subr.bf16.mxu0 0
        %1511 = vmatpush1.bf16.msra.mxu0 %v313
        %1512 = vmatprep.subr.bf16.mxu0 0
        %1513 = vmatpush1.bf16.msra.mxu0 %v312
        %1514 = vmatprep.subr.bf16.mxu0 0
        %1515 = vmatpush2.bf16.msra.mxu0 0
        %1516 = vmatprep.subr.bf16.mxu0 0
        %1517 = vmatpush2.bf16.msra.mxu0 0
        %1518 = vmatprep.subr.bf16.mxu0 0
        %1519 = vmatpush2.bf16.msra.mxu0 0
        %1520 = vmatprep.subr.bf16.mxu0 0
        %1521 = vmatpush2.bf16.msra.mxu0 0
        %1522 = vmatprep.subr.bf16.mxu0 0
        %1523 = vmatpush2.bf16.msra.mxu0 0
        %1524 = vmatprep.subr.bf16.mxu0 0
        %1525 = vmatpush2.bf16.msra.mxu0 0
        %1526 = vmatprep.subr.bf16.mxu0 0
        %1527 = vmatpush2.bf16.msra.mxu0 0
        %1528 = vmatprep.subr.bf16.mxu0 0
        %1529 = vmatpush2.bf16.msra.mxu0 0
        %1530 = vmatprep.mubr.bf16.mxu0 0
        %1531 = vmatmul.mubr.bf16.gmra.mxu0 %v1496
        %v1532 = vpop.f32.mrf.mxu0
        %v1533 = vadd.f32 0.0, %v1532
        %v1534 = vpop.f32.mrf.mxu0
        %v1535 = vpop.f32.mrf.mxu0
        %v1536 = vpop.f32.mrf.mxu0
        %1537 = vdwg.mxu0
        %v1539 = vsel %vm256, %v1489, 0
        %1541 = vmatprep.subr.bf16.mxu0 0
        %1542 = vmatpush1.bf16.msra.mxu0 0
        %1543 = vmatprep.subr.bf16.mxu0 0
        %1544 = vmatpush1.bf16.msra.mxu0 0
        %1545 = vmatprep.subr.bf16.mxu0 0
        %1546 = vmatpush1.bf16.msra.mxu0 0
        %1547 = vmatprep.subr.bf16.mxu0 0
        %1548 = vmatpush1.bf16.msra.mxu0 0
        %1549 = vmatprep.subr.bf16.mxu0 0
        %1550 = vmatpush1.bf16.msra.mxu0 0
        %1551 = vmatprep.subr.bf16.mxu0 0
        %1552 = vmatpush1.bf16.msra.mxu0 0
        %1553 = vmatprep.subr.bf16.mxu0 0
        %1554 = vmatpush1.bf16.msra.mxu0 %v368
        %1555 = vmatprep.subr.bf16.mxu0 0
        %1556 = vmatpush1.bf16.msra.mxu0 %v367
        %1557 = vmatprep.subr.bf16.mxu0 0
        %1558 = vmatpush2.bf16.msra.mxu0 0
        %1559 = vmatprep.subr.bf16.mxu0 0
        %1560 = vmatpush2.bf16.msra.mxu0 0
        %1561 = vmatprep.subr.bf16.mxu0 0
        %1562 = vmatpush2.bf16.msra.mxu0 0
        %1563 = vmatprep.subr.bf16.mxu0 0
        %1564 = vmatpush2.bf16.msra.mxu0 0
        %1565 = vmatprep.subr.bf16.mxu0 0
        %1566 = vmatpush2.bf16.msra.mxu0 0
        %1567 = vmatprep.subr.bf16.mxu0 0
        %1568 = vmatpush2.bf16.msra.mxu0 0
        %1569 = vmatprep.subr.bf16.mxu0 0
        %1570 = vmatpush2.bf16.msra.mxu0 0
        %1571 = vmatprep.subr.bf16.mxu0 0
        %1572 = vmatpush2.bf16.msra.mxu0 0
        %1573 = vmatprep.mubr.bf16.mxu0 0
        %1574 = vmatmul.mubr.bf16.gmra.mxu0 %v1539
        %v1575 = vpop.f32.mrf.mxu0
        %v1576 = vadd.f32 %v1533, %v1575
        %v1577 = vpop.f32.mrf.mxu0
        %v1578 = vpop.f32.mrf.mxu0
        %v1579 = vpop.f32.mrf.mxu0
        %1580 = vdwg.mxu0
        %v1581 = vsub.f32 %v1460, %v1479
        %v1582 = vmul.f32 %v1581, %v1484
        %v1583 = vmul.f32 %v1582, %v417
        %v1584 = vadd.f32 %v1583, %v421
        %v1585 = vpack.c.bf16 %v1584, %v1584
        %v1587 = vsel %vm256, %v1585, 0
        %1589 = vmatprep.subr.bf16.mxu0 0
        %1590 = vmatpush1.bf16.msra.mxu0 0
        %1591 = vmatprep.subr.bf16.mxu0 0
        %1592 = vmatpush1.bf16.msra.mxu0 0
        %1593 = vmatprep.subr.bf16.mxu0 0
        %1594 = vmatpush1.bf16.msra.mxu0 0
        %1595 = vmatprep.subr.bf16.mxu0 0
        %1596 = vmatpush1.bf16.msra.mxu0 0
        %1597 = vmatprep.subr.bf16.mxu0 0
        %1598 = vmatpush1.bf16.msra.mxu0 0
        %1599 = vmatprep.subr.bf16.mxu0 0
        %1600 = vmatpush1.bf16.msra.mxu0 0
        %1601 = vmatprep.subr.bf16.mxu0 0
        %1602 = vmatpush1.bf16.msra.mxu0 %v434
        %1603 = vmatprep.subr.bf16.mxu0 0
        %1604 = vmatpush1.bf16.msra.mxu0 %v433
        %1605 = vmatprep.subr.bf16.mxu0 0
        %1606 = vmatpush2.bf16.msra.mxu0 0
        %1607 = vmatprep.subr.bf16.mxu0 0
        %1608 = vmatpush2.bf16.msra.mxu0 0
        %1609 = vmatprep.subr.bf16.mxu0 0
        %1610 = vmatpush2.bf16.msra.mxu0 0
        %1611 = vmatprep.subr.bf16.mxu0 0
        %1612 = vmatpush2.bf16.msra.mxu0 0
        %1613 = vmatprep.subr.bf16.mxu0 0
        %1614 = vmatpush2.bf16.msra.mxu0 0
        %1615 = vmatprep.subr.bf16.mxu0 0
        %1616 = vmatpush2.bf16.msra.mxu0 0
        %1617 = vmatprep.subr.bf16.mxu0 0
        %1618 = vmatpush2.bf16.msra.mxu0 0
        %1619 = vmatprep.subr.bf16.mxu0 0
        %1620 = vmatpush2.bf16.msra.mxu0 0
        %1621 = vmatprep.mubr.bf16.mxu0 0
        %1622 = vmatmul.mubr.bf16.gmra.mxu0 %v1587
        %v1623 = vpop.f32.mrf.mxu0
        %v1624 = vadd.f32 0.0, %v1623
        %v1625 = vpop.f32.mrf.mxu0
        %v1626 = vpop.f32.mrf.mxu0
        %v1627 = vpop.f32.mrf.mxu0
        %1628 = vdwg.mxu0
        %v1629 = vadd.f32 %v1576, %v1624
        %v1630 = vsub.f32 %v1462, %v1479
        %v1631 = vmul.f32 %v1630, %v1484
        %v1632 = vmul.f32 %v1631, %v484
        %v1633 = vadd.f32 %v1632, %v488
        %v1634 = vpack.c.bf16 %v1633, %v1633
        %v1636 = vsel %vm256, %v1634, 0
        %1638 = vmatprep.subr.bf16.mxu0 0
        %1639 = vmatpush1.bf16.msra.mxu0 0
        %1640 = vmatprep.subr.bf16.mxu0 0
        %1641 = vmatpush1.bf16.msra.mxu0 0
        %1642 = vmatprep.subr.bf16.mxu0 0
        %1643 = vmatpush1.bf16.msra.mxu0 0
        %1644 = vmatprep.subr.bf16.mxu0 0
        %1645 = vmatpush1.bf16.msra.mxu0 0
        %1646 = vmatprep.subr.bf16.mxu0 0
        %1647 = vmatpush1.bf16.msra.mxu0 0
        %1648 = vmatprep.subr.bf16.mxu0 0
        %1649 = vmatpush1.bf16.msra.mxu0 0
        %1650 = vmatprep.subr.bf16.mxu0 0
        %1651 = vmatpush1.bf16.msra.mxu0 %v501
        %1652 = vmatprep.subr.bf16.mxu0 0
        %1653 = vmatpush1.bf16.msra.mxu0 %v500
        %1654 = vmatprep.subr.bf16.mxu0 0
        %1655 = vmatpush2.bf16.msra.mxu0 0
        %1656 = vmatprep.subr.bf16.mxu0 0
        %1657 = vmatpush2.bf16.msra.mxu0 0
        %1658 = vmatprep.subr.bf16.mxu0 0
        %1659 = vmatpush2.bf16.msra.mxu0 0
        %1660 = vmatprep.subr.bf16.mxu0 0
        %1661 = vmatpush2.bf16.msra.mxu0 0
        %1662 = vmatprep.subr.bf16.mxu0 0
        %1663 = vmatpush2.bf16.msra.mxu0 0
        %1664 = vmatprep.subr.bf16.mxu0 0
        %1665 = vmatpush2.bf16.msra.mxu0 0
        %1666 = vmatprep.subr.bf16.mxu0 0
        %1667 = vmatpush2.bf16.msra.mxu0 0
        %1668 = vmatprep.subr.bf16.mxu0 0
        %1669 = vmatpush2.bf16.msra.mxu0 0
        %1670 = vmatprep.mubr.bf16.mxu0 0
        %1671 = vmatmul.mubr.bf16.gmra.mxu0 %v1636
        %v1672 = vpop.f32.mrf.mxu0
        %v1673 = vadd.f32 0.0, %v1672
        %v1674 = vpop.f32.mrf.mxu0
        %v1675 = vpop.f32.mrf.mxu0
        %v1676 = vpop.f32.mrf.mxu0
        %1677 = vdwg.mxu0
        %v1678 = vadd.f32 %v1629, %v1673
        %v1679 = vpack.c.bf16 %v1678, %v1678
        %1680 = vst.msk [vmem:[%s215 + $0x14] sm:$0xf] %vm549, %v1679
        %s1681 = scalar_lea.vmem %s224, 192
        %v1682 = vld [vmem:[%s1681] ss:$2 sm:$0xff]
        %s1683 = scalar_lea.vmem %s224, 208
        %v1684 = vld [vmem:[%s1683] ss:$2 sm:$0xff]
        %s1685 = scalar_lea.vmem %s224, 193
        %v1686 = vld [vmem:[%s1685] ss:$2 sm:$0xff]
        %s1687 = scalar_lea.vmem %s224, 209
        %v1688 = vld [vmem:[%s1687] ss:$2 sm:$0xff]
        %v1689 = vadd.f32 %v1682, %v1684
        %v1690 = vadd.f32 %v1689, %v1686
        %v1691 = vadd.f32 %v1690, %v1688
        %v1692 = vsel %vm256, %v1691, 0.0
        %1693 = vadd.xlane.f32.xlu0 %v1692
        %v1694 = vpop.xlane.xlu0 %1693
        %v1695 = vmul.f32 %v1682, %v1682
        %v1696 = vmul.f32 %v1684, %v1684
        %v1697 = vadd.f32 %v1695, %v1696
        %v1698 = vmul.f32 %v1686, %v1686
        %v1699 = vadd.f32 %v1697, %v1698
        %v1700 = vmul.f32 %v1688, %v1688
        %v1701 = vadd.f32 %v1699, %v1700
        %v1702 = vsel %vm256, %v1701, 0.0
        %1703 = vadd.xlane.f32.xlu0 %v1702
        %v1704 = vpop.xlane.xlu0 %1703
        %v1705 = vmul.f32 %v1694, 0.0078125
        %v1706 = vmul.f32 %v1704, 0.0078125
        %v1707 = vmul.f32 %v1705, %v1705
        %v1708 = vsub.f32 %v1706, %v1707
        %v1709 = vadd.f32 %v1708, 1e-05
        %v1710 = vrsqrt.pop %v1709
        %v1711 = vsub.f32 %v1682, %v1705
        %v1712 = vmul.f32 %v1711, %v1710
        %v1713 = vmul.f32 %v1712, %v282
        %v1714 = vadd.f32 %v1713, %v289
        %v1715 = vpack.c.bf16 %v1714, %v1714
        %v1716 = vsub.f32 %v1684, %v1705
        %v1717 = vmul.f32 %v1716, %v1710
        %v1718 = vmul.f32 %v1717, %v296
        %v1719 = vadd.f32 %v1718, %v300
        %v1720 = vpack.c.bf16 %v1719, %v1719
        %v1722 = vsel %vm256, %v1720, 0
        %1724 = vmatprep.subr.bf16.mxu0 0
        %1725 = vmatpush1.bf16.msra.mxu0 0
        %1726 = vmatprep.subr.bf16.mxu0 0
        %1727 = vmatpush1.bf16.msra.mxu0 0
        %1728 = vmatprep.subr.bf16.mxu0 0
        %1729 = vmatpush1.bf16.msra.mxu0 0
        %1730 = vmatprep.subr.bf16.mxu0 0
        %1731 = vmatpush1.bf16.msra.mxu0 0
        %1732 = vmatprep.subr.bf16.mxu0 0
        %1733 = vmatpush1.bf16.msra.mxu0 0
        %1734 = vmatprep.subr.bf16.mxu0 0
        %1735 = vmatpush1.bf16.msra.mxu0 0
        %1736 = vmatprep.subr.bf16.mxu0 0
        %1737 = vmatpush1.bf16.msra.mxu0 %v313
        %1738 = vmatprep.subr.bf16.mxu0 0
        %1739 = vmatpush1.bf16.msra.mxu0 %v312
        %1740 = vmatprep.subr.bf16.mxu0 0
        %1741 = vmatpush2.bf16.msra.mxu0 0
        %1742 = vmatprep.subr.bf16.mxu0 0
        %1743 = vmatpush2.bf16.msra.mxu0 0
        %1744 = vmatprep.subr.bf16.mxu0 0
        %1745 = vmatpush2.bf16.msra.mxu0 0
        %1746 = vmatprep.subr.bf16.mxu0 0
        %1747 = vmatpush2.bf16.msra.mxu0 0
        %1748 = vmatprep.subr.bf16.mxu0 0
        %1749 = vmatpush2.bf16.msra.mxu0 0
        %1750 = vmatprep.subr.bf16.mxu0 0
        %1751 = vmatpush2.bf16.msra.mxu0 0
        %1752 = vmatprep.subr.bf16.mxu0 0
        %1753 = vmatpush2.bf16.msra.mxu0 0
        %1754 = vmatprep.subr.bf16.mxu0 0
        %1755 = vmatpush2.bf16.msra.mxu0 0
        %1756 = vmatprep.mubr.bf16.mxu0 0
        %1757 = vmatmul.mubr.bf16.gmra.mxu0 %v1722
        %v1758 = vpop.f32.mrf.mxu0
        %v1759 = vadd.f32 0.0, %v1758
        %v1760 = vpop.f32.mrf.mxu0
        %v1761 = vpop.f32.mrf.mxu0
        %v1762 = vpop.f32.mrf.mxu0
        %1763 = vdwg.mxu0
        %v1765 = vsel %vm256, %v1715, 0
        %1767 = vmatprep.subr.bf16.mxu0 0
        %1768 = vmatpush1.bf16.msra.mxu0 0
        %1769 = vmatprep.subr.bf16.mxu0 0
        %1770 = vmatpush1.bf16.msra.mxu0 0
        %1771 = vmatprep.subr.bf16.mxu0 0
        %1772 = vmatpush1.bf16.msra.mxu0 0
        %1773 = vmatprep.subr.bf16.mxu0 0
        %1774 = vmatpush1.bf16.msra.mxu0 0
        %1775 = vmatprep.subr.bf16.mxu0 0
        %1776 = vmatpush1.bf16.msra.mxu0 0
        %1777 = vmatprep.subr.bf16.mxu0 0
        %1778 = vmatpush1.bf16.msra.mxu0 0
        %1779 = vmatprep.subr.bf16.mxu0 0
        %1780 = vmatpush1.bf16.msra.mxu0 %v368
        %1781 = vmatprep.subr.bf16.mxu0 0
        %1782 = vmatpush1.bf16.msra.mxu0 %v367
        %1783 = vmatprep.subr.bf16.mxu0 0
        %1784 = vmatpush2.bf16.msra.mxu0 0
        %1785 = vmatprep.subr.bf16.mxu0 0
        %1786 = vmatpush2.bf16.msra.mxu0 0
        %1787 = vmatprep.subr.bf16.mxu0 0
        %1788 = vmatpush2.bf16.msra.mxu0 0
        %1789 = vmatprep.subr.bf16.mxu0 0
        %1790 = vmatpush2.bf16.msra.mxu0 0
        %1791 = vmatprep.subr.bf16.mxu0 0
        %1792 = vmatpush2.bf16.msra.mxu0 0
        %1793 = vmatprep.subr.bf16.mxu0 0
        %1794 = vmatpush2.bf16.msra.mxu0 0
        %1795 = vmatprep.subr.bf16.mxu0 0
        %1796 = vmatpush2.bf16.msra.mxu0 0
        %1797 = vmatprep.subr.bf16.mxu0 0
        %1798 = vmatpush2.bf16.msra.mxu0 0
        %1799 = vmatprep.mubr.bf16.mxu0 0
        %1800 = vmatmul.mubr.bf16.gmra.mxu0 %v1765
        %v1801 = vpop.f32.mrf.mxu0
        %v1802 = vadd.f32 %v1759, %v1801
        %v1803 = vpop.f32.mrf.mxu0
        %v1804 = vpop.f32.mrf.mxu0
        %v1805 = vpop.f32.mrf.mxu0
        %1806 = vdwg.mxu0
        %v1807 = vsub.f32 %v1686, %v1705
        %v1808 = vmul.f32 %v1807, %v1710
        %v1809 = vmul.f32 %v1808, %v417
        %v1810 = vadd.f32 %v1809, %v421
        %v1811 = vpack.c.bf16 %v1810, %v1810
        %v1813 = vsel %vm256, %v1811, 0
        %1815 = vmatprep.subr.bf16.mxu0 0
        %1816 = vmatpush1.bf16.msra.mxu0 0
        %1817 = vmatprep.subr.bf16.mxu0 0
        %1818 = vmatpush1.bf16.msra.mxu0 0
        %1819 = vmatprep.subr.bf16.mxu0 0
        %1820 = vmatpush1.bf16.msra.mxu0 0
        %1821 = vmatprep.subr.bf16.mxu0 0
        %1822 = vmatpush1.bf16.msra.mxu0 0
        %1823 = vmatprep.subr.bf16.mxu0 0
        %1824 = vmatpush1.bf16.msra.mxu0 0
        %1825 = vmatprep.subr.bf16.mxu0 0
        %1826 = vmatpush1.bf16.msra.mxu0 0
        %1827 = vmatprep.subr.bf16.mxu0 0
        %1828 = vmatpush1.bf16.msra.mxu0 %v434
        %1829 = vmatprep.subr.bf16.mxu0 0
        %1830 = vmatpush1.bf16.msra.mxu0 %v433
        %1831 = vmatprep.subr.bf16.mxu0 0
        %1832 = vmatpush2.bf16.msra.mxu0 0
        %1833 = vmatprep.subr.bf16.mxu0 0
        %1834 = vmatpush2.bf16.msra.mxu0 0
        %1835 = vmatprep.subr.bf16.mxu0 0
        %1836 = vmatpush2.bf16.msra.mxu0 0
        %1837 = vmatprep.subr.bf16.mxu0 0
        %1838 = vmatpush2.bf16.msra.mxu0 0
        %1839 = vmatprep.subr.bf16.mxu0 0
        %1840 = vmatpush2.bf16.msra.mxu0 0
        %1841 = vmatprep.subr.bf16.mxu0 0
        %1842 = vmatpush2.bf16.msra.mxu0 0
        %1843 = vmatprep.subr.bf16.mxu0 0
        %1844 = vmatpush2.bf16.msra.mxu0 0
        %1845 = vmatprep.subr.bf16.mxu0 0
        %1846 = vmatpush2.bf16.msra.mxu0 0
        %1847 = vmatprep.mubr.bf16.mxu0 0
        %1848 = vmatmul.mubr.bf16.gmra.mxu0 %v1813
        %v1849 = vpop.f32.mrf.mxu0
        %v1850 = vadd.f32 0.0, %v1849
        %v1851 = vpop.f32.mrf.mxu0
        %v1852 = vpop.f32.mrf.mxu0
        %v1853 = vpop.f32.mrf.mxu0
        %1854 = vdwg.mxu0
        %v1855 = vadd.f32 %v1802, %v1850
        %v1856 = vsub.f32 %v1688, %v1705
        %v1857 = vmul.f32 %v1856, %v1710
        %v1858 = vmul.f32 %v1857, %v484
        %v1859 = vadd.f32 %v1858, %v488
        %v1860 = vpack.c.bf16 %v1859, %v1859
        %v1862 = vsel %vm256, %v1860, 0
        %1864 = vmatprep.subr.bf16.mxu0 0
        %1865 = vmatpush1.bf16.msra.mxu0 0
        %1866 = vmatprep.subr.bf16.mxu0 0
        %1867 = vmatpush1.bf16.msra.mxu0 0
        %1868 = vmatprep.subr.bf16.mxu0 0
        %1869 = vmatpush1.bf16.msra.mxu0 0
        %1870 = vmatprep.subr.bf16.mxu0 0
        %1871 = vmatpush1.bf16.msra.mxu0 0
        %1872 = vmatprep.subr.bf16.mxu0 0
        %1873 = vmatpush1.bf16.msra.mxu0 0
        %1874 = vmatprep.subr.bf16.mxu0 0
        %1875 = vmatpush1.bf16.msra.mxu0 0
        %1876 = vmatprep.subr.bf16.mxu0 0
        %1877 = vmatpush1.bf16.msra.mxu0 %v501
        %1878 = vmatprep.subr.bf16.mxu0 0
        %1879 = vmatpush1.bf16.msra.mxu0 %v500
        %1880 = vmatprep.subr.bf16.mxu0 0
        %1881 = vmatpush2.bf16.msra.mxu0 0
        %1882 = vmatprep.subr.bf16.mxu0 0
        %1883 = vmatpush2.bf16.msra.mxu0 0
        %1884 = vmatprep.subr.bf16.mxu0 0
        %1885 = vmatpush2.bf16.msra.mxu0 0
        %1886 = vmatprep.subr.bf16.mxu0 0
        %1887 = vmatpush2.bf16.msra.mxu0 0
        %1888 = vmatprep.subr.bf16.mxu0 0
        %1889 = vmatpush2.bf16.msra.mxu0 0
        %1890 = vmatprep.subr.bf16.mxu0 0
        %1891 = vmatpush2.bf16.msra.mxu0 0
        %1892 = vmatprep.subr.bf16.mxu0 0
        %1893 = vmatpush2.bf16.msra.mxu0 0
        %1894 = vmatprep.subr.bf16.mxu0 0
        %1895 = vmatpush2.bf16.msra.mxu0 0
        %1896 = vmatprep.mubr.bf16.mxu0 0
        %1897 = vmatmul.mubr.bf16.gmra.mxu0 %v1862
        %v1898 = vpop.f32.mrf.mxu0
        %v1899 = vadd.f32 0.0, %v1898
        %v1900 = vpop.f32.mrf.mxu0
        %v1901 = vpop.f32.mrf.mxu0
        %v1902 = vpop.f32.mrf.mxu0
        %1903 = vdwg.mxu0
        %v1904 = vadd.f32 %v1855, %v1899
        %v1905 = vpack.c.bf16 %v1904, %v1904
        %1906 = vst.msk [vmem:[%s215 + $0x18] sm:$0xf] %vm549, %v1905
        %s1907 = scalar_lea.vmem %s224, 224
        %v1908 = vld [vmem:[%s1907] ss:$2 sm:$0xff]
        %s1909 = scalar_lea.vmem %s224, 240
        %v1910 = vld [vmem:[%s1909] ss:$2 sm:$0xff]
        %s1911 = scalar_lea.vmem %s224, 225
        %v1912 = vld [vmem:[%s1911] ss:$2 sm:$0xff]
        %s1913 = scalar_lea.vmem %s224, 241
        %v1914 = vld [vmem:[%s1913] ss:$2 sm:$0xff]
        %v1915 = vadd.f32 %v1908, %v1910
        %v1916 = vadd.f32 %v1915, %v1912
        %v1917 = vadd.f32 %v1916, %v1914
        %v1918 = vsel %vm256, %v1917, 0.0
        %1919 = vadd.xlane.f32.xlu0 %v1918
        %v1920 = vpop.xlane.xlu0 %1919
        %v1921 = vmul.f32 %v1908, %v1908
        %v1922 = vmul.f32 %v1910, %v1910
        %v1923 = vadd.f32 %v1921, %v1922
        %v1924 = vmul.f32 %v1912, %v1912
        %v1925 = vadd.f32 %v1923, %v1924
        %v1926 = vmul.f32 %v1914, %v1914
        %v1927 = vadd.f32 %v1925, %v1926
        %v1928 = vsel %vm256, %v1927, 0.0
        %1929 = vadd.xlane.f32.xlu0 %v1928
        %v1930 = vpop.xlane.xlu0 %1929
        %v1931 = vmul.f32 %v1920, 0.0078125
        %v1932 = vmul.f32 %v1930, 0.0078125
        %v1933 = vmul.f32 %v1931, %v1931
        %v1934 = vsub.f32 %v1932, %v1933
        %v1935 = vadd.f32 %v1934, 1e-05
        %v1936 = vrsqrt.pop %v1935
        %v1937 = vsub.f32 %v1908, %v1931
        %v1938 = vmul.f32 %v1937, %v1936
        %v1939 = vmul.f32 %v1938, %v282
        %v1940 = vadd.f32 %v1939, %v289
        %v1941 = vpack.c.bf16 %v1940, %v1940
        %v1942 = vsub.f32 %v1910, %v1931
        %v1943 = vmul.f32 %v1942, %v1936
        %v1944 = vmul.f32 %v1943, %v296
        %v1945 = vadd.f32 %v1944, %v300
        %v1946 = vpack.c.bf16 %v1945, %v1945
        %v1948 = vsel %vm256, %v1946, 0
        %1950 = vmatprep.subr.bf16.mxu0 0
        %1951 = vmatpush1.bf16.msra.mxu0 0
        %1952 = vmatprep.subr.bf16.mxu0 0
        %1953 = vmatpush1.bf16.msra.mxu0 0
        %1954 = vmatprep.subr.bf16.mxu0 0
        %1955 = vmatpush1.bf16.msra.mxu0 0
        %1956 = vmatprep.subr.bf16.mxu0 0
        %1957 = vmatpush1.bf16.msra.mxu0 0
        %1958 = vmatprep.subr.bf16.mxu0 0
        %1959 = vmatpush1.bf16.msra.mxu0 0
        %1960 = vmatprep.subr.bf16.mxu0 0
        %1961 = vmatpush1.bf16.msra.mxu0 0
        %1962 = vmatprep.subr.bf16.mxu0 0
        %1963 = vmatpush1.bf16.msra.mxu0 %v313
        %1964 = vmatprep.subr.bf16.mxu0 0
        %1965 = vmatpush1.bf16.msra.mxu0 %v312
        %1966 = vmatprep.subr.bf16.mxu0 0
        %1967 = vmatpush2.bf16.msra.mxu0 0
        %1968 = vmatprep.subr.bf16.mxu0 0
        %1969 = vmatpush2.bf16.msra.mxu0 0
        %1970 = vmatprep.subr.bf16.mxu0 0
        %1971 = vmatpush2.bf16.msra.mxu0 0
        %1972 = vmatprep.subr.bf16.mxu0 0
        %1973 = vmatpush2.bf16.msra.mxu0 0
        %1974 = vmatprep.subr.bf16.mxu0 0
        %1975 = vmatpush2.bf16.msra.mxu0 0
        %1976 = vmatprep.subr.bf16.mxu0 0
        %1977 = vmatpush2.bf16.msra.mxu0 0
        %1978 = vmatprep.subr.bf16.mxu0 0
        %1979 = vmatpush2.bf16.msra.mxu0 0
        %1980 = vmatprep.subr.bf16.mxu0 0
        %1981 = vmatpush2.bf16.msra.mxu0 0
        %1982 = vmatprep.mubr.bf16.mxu0 0
        %1983 = vmatmul.mubr.bf16.gmra.mxu0 %v1948
        %v1984 = vpop.f32.mrf.mxu0
        %v1985 = vadd.f32 0.0, %v1984
        %v1986 = vpop.f32.mrf.mxu0
        %v1987 = vpop.f32.mrf.mxu0
        %v1988 = vpop.f32.mrf.mxu0
        %1989 = vdwg.mxu0
        %v1991 = vsel %vm256, %v1941, 0
        %1993 = vmatprep.subr.bf16.mxu0 0
        %1994 = vmatpush1.bf16.msra.mxu0 0
        %1995 = vmatprep.subr.bf16.mxu0 0
        %1996 = vmatpush1.bf16.msra.mxu0 0
        %1997 = vmatprep.subr.bf16.mxu0 0
        %1998 = vmatpush1.bf16.msra.mxu0 0
        %1999 = vmatprep.subr.bf16.mxu0 0
        %2000 = vmatpush1.bf16.msra.mxu0 0
        %2001 = vmatprep.subr.bf16.mxu0 0
        %2002 = vmatpush1.bf16.msra.mxu0 0
        %2003 = vmatprep.subr.bf16.mxu0 0
        %2004 = vmatpush1.bf16.msra.mxu0 0
        %2005 = vmatprep.subr.bf16.mxu0 0
        %2006 = vmatpush1.bf16.msra.mxu0 %v368
        %2007 = vmatprep.subr.bf16.mxu0 0
        %2008 = vmatpush1.bf16.msra.mxu0 %v367
        %2009 = vmatprep.subr.bf16.mxu0 0
        %2010 = vmatpush2.bf16.msra.mxu0 0
        %2011 = vmatprep.subr.bf16.mxu0 0
        %2012 = vmatpush2.bf16.msra.mxu0 0
        %2013 = vmatprep.subr.bf16.mxu0 0
        %2014 = vmatpush2.bf16.msra.mxu0 0
        %2015 = vmatprep.subr.bf16.mxu0 0
        %2016 = vmatpush2.bf16.msra.mxu0 0
        %2017 = vmatprep.subr.bf16.mxu0 0
        %2018 = vmatpush2.bf16.msra.mxu0 0
        %2019 = vmatprep.subr.bf16.mxu0 0
        %2020 = vmatpush2.bf16.msra.mxu0 0
        %2021 = vmatprep.subr.bf16.mxu0 0
        %2022 = vmatpush2.bf16.msra.mxu0 0
        %2023 = vmatprep.subr.bf16.mxu0 0
        %2024 = vmatpush2.bf16.msra.mxu0 0
        %2025 = vmatprep.mubr.bf16.mxu0 0
        %2026 = vmatmul.mubr.bf16.gmra.mxu0 %v1991
        %v2027 = vpop.f32.mrf.mxu0
        %v2028 = vadd.f32 %v1985, %v2027
        %v2029 = vpop.f32.mrf.mxu0
        %v2030 = vpop.f32.mrf.mxu0
        %v2031 = vpop.f32.mrf.mxu0
        %2032 = vdwg.mxu0
        %v2033 = vsub.f32 %v1912, %v1931
        %v2034 = vmul.f32 %v2033, %v1936
        %v2035 = vmul.f32 %v2034, %v417
        %v2036 = vadd.f32 %v2035, %v421
        %v2037 = vpack.c.bf16 %v2036, %v2036
        %v2039 = vsel %vm256, %v2037, 0
        %2041 = vmatprep.subr.bf16.mxu0 0
        %2042 = vmatpush1.bf16.msra.mxu0 0
        %2043 = vmatprep.subr.bf16.mxu0 0
        %2044 = vmatpush1.bf16.msra.mxu0 0
        %2045 = vmatprep.subr.bf16.mxu0 0
        %2046 = vmatpush1.bf16.msra.mxu0 0
        %2047 = vmatprep.subr.bf16.mxu0 0
        %2048 = vmatpush1.bf16.msra.mxu0 0
        %2049 = vmatprep.subr.bf16.mxu0 0
        %2050 = vmatpush1.bf16.msra.mxu0 0
        %2051 = vmatprep.subr.bf16.mxu0 0
        %2052 = vmatpush1.bf16.msra.mxu0 0
        %2053 = vmatprep.subr.bf16.mxu0 0
        %2054 = vmatpush1.bf16.msra.mxu0 %v434
        %2055 = vmatprep.subr.bf16.mxu0 0
        %2056 = vmatpush1.bf16.msra.mxu0 %v433
        %2057 = vmatprep.subr.bf16.mxu0 0
        %2058 = vmatpush2.bf16.msra.mxu0 0
        %2059 = vmatprep.subr.bf16.mxu0 0
        %2060 = vmatpush2.bf16.msra.mxu0 0
        %2061 = vmatprep.subr.bf16.mxu0 0
        %2062 = vmatpush2.bf16.msra.mxu0 0
        %2063 = vmatprep.subr.bf16.mxu0 0
        %2064 = vmatpush2.bf16.msra.mxu0 0
        %2065 = vmatprep.subr.bf16.mxu0 0
        %2066 = vmatpush2.bf16.msra.mxu0 0
        %2067 = vmatprep.subr.bf16.mxu0 0
        %2068 = vmatpush2.bf16.msra.mxu0 0
        %2069 = vmatprep.subr.bf16.mxu0 0
        %2070 = vmatpush2.bf16.msra.mxu0 0
        %2071 = vmatprep.subr.bf16.mxu0 0
        %2072 = vmatpush2.bf16.msra.mxu0 0
        %2073 = vmatprep.mubr.bf16.mxu0 0
        %2074 = vmatmul.mubr.bf16.gmra.mxu0 %v2039
        %v2075 = vpop.f32.mrf.mxu0
        %v2076 = vadd.f32 0.0, %v2075
        %v2077 = vpop.f32.mrf.mxu0
        %v2078 = vpop.f32.mrf.mxu0
        %v2079 = vpop.f32.mrf.mxu0
        %2080 = vdwg.mxu0
        %v2081 = vadd.f32 %v2028, %v2076
        %v2082 = vsub.f32 %v1914, %v1931
        %v2083 = vmul.f32 %v2082, %v1936
        %v2084 = vmul.f32 %v2083, %v484
        %v2085 = vadd.f32 %v2084, %v488
        %v2086 = vpack.c.bf16 %v2085, %v2085
        %v2088 = vsel %vm256, %v2086, 0
        %2090 = vmatprep.subr.bf16.mxu0 0
        %2091 = vmatpush1.bf16.msra.mxu0 0
        %2092 = vmatprep.subr.bf16.mxu0 0
        %2093 = vmatpush1.bf16.msra.mxu0 0
        %2094 = vmatprep.subr.bf16.mxu0 0
        %2095 = vmatpush1.bf16.msra.mxu0 0
        %2096 = vmatprep.subr.bf16.mxu0 0
        %2097 = vmatpush1.bf16.msra.mxu0 0
        %2098 = vmatprep.subr.bf16.mxu0 0
        %2099 = vmatpush1.bf16.msra.mxu0 0
        %2100 = vmatprep.subr.bf16.mxu0 0
        %2101 = vmatpush1.bf16.msra.mxu0 0
        %2102 = vmatprep.subr.bf16.mxu0 0
        %2103 = vmatpush1.bf16.msra.mxu0 %v501
        %2104 = vmatprep.subr.bf16.mxu0 0
        %2105 = vmatpush1.bf16.msra.mxu0 %v500
        %2106 = vmatprep.subr.bf16.mxu0 0
        %2107 = vmatpush2.bf16.msra.mxu0 0
        %2108 = vmatprep.subr.bf16.mxu0 0
        %2109 = vmatpush2.bf16.msra.mxu0 0
        %2110 = vmatprep.subr.bf16.mxu0 0
        %2111 = vmatpush2.bf16.msra.mxu0 0
        %2112 = vmatprep.subr.bf16.mxu0 0
        %2113 = vmatpush2.bf16.msra.mxu0 0
        %2114 = vmatprep.subr.bf16.mxu0 0
        %2115 = vmatpush2.bf16.msra.mxu0 0
        %2116 = vmatprep.subr.bf16.mxu0 0
        %2117 = vmatpush2.bf16.msra.mxu0 0
        %2118 = vmatprep.subr.bf16.mxu0 0
        %2119 = vmatpush2.bf16.msra.mxu0 0
        %2120 = vmatprep.subr.bf16.mxu0 0
        %2121 = vmatpush2.bf16.msra.mxu0 0
        %2122 = vmatprep.mubr.bf16.mxu0 0
        %2123 = vmatmul.mubr.bf16.gmra.mxu0 %v2088
        %v2124 = vpop.f32.mrf.mxu0
        %v2125 = vadd.f32 0.0, %v2124
        %v2126 = vpop.f32.mrf.mxu0
        %v2127 = vpop.f32.mrf.mxu0
        %v2128 = vpop.f32.mrf.mxu0
        %2129 = vdwg.mxu0
        %v2130 = vadd.f32 %v2081, %v2125
        %v2131 = vpack.c.bf16 %v2130, %v2130
        %2132 = vst.msk [vmem:[%s215 + $0x1c] sm:$0xf] %vm549, %v2131
        %s2133 = sand.u32 %s131, 1
        %s2134 = scalar_lea.sflag [#allocation3], %s2133
        %s2135 = sand.u32 %s131, 1
        %s2136 = smul.addr %s2135, 32
        %s2137 = scalar_lea.vmem [#allocation2], %s2136
        // Predicated region
        $region37: #{tpu_custom_call.1} parent=35 // pred_check
          %p2138 = pneg %p141
        $region38: #{tpu_custom_call.1} parent=35 // pred_check_branch
          %2140 = sbr.rel (%p2138) target = $region40
        $region39: #{tpu_custom_call.1} parent=35 // pred_region
          %s2141 = smul.u32 8, %s23
          %s2143 = ssub.s32 512, 512
          %2144 = vsyncadd %s2134, %s2143
          %s2145 = smul.addr %s22, 8
          %s2146 = sadd.s32 %s2141, %s2145
          %s2147 = smul.addr %s2146, 64
          %s2148 = scalar_lea.hbm %s4, %s2147
          %s2149 = sshll.u32 %s2137, 4
          %s2150 = int_to_ptr.vmem [resolvable:$true] %s2149
          %2155 = dma.vmem_to_hbm [thread:$0]  %s2150, 512, %s2148, %s2134, 64, 64, 4
        $region40: #{tpu_custom_call.1} parent=35 // pred_fallthru
          _
      $region36: #{tpu_custom_call.1} parent=5 // pred_fallthru
        _
      %p2156 = scmp.le.s32.totalorder 2, %s13
      // Predicated region
      $region41: #{tpu_custom_call.1} parent=5 // pred_check
        %p2157 = pneg %p2156
      $region42: #{tpu_custom_call.1} parent=5 // pred_check_branch
        %2159 = sbr.rel (%p2157) target = $region44
      $region43: #{tpu_custom_call.1} parent=5 // pred_region
        %s2160 = ssub.s32 %s13, 2
        // Predicated region
        $region45: #{tpu_custom_call.1} parent=43 // pred_check
          %p2161 = pneg %p147
        $region46: #{tpu_custom_call.1} parent=43 // pred_check_branch
          %2163 = sbr.rel (%p2161) target = $region48
        $region47: #{tpu_custom_call.1} parent=43 // pred_region
          %s2164 = sand.u32 %s132, 1
          %s2165 = scalar_lea.sflag [#allocation3], %s2164
          %s2166 = sand.u32 %s132, 1
          %s2167 = smul.addr %s2166, 32
          %s2168 = scalar_lea.vmem [#allocation2], %s2167
          %2169 = dma.done %s2165, 512
        $region48: #{tpu_custom_call.1} parent=43 // pred_fallthru
          _
      $region44: #{tpu_custom_call.1} parent=5 // pred_fallthru
        _
    $region6: #{tpu_custom_call.1} parent=1 // loop_footer
      %s17 = sadd.s32 1, %s13
    $region7: #{tpu_custom_call.1} parent=1 // loop_footer_branch
      %12 = sbr.rel target = $region3
    $region8: #{tpu_custom_call.1} parent=1 // loop_exit
      _
    %2170 = vsyncpa [#allocation3], 1
    %s2171 = scalar_lea.sflag [#allocation3], 1
    %2172 = vsyncpa %s2171, 1

// kernel: tpu_custom_call.1
$region0: #{tpu_custom_call.1}
  #allocation0 [shape = 'u32[]', space=smem, size = 0x4, offset = 0x4, fixed_abs, tag = 'smem constant byte address 0x4 - core index']
  #allocation1 [shape = 'u32[144,128]{1,0:T(1,128)}', space=vmem, size = 0x12000, scoped, tag = 'internal scratch']
  %s0 = inlined_call_operand.vmem [shape: bf16[128,128], index: 0, kind: input, shape index: {}]
  %s1 = inlined_call_operand.vmem [shape: f32[1,128], index: 1, kind: input, shape index: {}]
  %s2 = inlined_call_operand.vmem [shape: f32[1,128], index: 2, kind: input, shape index: {}]
  %s3 = inlined_call_operand.vmem [shape: bf16[128,64], index: 3, kind: input, shape index: {}]
  %s4 = inlined_call_operand.vmem [shape: bf16[128,64], index: 4, kind: output, shape index: {}]
  %s5 = sld [smem:[#allocation0]]
  $region26: #{tpu_custom_call.1} parent=0
    _
  %s7 = ssub.s32 1, %s5
  %s8 = scalar_select 0, %s7, %s5
  // Predicated region
  $region2: #{tpu_custom_call.1} parent=0 // pred_check
    _
  $region3: #{tpu_custom_call.1} parent=0 // pred_check_branch
    %10 = sbr.rel (0) target = $region5
  $region4: #{tpu_custom_call.1} parent=0 // pred_region
    _
  $region5: #{tpu_custom_call.1} parent=0 // pred_fallthru
    _
  // Predicated region
  $region6: #{tpu_custom_call.1} parent=0 // pred_check
    _
  $region7: #{tpu_custom_call.1} parent=0 // pred_check_branch
    %12 = sbr.rel (0) target = $region9
  $region8: #{tpu_custom_call.1} parent=0 // pred_region
    _
  $region9: #{tpu_custom_call.1} parent=0 // pred_fallthru
    _
  // Predicated region
  $region10: #{tpu_custom_call.1} parent=0 // pred_check
    _
  $region11: #{tpu_custom_call.1} parent=0 // pred_check_branch
    %14 = sbr.rel (0) target = $region13
  $region12: #{tpu_custom_call.1} parent=0 // pred_region
    _
  $region13: #{tpu_custom_call.1} parent=0 // pred_fallthru
    _
  // Predicated region
  $region14: #{tpu_custom_call.1} parent=0 // pred_check
    _
  $region15: #{tpu_custom_call.1} parent=0 // pred_check_branch
    %16 = sbr.rel (0) target = $region17
  $region16: #{tpu_custom_call.1} parent=0 // pred_region
    _
  $region17: #{tpu_custom_call.1} parent=0 // pred_fallthru
    _
  %v18 = vld [vmem:[%s0] sm:$0xf]
  %v19 = vld [vmem:[%s0 + $0x4] sm:$0xf]
  %v20 = vld [vmem:[%s0 + $0x8] sm:$0xf]
  %v21 = vld [vmem:[%s0 + $0xc] sm:$0xf]
  %v22 = vld [vmem:[%s0 + $0x10] sm:$0xf]
  %v23 = vld [vmem:[%s0 + $0x14] sm:$0xf]
  %v24 = vld [vmem:[%s0 + $0x18] sm:$0xf]
  %v25 = vld [vmem:[%s0 + $0x1c] sm:$0xf]
  %v26 = vld [vmem:[%s0 + $0x20] sm:$0xf]
  %v27 = vld [vmem:[%s0 + $0x24] sm:$0xf]
  %v28 = vld [vmem:[%s0 + $0x28] sm:$0xf]
  %v29 = vld [vmem:[%s0 + $0x2c] sm:$0xf]
  %v30 = vld [vmem:[%s0 + $0x30] sm:$0xf]
  %v31 = vld [vmem:[%s0 + $0x34] sm:$0xf]
  %v32 = vld [vmem:[%s0 + $0x38] sm:$0xf]
  %v33 = vld [vmem:[%s0 + $0x3c] sm:$0xf]
  %v34 = vunpack.c.l.bf16 %v18
  %v35 = vunpack.c.l.bf16 %v19
  %v36 = vunpack.c.l.bf16 %v20
  %v37 = vunpack.c.l.bf16 %v21
  %v38 = vunpack.c.l.bf16 %v22
  %v39 = vunpack.c.l.bf16 %v23
  %v40 = vunpack.c.l.bf16 %v24
  %v41 = vunpack.c.l.bf16 %v25
  %v42 = vunpack.c.l.bf16 %v26
  %v43 = vunpack.c.l.bf16 %v27
  %v44 = vunpack.c.l.bf16 %v28
  %v45 = vunpack.c.l.bf16 %v29
  %v46 = vunpack.c.l.bf16 %v30
  %v47 = vunpack.c.l.bf16 %v31
  %v48 = vunpack.c.l.bf16 %v32
  %v49 = vunpack.c.l.bf16 %v33
  %50 = vadd.xlane.f32.xlu0 %v34
  %v51 = vpop.xlane.xlu0 %50
  %52 = vadd.xlane.f32.xlu0 %v35
  %v53 = vpop.xlane.xlu0 %52
  %54 = vadd.xlane.f32.xlu0 %v36
  %v55 = vpop.xlane.xlu0 %54
  %56 = vadd.xlane.f32.xlu0 %v37
  %v57 = vpop.xlane.xlu0 %56
  %58 = vadd.xlane.f32.xlu0 %v38
  %v59 = vpop.xlane.xlu0 %58
  %60 = vadd.xlane.f32.xlu0 %v39
  %v61 = vpop.xlane.xlu0 %60
  %62 = vadd.xlane.f32.xlu0 %v40
  %v63 = vpop.xlane.xlu0 %62
  %64 = vadd.xlane.f32.xlu0 %v41
  %v65 = vpop.xlane.xlu0 %64
  %66 = vadd.xlane.f32.xlu0 %v42
  %v67 = vpop.xlane.xlu0 %66
  %68 = vadd.xlane.f32.xlu0 %v43
  %v69 = vpop.xlane.xlu0 %68
  %70 = vadd.xlane.f32.xlu0 %v44
  %v71 = vpop.xlane.xlu0 %70
  %72 = vadd.xlane.f32.xlu0 %v45
  %v73 = vpop.xlane.xlu0 %72
  %74 = vadd.xlane.f32.xlu0 %v46
  %v75 = vpop.xlane.xlu0 %74
  %76 = vadd.xlane.f32.xlu0 %v47
  %v77 = vpop.xlane.xlu0 %76
  %78 = vadd.xlane.f32.xlu0 %v48
  %v79 = vpop.xlane.xlu0 %78
  %80 = vadd.xlane.f32.xlu0 %v49
  %v81 = vpop.xlane.xlu0 %80
  %v82 = vmul.f32 %v34, %v34
  %v83 = vmul.f32 %v35, %v35
  %v84 = vmul.f32 %v36, %v36
  %v85 = vmul.f32 %v37, %v37
  %v86 = vmul.f32 %v38, %v38
  %v87 = vmul.f32 %v39, %v39
  %v88 = vmul.f32 %v40, %v40
  %v89 = vmul.f32 %v41, %v41
  %v90 = vmul.f32 %v42, %v42
  %v91 = vmul.f32 %v43, %v43
  %v92 = vmul.f32 %v44, %v44
  %v93 = vmul.f32 %v45, %v45
  %v94 = vmul.f32 %v46, %v46
  %v95 = vmul.f32 %v47, %v47
  %v96 = vmul.f32 %v48, %v48
  %v97 = vmul.f32 %v49, %v49
  %98 = vadd.xlane.f32.xlu0 %v82
  %v99 = vpop.xlane.xlu0 %98
  %100 = vadd.xlane.f32.xlu0 %v83
  %v101 = vpop.xlane.xlu0 %100
  %102 = vadd.xlane.f32.xlu0 %v84
  %v103 = vpop.xlane.xlu0 %102
  %104 = vadd.xlane.f32.xlu0 %v85
  %v105 = vpop.xlane.xlu0 %104
  %106 = vadd.xlane.f32.xlu0 %v86
  %v107 = vpop.xlane.xlu0 %106
  %108 = vadd.xlane.f32.xlu0 %v87
  %v109 = vpop.xlane.xlu0 %108
  %110 = vadd.xlane.f32.xlu0 %v88
  %v111 = vpop.xlane.xlu0 %110
  %112 = vadd.xlane.f32.xlu0 %v89
  %v113 = vpop.xlane.xlu0 %112
  %114 = vadd.xlane.f32.xlu0 %v90
  %v115 = vpop.xlane.xlu0 %114
  %116 = vadd.xlane.f32.xlu0 %v91
  %v117 = vpop.xlane.xlu0 %116
  %118 = vadd.xlane.f32.xlu0 %v92
  %v119 = vpop.xlane.xlu0 %118
  %120 = vadd.xlane.f32.xlu0 %v93
  %v121 = vpop.xlane.xlu0 %120
  %122 = vadd.xlane.f32.xlu0 %v94
  %v123 = vpop.xlane.xlu0 %122
  %124 = vadd.xlane.f32.xlu0 %v95
  %v125 = vpop.xlane.xlu0 %124
  %126 = vadd.xlane.f32.xlu0 %v96
  %v127 = vpop.xlane.xlu0 %126
  %128 = vadd.xlane.f32.xlu0 %v97
  %v129 = vpop.xlane.xlu0 %128
  %v130 = vrcp.pop 128.0
  %v131 = vmul.f32 %v51, %v130
  %v132 = vmul.f32 %v53, %v130
  %v133 = vmul.f32 %v55, %v130
  %v134 = vmul.f32 %v57, %v130
  %v135 = vmul.f32 %v59, %v130
  %v136 = vmul.f32 %v61, %v130
  %v137 = vmul.f32 %v63, %v130
  %v138 = vmul.f32 %v65, %v130
  %v139 = vmul.f32 %v67, %v130
  %v140 = vmul.f32 %v69, %v130
  %v141 = vmul.f32 %v71, %v130
  %v142 = vmul.f32 %v73, %v130
  %v143 = vmul.f32 %v75, %v130
  %v144 = vmul.f32 %v77, %v130
  %v145 = vmul.f32 %v79, %v130
  %v146 = vmul.f32 %v81, %v130
  %v147 = vmul.f32 %v99, %v130
  %v148 = vmul.f32 %v101, %v130
  %v149 = vmul.f32 %v103, %v130
  %v150 = vmul.f32 %v105, %v130
  %v151 = vmul.f32 %v107, %v130
  %v152 = vmul.f32 %v109, %v130
  %v153 = vmul.f32 %v111, %v130
  %v154 = vmul.f32 %v113, %v130
  %v155 = vmul.f32 %v115, %v130
  %v156 = vmul.f32 %v117, %v130
  %v157 = vmul.f32 %v119, %v130
  %v158 = vmul.f32 %v121, %v130
  %v159 = vmul.f32 %v123, %v130
  %v160 = vmul.f32 %v125, %v130
  %v161 = vmul.f32 %v127, %v130
  %v162 = vmul.f32 %v129, %v130
  %v163 = vmul.f32 %v131, %v131
  %v164 = vmul.f32 %v132, %v132
  %v165 = vmul.f32 %v133, %v133
  %v166 = vmul.f32 %v134, %v134
  %v167 = vmul.f32 %v135, %v135
  %v168 = vmul.f32 %v136, %v136
  %v169 = vmul.f32 %v137, %v137
  %v170 = vmul.f32 %v138, %v138
  %v171 = vmul.f32 %v139, %v139
  %v172 = vmul.f32 %v140, %v140
  %v173 = vmul.f32 %v141, %v141
  %v174 = vmul.f32 %v142, %v142
  %v175 = vmul.f32 %v143, %v143
  %v176 = vmul.f32 %v144, %v144
  %v177 = vmul.f32 %v145, %v145
  %v178 = vmul.f32 %v146, %v146
  %v179 = vsub.f32 %v147, %v163
  %v180 = vsub.f32 %v148, %v164
  %v181 = vsub.f32 %v149, %v165
  %v182 = vsub.f32 %v150, %v166
  %v183 = vsub.f32 %v151, %v167
  %v184 = vsub.f32 %v152, %v168
  %v185 = vsub.f32 %v153, %v169
  %v186 = vsub.f32 %v154, %v170
  %v187 = vsub.f32 %v155, %v171
  %v188 = vsub.f32 %v156, %v172
  %v189 = vsub.f32 %v157, %v173
  %v190 = vsub.f32 %v158, %v174
  %v191 = vsub.f32 %v159, %v175
  %v192 = vsub.f32 %v160, %v176
  %v193 = vsub.f32 %v161, %v177
  %v194 = vsub.f32 %v162, %v178
  %v195 = vsub.f32 %v34, %v131
  %v196 = vsub.f32 %v35, %v132
  %v197 = vsub.f32 %v36, %v133
  %v198 = vsub.f32 %v37, %v134
  %v199 = vsub.f32 %v38, %v135
  %v200 = vsub.f32 %v39, %v136
  %v201 = vsub.f32 %v40, %v137
  %v202 = vsub.f32 %v41, %v138
  %v203 = vsub.f32 %v42, %v139
  %v204 = vsub.f32 %v43, %v140
  %v205 = vsub.f32 %v44, %v141
  %v206 = vsub.f32 %v45, %v142
  %v207 = vsub.f32 %v46, %v143
  %v208 = vsub.f32 %v47, %v144
  %v209 = vsub.f32 %v48, %v145
  %v210 = vsub.f32 %v49, %v146
  %v211 = vadd.f32 %v179, 1e-05
  %v212 = vadd.f32 %v180, 1e-05
  %v213 = vadd.f32 %v181, 1e-05
  %v214 = vadd.f32 %v182, 1e-05
  %v215 = vadd.f32 %v183, 1e-05
  %v216 = vadd.f32 %v184, 1e-05
  %v217 = vadd.f32 %v185, 1e-05
  %v218 = vadd.f32 %v186, 1e-05
  %v219 = vadd.f32 %v187, 1e-05
  %v220 = vadd.f32 %v188, 1e-05
  %v221 = vadd.f32 %v189, 1e-05
  %v222 = vadd.f32 %v190, 1e-05
  %v223 = vadd.f32 %v191, 1e-05
  %v224 = vadd.f32 %v192, 1e-05
  %v225 = vadd.f32 %v193, 1e-05
  %v226 = vadd.f32 %v194, 1e-05
  %v227 = vrsqrt.pop %v211
  %v228 = vrsqrt.pop %v212
  %v229 = vrsqrt.pop %v213
  %v230 = vrsqrt.pop %v214
  %v231 = vrsqrt.pop %v215
  %v232 = vrsqrt.pop %v216
  %v233 = vrsqrt.pop %v217
  %v234 = vrsqrt.pop %v218
  %v235 = vrsqrt.pop %v219
  %v236 = vrsqrt.pop %v220
  %v237 = vrsqrt.pop %v221
  %v238 = vrsqrt.pop %v222
  %v239 = vrsqrt.pop %v223
  %v240 = vrsqrt.pop %v224
  %v241 = vrsqrt.pop %v225
  %v242 = vrsqrt.pop %v226
  %v243 = vmul.f32 %v195, %v227
  %v244 = vmul.f32 %v196, %v228
  %v245 = vmul.f32 %v197, %v229
  %v246 = vmul.f32 %v198, %v230
  %v247 = vmul.f32 %v199, %v231
  %v248 = vmul.f32 %v200, %v232
  %v249 = vmul.f32 %v201, %v233
  %v250 = vmul.f32 %v202, %v234
  %v251 = vmul.f32 %v203, %v235
  %v252 = vmul.f32 %v204, %v236
  %v253 = vmul.f32 %v205, %v237
  %v254 = vmul.f32 %v206, %v238
  %v255 = vmul.f32 %v207, %v239
  %v256 = vmul.f32 %v208, %v240
  %v257 = vmul.f32 %v209, %v241
  %v258 = vmul.f32 %v210, %v242
  %v259 = vld [vmem:[%s1] sm:$0x1]
  %v261 = vlaneseq
  %v262 = vshrl.u32 %v261, 7
  %v263 = vsub.s32 0, %v262
  %v264 = vrot.slane %v259, %v263
  %v266 = vmul.f32 %v243, %v264
  %v267 = vmul.f32 %v244, %v264
  %v268 = vmul.f32 %v245, %v264
  %v269 = vmul.f32 %v246, %v264
  %v270 = vmul.f32 %v247, %v264
  %v271 = vmul.f32 %v248, %v264
  %v272 = vmul.f32 %v249, %v264
  %v273 = vmul.f32 %v250, %v264
  %v274 = vmul.f32 %v251, %v264
  %v275 = vmul.f32 %v252, %v264
  %v276 = vmul.f32 %v253, %v264
  %v277 = vmul.f32 %v254, %v264
  %v278 = vmul.f32 %v255, %v264
  %v279 = vmul.f32 %v256, %v264
  %v280 = vmul.f32 %v257, %v264
  %v281 = vmul.f32 %v258, %v264
  %v282 = vld [vmem:[%s2] sm:$0x1]
  %v284 = vlaneseq
  %v285 = vshrl.u32 %v284, 7
  %v286 = vsub.s32 0, %v285
  %v287 = vrot.slane %v282, %v286
  %v289 = vadd.f32 %v266, %v287
  %v290 = vadd.f32 %v267, %v287
  %v291 = vadd.f32 %v268, %v287
  %v292 = vadd.f32 %v269, %v287
  %v293 = vadd.f32 %v270, %v287
  %v294 = vadd.f32 %v271, %v287
  %v295 = vadd.f32 %v272, %v287
  %v296 = vadd.f32 %v273, %v287
  %v297 = vadd.f32 %v274, %v287
  %v298 = vadd.f32 %v275, %v287
  %v299 = vadd.f32 %v276, %v287
  %v300 = vadd.f32 %v277, %v287
  %v301 = vadd.f32 %v278, %v287
  %v302 = vadd.f32 %v279, %v287
  %v303 = vadd.f32 %v280, %v287
  %v304 = vadd.f32 %v281, %v287
  %v305 = vpack.c.bf16 %v290, %v289
  %v306 = vpack.c.bf16 %v292, %v291
  %v307 = vpack.c.bf16 %v294, %v293
  %v308 = vpack.c.bf16 %v296, %v295
  %v309 = vpack.c.bf16 %v298, %v297
  %v310 = vpack.c.bf16 %v300, %v299
  %v311 = vpack.c.bf16 %v302, %v301
  %v312 = vpack.c.bf16 %v304, %v303
  %v313 = vld [vmem:[%s3] sm:$0xf]
  %v314 = vld [vmem:[%s3 + $0x4] sm:$0xf]
  %v315 = vld [vmem:[%s3 + $0x8] sm:$0xf]
  %v316 = vld [vmem:[%s3 + $0xc] sm:$0xf]
  %v317 = vld [vmem:[%s3 + $0x10] sm:$0xf]
  %v318 = vld [vmem:[%s3 + $0x14] sm:$0xf]
  %v319 = vld [vmem:[%s3 + $0x18] sm:$0xf]
  %v320 = vld [vmem:[%s3 + $0x1c] sm:$0xf]
  %v321 = vld [vmem:[%s3 + $0x20] sm:$0xf]
  %v322 = vld [vmem:[%s3 + $0x24] sm:$0xf]
  %v323 = vld [vmem:[%s3 + $0x28] sm:$0xf]
  %v324 = vld [vmem:[%s3 + $0x2c] sm:$0xf]
  %v325 = vld [vmem:[%s3 + $0x30] sm:$0xf]
  %v326 = vld [vmem:[%s3 + $0x34] sm:$0xf]
  %v327 = vld [vmem:[%s3 + $0x38] sm:$0xf]
  %v328 = vld [vmem:[%s3 + $0x3c] sm:$0xf]
  %v345 = vunpack.c.l.b16 %v313
  %v346 = vunpack.c.l.b16 %v314
  %v347 = vunpack.c.l.b16 %v315
  %v348 = vunpack.c.l.b16 %v316
  %v349 = vunpack.c.l.b16 %v317
  %v350 = vunpack.c.l.b16 %v318
  %v351 = vunpack.c.l.b16 %v319
  %v352 = vunpack.c.l.b16 %v320
  %v353 = vunpack.c.l.b16 %v321
  %v354 = vunpack.c.l.b16 %v322
  %v355 = vunpack.c.l.b16 %v323
  %v356 = vunpack.c.l.b16 %v324
  %v357 = vunpack.c.l.b16 %v325
  %v358 = vunpack.c.l.b16 %v326
  %v359 = vunpack.c.l.b16 %v327
  %v360 = vunpack.c.l.b16 %v328
  %v361 = vpack.c.b16 %v346, %v345
  %v362 = vpack.c.b16 %v348, %v347
  %v363 = vpack.c.b16 %v350, %v349
  %v364 = vpack.c.b16 %v352, %v351
  %v365 = vpack.c.b16 %v354, %v353
  %v366 = vpack.c.b16 %v356, %v355
  %v367 = vpack.c.b16 %v358, %v357
  %v368 = vpack.c.b16 %v360, %v359
  %377 = vmatprep.subr.bf16.mxu0 0
  %378 = vmatpush1.bf16.msra.mxu0 %v368
  %379 = vmatprep.subr.bf16.mxu0 0
  %380 = vmatpush1.bf16.msra.mxu0 %v367
  %381 = vmatprep.subr.bf16.mxu0 0
  %382 = vmatpush1.bf16.msra.mxu0 %v366
  %383 = vmatprep.subr.bf16.mxu0 0
  %384 = vmatpush1.bf16.msra.mxu0 %v365
  %385 = vmatprep.subr.bf16.mxu0 0
  %386 = vmatpush1.bf16.msra.mxu0 %v364
  %387 = vmatprep.subr.bf16.mxu0 0
  %388 = vmatpush1.bf16.msra.mxu0 %v363
  %389 = vmatprep.subr.bf16.mxu0 0
  %390 = vmatpush1.bf16.msra.mxu0 %v362
  %391 = vmatprep.subr.bf16.mxu0 0
  %392 = vmatpush1.bf16.msra.mxu0 %v361
  %393 = vmatprep.subr.bf16.mxu0 0
  %394 = vmatpush2.bf16.msra.mxu0 0
  %395 = vmatprep.subr.bf16.mxu0 0
  %396 = vmatpush2.bf16.msra.mxu0 0
  %397 = vmatprep.subr.bf16.mxu0 0
  %398 = vmatpush2.bf16.msra.mxu0 0
  %399 = vmatprep.subr.bf16.mxu0 0
  %400 = vmatpush2.bf16.msra.mxu0 0
  %401 = vmatprep.subr.bf16.mxu0 0
  %402 = vmatpush2.bf16.msra.mxu0 0
  %403 = vmatprep.subr.bf16.mxu0 0
  %404 = vmatpush2.bf16.msra.mxu0 0
  %405 = vmatprep.subr.bf16.mxu0 0
  %406 = vmatpush2.bf16.msra.mxu0 0
  %407 = vmatprep.subr.bf16.mxu0 0
  %408 = vmatpush2.bf16.msra.mxu0 0
  %409 = vmatprep.mubr.bf16.mxu0 0
  %410 = vmatmul.mubr.bf16.gmra.mxu0 %v305
  %v411 = vpop.f32.mrf.mxu0
  %v412 = vadd.f32 0.0, %v411
  %v413 = vpop.f32.mrf.mxu0
  %v414 = vpop.f32.mrf.mxu0
  %v415 = vadd.f32 0.0, %v414
  %v416 = vpop.f32.mrf.mxu0
  %417 = vmatprep.mubr.bf16.mxu0 0
  %418 = vmatmul.mubr.bf16.gmra.mxu0 %v306
  %v419 = vpop.f32.mrf.mxu0
  %v420 = vadd.f32 0.0, %v419
  %v421 = vpop.f32.mrf.mxu0
  %v422 = vpop.f32.mrf.mxu0
  %v423 = vadd.f32 0.0, %v422
  %v424 = vpop.f32.mrf.mxu0
  %425 = vmatprep.mubr.bf16.mxu0 0
  %426 = vmatmul.mubr.bf16.gmra.mxu0 %v307
  %v427 = vpop.f32.mrf.mxu0
  %v428 = vadd.f32 0.0, %v427
  %v429 = vpop.f32.mrf.mxu0
  %v430 = vpop.f32.mrf.mxu0
  %v431 = vadd.f32 0.0, %v430
  %v432 = vpop.f32.mrf.mxu0
  %433 = vmatprep.mubr.bf16.mxu0 0
  %434 = vmatmul.mubr.bf16.gmra.mxu0 %v308
  %v435 = vpop.f32.mrf.mxu0
  %v436 = vadd.f32 0.0, %v435
  %v437 = vpop.f32.mrf.mxu0
  %v438 = vpop.f32.mrf.mxu0
  %v439 = vadd.f32 0.0, %v438
  %v440 = vpop.f32.mrf.mxu0
  %441 = vmatprep.mubr.bf16.mxu0 0
  %442 = vmatmul.mubr.bf16.gmra.mxu0 %v309
  %v443 = vpop.f32.mrf.mxu0
  %v444 = vadd.f32 0.0, %v443
  %v445 = vpop.f32.mrf.mxu0
  %v446 = vpop.f32.mrf.mxu0
  %v447 = vadd.f32 0.0, %v446
  %v448 = vpop.f32.mrf.mxu0
  %449 = vmatprep.mubr.bf16.mxu0 0
  %450 = vmatmul.mubr.bf16.gmra.mxu0 %v310
  %v451 = vpop.f32.mrf.mxu0
  %v452 = vadd.f32 0.0, %v451
  %v453 = vpop.f32.mrf.mxu0
  %v454 = vpop.f32.mrf.mxu0
  %v455 = vadd.f32 0.0, %v454
  %v456 = vpop.f32.mrf.mxu0
  %457 = vmatprep.mubr.bf16.mxu0 0
  %458 = vmatmul.mubr.bf16.gmra.mxu0 %v311
  %v459 = vpop.f32.mrf.mxu0
  %v460 = vadd.f32 0.0, %v459
  %v461 = vpop.f32.mrf.mxu0
  %v462 = vpop.f32.mrf.mxu0
  %v463 = vadd.f32 0.0, %v462
  %v464 = vpop.f32.mrf.mxu0
  %465 = vmatprep.mubr.bf16.mxu0 0
  %466 = vmatmul.mubr.bf16.gmra.mxu0 %v312
  %v467 = vpop.f32.mrf.mxu0
  %v468 = vadd.f32 0.0, %v467
  %v469 = vpop.f32.mrf.mxu0
  %v470 = vpop.f32.mrf.mxu0
  %v471 = vadd.f32 0.0, %v470
  %v472 = vpop.f32.mrf.mxu0
  %473 = vdwg.mxu0
  %v474 = vpack.c.bf16 %v415, %v412
  %v475 = vpack.c.bf16 %v423, %v420
  %v476 = vpack.c.bf16 %v431, %v428
  %v477 = vpack.c.bf16 %v439, %v436
  %v478 = vpack.c.bf16 %v447, %v444
  %v479 = vpack.c.bf16 %v455, %v452
  %v480 = vpack.c.bf16 %v463, %v460
  %v481 = vpack.c.bf16 %v471, %v468
  %v490 = vunpack.c.l.b16 %v474
  %v491 = vunpack.c.h.b16 %v474
  %v492 = vunpack.c.l.b16 %v475
  %v493 = vunpack.c.h.b16 %v475
  %v494 = vunpack.c.l.b16 %v476
  %v495 = vunpack.c.h.b16 %v476
  %v496 = vunpack.c.l.b16 %v477
  %v497 = vunpack.c.h.b16 %v477
  %v498 = vunpack.c.l.b16 %v478
  %v499 = vunpack.c.h.b16 %v478
  %v500 = vunpack.c.l.b16 %v479
  %v501 = vunpack.c.h.b16 %v479
  %v502 = vunpack.c.l.b16 %v480
  %v503 = vunpack.c.h.b16 %v480
  %v504 = vunpack.c.l.b16 %v481
  %v505 = vunpack.c.h.b16 %v481
  %v506 = vpack.c.b16 %v490, %v490
  %v507 = vpack.c.b16 %v491, %v491
  %v508 = vpack.c.b16 %v492, %v492
  %v509 = vpack.c.b16 %v493, %v493
  %v510 = vpack.c.b16 %v494, %v494
  %v511 = vpack.c.b16 %v495, %v495
  %v512 = vpack.c.b16 %v496, %v496
  %v513 = vpack.c.b16 %v497, %v497
  %v514 = vpack.c.b16 %v498, %v498
  %v515 = vpack.c.b16 %v499, %v499
  %v516 = vpack.c.b16 %v500, %v500
  %v517 = vpack.c.b16 %v501, %v501
  %v518 = vpack.c.b16 %v502, %v502
  %v519 = vpack.c.b16 %v503, %v503
  %v520 = vpack.c.b16 %v504, %v504
  %v521 = vpack.c.b16 %v505, %v505
  %vm538 = vcmask 519168
  %539 = vst.msk [vmem:[%s4] sm:$0xf] %vm538, %v506
  %540 = vst.msk [vmem:[%s4 + $0x4] sm:$0xf] %vm538, %v507
  %541 = vst.msk [vmem:[%s4 + $0x8] sm:$0xf] %vm538, %v508
  %542 = vst.msk [vmem:[%s4 + $0xc] sm:$0xf] %vm538, %v509
  %543 = vst.msk [vmem:[%s4 + $0x10] sm:$0xf] %vm538, %v510
  %544 = vst.msk [vmem:[%s4 + $0x14] sm:$0xf] %vm538, %v511
  %545 = vst.msk [vmem:[%s4 + $0x18] sm:$0xf] %vm538, %v512
  %546 = vst.msk [vmem:[%s4 + $0x1c] sm:$0xf] %vm538, %v513
  %547 = vst.msk [vmem:[%s4 + $0x20] sm:$0xf] %vm538, %v514
  %548 = vst.msk [vmem:[%s4 + $0x24] sm:$0xf] %vm538, %v515
  %549 = vst.msk [vmem:[%s4 + $0x28] sm:$0xf] %vm538, %v516
  %550 = vst.msk [vmem:[%s4 + $0x2c] sm:$0xf] %vm538, %v517
  %551 = vst.msk [vmem:[%s4 + $0x30] sm:$0xf] %vm538, %v518
  %552 = vst.msk [vmem:[%s4 + $0x34] sm:$0xf] %vm538, %v519
  %553 = vst.msk [vmem:[%s4 + $0x38] sm:$0xf] %vm538, %v520
  %554 = vst.msk [vmem:[%s4 + $0x3c] sm:$0xf] %vm538, %v521
  // Predicated region
  $region18: #{tpu_custom_call.1} parent=0 // pred_check
    _
  $region19: #{tpu_custom_call.1} parent=0 // pred_check_branch
    %556 = sbr.rel (0) target = $region21
  $region20: #{tpu_custom_call.1} parent=0 // pred_region
    _
  $region21: #{tpu_custom_call.1} parent=0 // pred_fallthru
    _
  // Predicated region
  $region22: #{tpu_custom_call.1} parent=0 // pred_check
    _
  $region23: #{tpu_custom_call.1} parent=0 // pred_check_branch
    %558 = sbr.rel (0) target = $region25
  $region24: #{tpu_custom_call.1} parent=0 // pred_region
    _
  $region25: #{tpu_custom_call.1} parent=0 // pred_fallthru
    _

</llo_original>
